<compile_context>
chip_gen: v5e
topology: v5e:2x2
jax: 0.10.0
libtpu: 0.0.40
codegen_flags: <defaults>
</compile_context>

<pallas_src>
import jax
import jax.numpy as jnp
from jax.experimental import pallas as pl
from jax.experimental.pallas import tpu as pltpu

LATENT_DIM = 32
H1, H2, H3 = 128, 256, 512
IMG_C, IMG_H, IMG_W = 3, 64, 64
N_OUT = IMG_C * IMG_H * IMG_W          # 12288
TN = 2048                              # output-column tile -> 6 grid steps
assert N_OUT % TN == 0


def _generator_kernel(z_ref, w1_ref, b1_ref, w2_ref, b2_ref, w3_ref, b3_ref,
                      w4_ref, b4_ref, out_ref):
    # Tiny trunk (recomputed per grid step, f32, hidden under the w4 DMA).
    h = jnp.maximum(
        jnp.dot(z_ref[...], w1_ref[...], preferred_element_type=jnp.float32)
        + b1_ref[...], 0.0)
    h = jnp.maximum(
        jnp.dot(h, w2_ref[...], preferred_element_type=jnp.float32)
        + b2_ref[...], 0.0)
    h3 = jnp.maximum(
        jnp.dot(h, w3_ref[...], preferred_element_type=jnp.float32)
        + b3_ref[...], 0.0)

    # Dominant layer: (B, 512) bf16 @ (512, TN) bf16 -> f32 accumulate on MXU.
    logits = jnp.dot(h3.astype(jnp.bfloat16), w4_ref[...],
                     preferred_element_type=jnp.float32)
    out_ref[...] = jnp.tanh(logits + b4_ref[...])


@jax.jit
def generator_forward(z, params):
    (w1, b1, w2, b2, w3, b3, w4_bf16, b4) = params
    B = z.shape[0]
    n_steps = N_OUT // TN

    cost = pl.CostEstimate(
        flops=(2 * B * H3 * N_OUT                                   # big matmul
               + 2 * B * (LATENT_DIM * H1 + H1 * H2 + H2 * H3) * n_steps),
        transcendentals=B * N_OUT,
        bytes_accessed=(H3 * N_OUT * 2                              # w4 (bf16)
                        + N_OUT * 4                                 # b4 (f32)
                        + (LATENT_DIM * H1 + H1 * H2 + H2 * H3) * 4  # trunk w
                        + (H1 + H2 + H3) * 4                        # trunk b
                        + B * LATENT_DIM * 4                        # z
                        + B * N_OUT * 4),                           # output
    )

    const = lambda j: (0, 0)   # resident operands (fetched once)

    flat = pl.pallas_call(
        _generator_kernel,
        out_shape=jax.ShapeDtypeStruct((B, N_OUT), jnp.float32),
        grid_spec=pltpu.PrefetchScalarGridSpec(
            num_scalar_prefetch=0,
            grid=(n_steps,),
            in_specs=[
                pl.BlockSpec((B, LATENT_DIM), const),    # z        (resident)
                pl.BlockSpec((LATENT_DIM, H1), const),   # w1       (resident)
                pl.BlockSpec((1, H1), const),            # b1       (resident)
                pl.BlockSpec((H1, H2), const),           # w2       (resident)
                pl.BlockSpec((1, H2), const),            # b2       (resident)
                pl.BlockSpec((H2, H3), const),           # w3       (resident)
                pl.BlockSpec((1, H3), const),            # b3       (resident)
                pl.BlockSpec((H3, TN), lambda j: (0, j)),  # w4 column tile
                pl.BlockSpec((1, TN), lambda j: (0, j)),   # b4 column tile
            ],
            out_specs=pl.BlockSpec((B, TN), lambda j: (0, j)),
        ),
        compiler_params=pltpu.CompilerParams(
            dimension_semantics=("parallel",)),  # carry-free -> megacore shard
        cost_estimate=cost,
    )(z, w1, b1, w2, b2, w3, b3, w4_bf16, b4)

    return flat.reshape(B, IMG_C, IMG_H, IMG_W)


def init_params(key):
    """Deterministic init mimicking nn.Linear default: U(-1/sqrt(fan_in), +)."""
    keys = jax.random.split(key, 8)

    def linear(kw, kb, fan_in, fan_out):
        bound = 1.0 / jnp.sqrt(fan_in)
        w = jax.random.uniform(kw, (fan_in, fan_out), jnp.float32, -bound, bound)
        b = jax.random.uniform(kb, (1, fan_out), jnp.float32, -bound, bound)
        return w, b

    w1, b1 = linear(keys[0], keys[1], LATENT_DIM, H1)
    w2, b2 = linear(keys[2], keys[3], H1, H2)
    w3, b3 = linear(keys[4], keys[5], H2, H3)
    w4, b4 = linear(keys[6], keys[7], H3, N_OUT)
    return (w1, b1, w2, b2, w3, b3, w4, b4)


def prepare_params(params):
    """One-time cast of the big output-layer weight to bf16 (halves HBM traffic)."""
    (w1, b1, w2, b2, w3, b3, w4, b4) = params
    return (w1, b1, w2, b2, w3, b3, w4.astype(jnp.bfloat16), b4)


def reference_forward(z, params):
    (w1, b1, w2, b2, w3, b3, w4, b4) = params
    h = jnp.maximum(z @ w1 + b1, 0.0)
    h = jnp.maximum(h @ w2 + b2, 0.0)
    h = jnp.maximum(h @ w3 + b3, 0.0)
    out = jnp.tanh(h @ w4 + b4)
    return out.reshape(z.shape[0], IMG_C, IMG_H, IMG_W)


if __name__ == "__main__":
    key = jax.random.PRNGKey(0)
    k_params, k_z = jax.random.split(key)
    params_f32 = init_params(k_params)
    params = prepare_params(params_f32)

    B = 2
    z = jax.random.normal(k_z, (B, LATENT_DIM), jnp.float32)

    img = generator_forward(z, params)
    jax.block_until_ready(img)

    ref = reference_forward(z, params_f32)
    assert img.shape == (B, IMG_C, IMG_H, IMG_W), img.shape
    # bf16 output-layer weights/activations -> relaxed tolerance vs f32 reference.
    assert jnp.allclose(img, ref, atol=2e-2, rtol=0.0), \
        f"mismatch vs JAX reference, max err {jnp.max(jnp.abs(img - ref))}"

    print("KERNEL_OK")
</pallas_src>

<mosaic_0001>
module attributes {stable_mosaic.version = 11 : i64} {
  func.func @_generator_kernel(%arg0: i32, %arg1: memref<2x32xf32, #tpu.memory_space<vmem>>, %arg2: memref<32x128xf32, #tpu.memory_space<vmem>>, %arg3: memref<1x128xf32, #tpu.memory_space<vmem>>, %arg4: memref<128x256xf32, #tpu.memory_space<vmem>>, %arg5: memref<1x256xf32, #tpu.memory_space<vmem>>, %arg6: memref<256x512xf32, #tpu.memory_space<vmem>>, %arg7: memref<1x512xf32, #tpu.memory_space<vmem>>, %arg8: memref<512x2048xbf16, #tpu.memory_space<vmem>>, %arg9: memref<1x2048xf32, #tpu.memory_space<vmem>>, %arg10: memref<2x2048xf32, #tpu.memory_space<vmem>>) attributes {dimension_semantics = [#tpu.dimension_semantics<parallel>], iteration_bounds = array<i64: 6>, scalar_prefetch = 0 : i64, scratch_operands = 0 : i64, tpu.core_type = #tpu.core_type<tc>, window_params = [{pipeline_mode = #tpu.pipeline_mode<synchronous>, transform_indices = @transform_0, window_bounds = array<i64: 2, 32>}, {pipeline_mode = #tpu.pipeline_mode<synchronous>, transform_indices = @transform_1, window_bounds = array<i64: 32, 128>}, {pipeline_mode = #tpu.pipeline_mode<synchronous>, transform_indices = @transform_2, window_bounds = array<i64: 1, 128>}, {pipeline_mode = #tpu.pipeline_mode<synchronous>, transform_indices = @transform_3, window_bounds = array<i64: 128, 256>}, {pipeline_mode = #tpu.pipeline_mode<synchronous>, transform_indices = @transform_4, window_bounds = array<i64: 1, 256>}, {pipeline_mode = #tpu.pipeline_mode<synchronous>, transform_indices = @transform_5, window_bounds = array<i64: 256, 512>}, {pipeline_mode = #tpu.pipeline_mode<synchronous>, transform_indices = @transform_6, window_bounds = array<i64: 1, 512>}, {transform_indices = @transform_7, window_bounds = array<i64: 512, 2048>}, {transform_indices = @transform_8, window_bounds = array<i64: 1, 2048>}, {transform_indices = @transform_9, window_bounds = array<i64: 2, 2048>}]} {
    %c0 = arith.constant 0 : index
    %c0_0 = arith.constant 0 : index
    %0 = vector.load %arg1[%c0, %c0_0] : memref<2x32xf32, #tpu.memory_space<vmem>>, vector<2x32xf32>
    %c0_1 = arith.constant 0 : index
    %c0_2 = arith.constant 0 : index
    %1 = vector.load %arg2[%c0_1, %c0_2] : memref<32x128xf32, #tpu.memory_space<vmem>>, vector<32x128xf32>
    %cst = arith.constant dense<0.000000e+00> : vector<2x128xf32>
    %2 = tpu.matmul %0, %1, %cst {dimension_numbers = #tpu.dot_dimension_numbers<[1], [0], [0], [1], [0, 0, 1, 1], [], []>} : vector<2x32xf32>, vector<32x128xf32>, vector<2x128xf32> -> vector<2x128xf32>
    %c0_3 = arith.constant 0 : index
    %c0_4 = arith.constant 0 : index
    %3 = vector.load %arg3[%c0_3, %c0_4] : memref<1x128xf32, #tpu.memory_space<vmem>>, vector<1x128xf32>
    %4 = vector.broadcast %3 : vector<1x128xf32> to vector<2x128xf32>
    %5 = arith.addf %2, %4 : vector<2x128xf32>
    %cst_5 = arith.constant 0.000000e+00 : f32
    %6 = vector.broadcast %cst_5 : f32 to vector<2x128xf32>
    %7 = arith.maximumf %5, %6 : vector<2x128xf32>
    %c0_6 = arith.constant 0 : index
    %c0_7 = arith.constant 0 : index
    %8 = vector.load %arg4[%c0_6, %c0_7] : memref<128x256xf32, #tpu.memory_space<vmem>>, vector<128x256xf32>
    %cst_8 = arith.constant dense<0.000000e+00> : vector<2x256xf32>
    %9 = tpu.matmul %7, %8, %cst_8 {dimension_numbers = #tpu.dot_dimension_numbers<[1], [0], [0], [1], [0, 0, 1, 1], [], []>} : vector<2x128xf32>, vector<128x256xf32>, vector<2x256xf32> -> vector<2x256xf32>
    %c0_9 = arith.constant 0 : index
    %c0_10 = arith.constant 0 : index
    %10 = vector.load %arg5[%c0_9, %c0_10] : memref<1x256xf32, #tpu.memory_space<vmem>>, vector<1x256xf32>
    %11 = vector.broadcast %10 : vector<1x256xf32> to vector<2x256xf32>
    %12 = arith.addf %9, %11 : vector<2x256xf32>
    %cst_11 = arith.constant 0.000000e+00 : f32
    %13 = vector.broadcast %cst_11 : f32 to vector<2x256xf32>
    %14 = arith.maximumf %12, %13 : vector<2x256xf32>
    %c0_12 = arith.constant 0 : index
    %c0_13 = arith.constant 0 : index
    %15 = vector.load %arg6[%c0_12, %c0_13] : memref<256x512xf32, #tpu.memory_space<vmem>>, vector<256x512xf32>
    %cst_14 = arith.constant dense<0.000000e+00> : vector<2x512xf32>
    %16 = tpu.matmul %14, %15, %cst_14 {dimension_numbers = #tpu.dot_dimension_numbers<[1], [0], [0], [1], [0, 0, 1, 1], [], []>} : vector<2x256xf32>, vector<256x512xf32>, vector<2x512xf32> -> vector<2x512xf32>
    %c0_15 = arith.constant 0 : index
    %c0_16 = arith.constant 0 : index
    %17 = vector.load %arg7[%c0_15, %c0_16] : memref<1x512xf32, #tpu.memory_space<vmem>>, vector<1x512xf32>
    %18 = vector.broadcast %17 : vector<1x512xf32> to vector<2x512xf32>
    %19 = arith.addf %16, %18 : vector<2x512xf32>
    %cst_17 = arith.constant 0.000000e+00 : f32
    %20 = vector.broadcast %cst_17 : f32 to vector<2x512xf32>
    %21 = arith.maximumf %19, %20 : vector<2x512xf32>
    %22 = arith.truncf %21 : vector<2x512xf32> to vector<2x512xbf16>
    %c0_18 = arith.constant 0 : index
    %c0_19 = arith.constant 0 : index
    %23 = vector.load %arg8[%c0_18, %c0_19] : memref<512x2048xbf16, #tpu.memory_space<vmem>>, vector<512x2048xbf16>
    %cst_20 = arith.constant dense<0.000000e+00> : vector<2x2048xf32>
    %24 = tpu.matmul %22, %23, %cst_20 {dimension_numbers = #tpu.dot_dimension_numbers<[1], [0], [0], [1], [0, 0, 1, 1], [], []>} : vector<2x512xbf16>, vector<512x2048xbf16>, vector<2x2048xf32> -> vector<2x2048xf32>
    %c0_21 = arith.constant 0 : index
    %c0_22 = arith.constant 0 : index
    %25 = vector.load %arg9[%c0_21, %c0_22] : memref<1x2048xf32, #tpu.memory_space<vmem>>, vector<1x2048xf32>
    %26 = vector.broadcast %25 : vector<1x2048xf32> to vector<2x2048xf32>
    %27 = arith.addf %24, %26 : vector<2x2048xf32>
    %28 = math.tanh %27 : vector<2x2048xf32>
    %c0_23 = arith.constant 0 : index
    %c0_24 = arith.constant 0 : index
    %29 = vector.load %arg10[%c0_23, %c0_24] : memref<2x2048xf32, #tpu.memory_space<vmem>>, vector<2x2048xf32>
    tpu.vector_store %arg10[%c0_23, %c0_24], %28 {strides = array<i32>} : memref<2x2048xf32, #tpu.memory_space<vmem>>, vector<2x2048xf32>,
    return
  }
  func.func @transform_0(%arg0: i32) -> (i32, i32) {
    %c0_i32 = arith.constant 0 : i32
    %c0_i32_0 = arith.constant 0 : i32
    %c0_i32_1 = arith.constant 0 : i32
    return %c0_i32, %c0_i32_0 : i32, i32
  }
  func.func @transform_1(%arg0: i32) -> (i32, i32) {
    %c0_i32 = arith.constant 0 : i32
    %c0_i32_0 = arith.constant 0 : i32
    %c0_i32_1 = arith.constant 0 : i32
    return %c0_i32, %c0_i32_0 : i32, i32
  }
  func.func @transform_2(%arg0: i32) -> (i32, i32) {
    %c0_i32 = arith.constant 0 : i32
    %c0_i32_0 = arith.constant 0 : i32
    %c0_i32_1 = arith.constant 0 : i32
    return %c0_i32, %c0_i32_0 : i32, i32
  }
  func.func @transform_3(%arg0: i32) -> (i32, i32) {
    %c0_i32 = arith.constant 0 : i32
    %c0_i32_0 = arith.constant 0 : i32
    %c0_i32_1 = arith.constant 0 : i32
    return %c0_i32, %c0_i32_0 : i32, i32
  }
  func.func @transform_4(%arg0: i32) -> (i32, i32) {
    %c0_i32 = arith.constant 0 : i32
    %c0_i32_0 = arith.constant 0 : i32
    %c0_i32_1 = arith.constant 0 : i32
    return %c0_i32, %c0_i32_0 : i32, i32
  }
  func.func @transform_5(%arg0: i32) -> (i32, i32) {
    %c0_i32 = arith.constant 0 : i32
    %c0_i32_0 = arith.constant 0 : i32
    %c0_i32_1 = arith.constant 0 : i32
    return %c0_i32, %c0_i32_0 : i32, i32
  }
  func.func @transform_6(%arg0: i32) -> (i32, i32) {
    %c0_i32 = arith.constant 0 : i32
    %c0_i32_0 = arith.constant 0 : i32
    %c0_i32_1 = arith.constant 0 : i32
    return %c0_i32, %c0_i32_0 : i32, i32
  }
  func.func @transform_7(%arg0: i32) -> (i32, i32) {
    %c0_i32 = arith.constant 0 : i32
    %c0_i32_0 = arith.constant 0 : i32
    return %c0_i32, %arg0 : i32, i32
  }
  func.func @transform_8(%arg0: i32) -> (i32, i32) {
    %c0_i32 = arith.constant 0 : i32
    %c0_i32_0 = arith.constant 0 : i32
    return %c0_i32, %arg0 : i32, i32
  }
  func.func @transform_9(%arg0: i32) -> (i32, i32) {
    %c0_i32 = arith.constant 0 : i32
    %c0_i32_0 = arith.constant 0 : i32
    return %c0_i32, %arg0 : i32, i32
  }
}

</mosaic_0001>

<llo_original>
// kernel: generator_forward.1
$region0: #{generator_forward.1}
  #allocation0 [shape = 'u32[]', space=smem, size = 0x4, offset = 0x4, fixed_abs, tag = 'smem constant byte address 0x4 - core index']
  #allocation1 [shape = 'u32[72,128]{1,0:T(1,128)}', space=vmem, size = 0x9000, scoped, tag = 'internal scratch']
  %s0 = inlined_call_operand.hbm [shape: f32[2,32], index: 0, kind: input, shape index: {}]
  %s1 = inlined_call_operand.hbm [shape: f32[32,128], index: 1, kind: input, shape index: {}]
  %s2 = inlined_call_operand.hbm [shape: f32[1,128], index: 2, kind: input, shape index: {}]
  %s3 = inlined_call_operand.hbm [shape: f32[128,256], index: 3, kind: input, shape index: {}]
  %s4 = inlined_call_operand.hbm [shape: f32[1,256], index: 4, kind: input, shape index: {}]
  %s5 = inlined_call_operand.hbm [shape: f32[256,512], index: 5, kind: input, shape index: {}]
  %s6 = inlined_call_operand.hbm [shape: f32[1,512], index: 6, kind: input, shape index: {}]
  %s7 = inlined_call_operand.hbm [shape: bf16[512,12288], index: 7, kind: input, shape index: {}]
  %s8 = inlined_call_operand.hbm [shape: f32[1,12288], index: 8, kind: input, shape index: {}]
  %s9 = inlined_call_operand.vmem [shape: f32[2,12288], index: 9, kind: output, shape index: {}]
  %s10 = sld [smem:[#allocation0]]
  $region105: #{generator_forward.1} parent=0
    _
  %s12 = ssub.s32 1, %s10
  %s13 = scalar_select 0, %s12, %s10
  $region1: #{generator_forward.1} parent=0
    #allocation2 [shape = 'u8[1024]{0}', space=vmem, size = 0x400, scoped, tag = 'input window, operand 0, single buffered']
    #allocation3 [shape = 's32[2]{0}', space=sflag, size = 0x8, scoped, tag = 'scoped memory for generator_forward.1']
    #allocation4 [shape = 'u8[16384]{0}', space=vmem, size = 0x4000, scoped, tag = 'input window, operand 1, single buffered']
    #allocation5 [shape = 's32[1]{0}', space=sflag, size = 0x4, scoped, tag = 'scoped memory for generator_forward.1']
    #allocation6 [shape = 'u8[512]{0}', space=vmem, size = 0x400, scoped, tag = 'input window, operand 2, single buffered']
    #allocation7 [shape = 'u8[131072]{0}', space=vmem, size = 0x20000, scoped, tag = 'input window, operand 3, single buffered']
    #allocation8 [shape = 's32[1]{0}', space=sflag, size = 0x4, scoped, tag = 'scoped memory for generator_forward.1']
    #allocation9 [shape = 'u8[1024]{0}', space=vmem, size = 0x400, scoped, tag = 'input window, operand 4, single buffered']
    #allocation10 [shape = 'u8[524288]{0}', space=vmem, size = 0x80000, scoped, tag = 'input window, operand 5, single buffered']
    #allocation11 [shape = 's32[1]{0}', space=sflag, size = 0x4, scoped, tag = 'scoped memory for generator_forward.1']
    #allocation12 [shape = 'u8[2048]{0}', space=vmem, size = 0x800, scoped, tag = 'input window, operand 6, single buffered']
    #allocation13 [shape = 'u8[4194304]{0}', space=vmem, size = 0x400000, scoped, tag = 'input window, operand 7']
    #allocation14 [shape = 's32[2]{0}', space=sflag, size = 0x8, scoped, tag = 'scoped memory for generator_forward.1']
    #allocation15 [shape = 'u8[16384]{0}', space=vmem, size = 0x4000, scoped, tag = 'input window, operand 8']
    %14 = vsyncpa [#allocation3], 0
    %15 = vsyncpa [#allocation5], 0
    %16 = vsyncpa [#allocation8], 0
    %17 = vsyncpa [#allocation11], 0
    %18 = vsyncpa [#allocation14], 0
    %s19 = scalar_lea.sflag [#allocation14], 1
    %20 = vsyncpa %s19, 0
    loop: start=0, step=1, limit=8
    $region2: #{generator_forward.1} parent=1 // loop_pre_header
      _
    $region3: #{generator_forward.1} parent=1 // loop_header
      %s22 = sphi 0, %s26
      %p23 = scmp.ge.s32.totalorder %s22, 8
      %s30 = sphi 0, %s30
      %s32 = sphi 0, %s30
      %s33 = sphi 0, %s32
      %s47 = sphi 0, %s33
      %s51 = sphi 0, %s51
      %s53 = sphi 0, %s51
      %s54 = sphi 0, %s53
      %s68 = sphi 0, %s54
      %s72 = sphi 0, %s72
      %s74 = sphi 0, %s72
      %s75 = sphi 0, %s74
      %s89 = sphi 0, %s75
      %s93 = sphi 0, %s93
      %s95 = sphi 0, %s93
      %s96 = sphi 0, %s95
      %s110 = sphi 0, %s96
      %s114 = sphi 0, %s114
      %s116 = sphi 0, %s114
      %s117 = sphi 0, %s116
      %s131 = sphi 0, %s117
      %s135 = sphi 0, %s135
      %s137 = sphi 0, %s135
      %s138 = sphi 0, %s137
      %s152 = sphi 0, %s138
      %s156 = sphi 0, %s156
      %s158 = sphi 0, %s156
      %s159 = sphi 0, %s158
      %s173 = sphi 0, %s159
      %s179 = sphi 0, %s181
      %s182 = sphi 0, %s179
      %s183 = sphi 0, %s182
      %s199 = sphi 0, %s183
      %s205 = sphi 0, %s207
      %s208 = sphi 0, %s205
      %s209 = sphi 0, %s208
      %s225 = sphi 0, %s209
      %s231 = sphi 0, %s233
      %s234 = sphi 0, %s231
      %s235 = sphi 0, %s234
      %s251 = sphi 0, %s235
    $region4: #{generator_forward.1} parent=1 // loop_header_branch
      %25 = sbr.rel (%p23) target = $region8
    $region5: #{generator_forward.1} parent=1 // loop_body
      %s27 = ssub.s32 %s22, 1
      %s28 = ssub.s32 %s22, 2
      %s29 = sadd.s32 %s22, 1
      %s31 = sadd.s32 %s30, 1
      %p34 = scmp.eq.s32.totalorder %s22, 5
      %p35 = scmp.ne.s32.totalorder %s30, %s32
      %p36 = scmp.eq.s32.totalorder %s22, 0
      %p37 = por %p35, %p36
      %p38 = scmp.ne.s32.totalorder %s30, %s32
      %p39 = scmp.eq.s32.totalorder %s27, 5
      %p40 = por %p38, %p39
      %p41 = scmp.ne.s32.totalorder %s32, %s33
      %p42 = scmp.eq.s32.totalorder %s27, 0
      %p43 = por %p41, %p42
      %p44 = scmp.ne.s32.totalorder %s32, %s33
      %p45 = scmp.eq.s32.totalorder %s28, 5
      %p46 = por %p44, %p45
      %p48 = scmp.ne.s32.totalorder %s33, %s47
      %p49 = scmp.eq.s32.totalorder %s28, 0
      %p50 = por %p48, %p49
      %s52 = sadd.s32 %s51, 1
      %p55 = scmp.eq.s32.totalorder %s22, 5
      %p56 = scmp.ne.s32.totalorder %s51, %s53
      %p57 = scmp.eq.s32.totalorder %s22, 0
      %p58 = por %p56, %p57
      %p59 = scmp.ne.s32.totalorder %s51, %s53
      %p60 = scmp.eq.s32.totalorder %s27, 5
      %p61 = por %p59, %p60
      %p62 = scmp.ne.s32.totalorder %s53, %s54
      %p63 = scmp.eq.s32.totalorder %s27, 0
      %p64 = por %p62, %p63
      %p65 = scmp.ne.s32.totalorder %s53, %s54
      %p66 = scmp.eq.s32.totalorder %s28, 5
      %p67 = por %p65, %p66
      %p69 = scmp.ne.s32.totalorder %s54, %s68
      %p70 = scmp.eq.s32.totalorder %s28, 0
      %p71 = por %p69, %p70
      %s73 = sadd.s32 %s72, 1
      %p76 = scmp.eq.s32.totalorder %s22, 5
      %p77 = scmp.ne.s32.totalorder %s72, %s74
      %p78 = scmp.eq.s32.totalorder %s22, 0
      %p79 = por %p77, %p78
      %p80 = scmp.ne.s32.totalorder %s72, %s74
      %p81 = scmp.eq.s32.totalorder %s27, 5
      %p82 = por %p80, %p81
      %p83 = scmp.ne.s32.totalorder %s74, %s75
      %p84 = scmp.eq.s32.totalorder %s27, 0
      %p85 = por %p83, %p84
      %p86 = scmp.ne.s32.totalorder %s74, %s75
      %p87 = scmp.eq.s32.totalorder %s28, 5
      %p88 = por %p86, %p87
      %p90 = scmp.ne.s32.totalorder %s75, %s89
      %p91 = scmp.eq.s32.totalorder %s28, 0
      %p92 = por %p90, %p91
      %s94 = sadd.s32 %s93, 1
      %p97 = scmp.eq.s32.totalorder %s22, 5
      %p98 = scmp.ne.s32.totalorder %s93, %s95
      %p99 = scmp.eq.s32.totalorder %s22, 0
      %p100 = por %p98, %p99
      %p101 = scmp.ne.s32.totalorder %s93, %s95
      %p102 = scmp.eq.s32.totalorder %s27, 5
      %p103 = por %p101, %p102
      %p104 = scmp.ne.s32.totalorder %s95, %s96
      %p105 = scmp.eq.s32.totalorder %s27, 0
      %p106 = por %p104, %p105
      %p107 = scmp.ne.s32.totalorder %s95, %s96
      %p108 = scmp.eq.s32.totalorder %s28, 5
      %p109 = por %p107, %p108
      %p111 = scmp.ne.s32.totalorder %s96, %s110
      %p112 = scmp.eq.s32.totalorder %s28, 0
      %p113 = por %p111, %p112
      %s115 = sadd.s32 %s114, 1
      %p118 = scmp.eq.s32.totalorder %s22, 5
      %p119 = scmp.ne.s32.totalorder %s114, %s116
      %p120 = scmp.eq.s32.totalorder %s22, 0
      %p121 = por %p119, %p120
      %p122 = scmp.ne.s32.totalorder %s114, %s116
      %p123 = scmp.eq.s32.totalorder %s27, 5
      %p124 = por %p122, %p123
      %p125 = scmp.ne.s32.totalorder %s116, %s117
      %p126 = scmp.eq.s32.totalorder %s27, 0
      %p127 = por %p125, %p126
      %p128 = scmp.ne.s32.totalorder %s116, %s117
      %p129 = scmp.eq.s32.totalorder %s28, 5
      %p130 = por %p128, %p129
      %p132 = scmp.ne.s32.totalorder %s117, %s131
      %p133 = scmp.eq.s32.totalorder %s28, 0
      %p134 = por %p132, %p133
      %s136 = sadd.s32 %s135, 1
      %p139 = scmp.eq.s32.totalorder %s22, 5
      %p140 = scmp.ne.s32.totalorder %s135, %s137
      %p141 = scmp.eq.s32.totalorder %s22, 0
      %p142 = por %p140, %p141
      %p143 = scmp.ne.s32.totalorder %s135, %s137
      %p144 = scmp.eq.s32.totalorder %s27, 5
      %p145 = por %p143, %p144
      %p146 = scmp.ne.s32.totalorder %s137, %s138
      %p147 = scmp.eq.s32.totalorder %s27, 0
      %p148 = por %p146, %p147
      %p149 = scmp.ne.s32.totalorder %s137, %s138
      %p150 = scmp.eq.s32.totalorder %s28, 5
      %p151 = por %p149, %p150
      %p153 = scmp.ne.s32.totalorder %s138, %s152
      %p154 = scmp.eq.s32.totalorder %s28, 0
      %p155 = por %p153, %p154
      %s157 = sadd.s32 %s156, 1
      %p160 = scmp.eq.s32.totalorder %s22, 5
      %p161 = scmp.ne.s32.totalorder %s156, %s158
      %p162 = scmp.eq.s32.totalorder %s22, 0
      %p163 = por %p161, %p162
      %p164 = scmp.ne.s32.totalorder %s156, %s158
      %p165 = scmp.eq.s32.totalorder %s27, 5
      %p166 = por %p164, %p165
      %p167 = scmp.ne.s32.totalorder %s158, %s159
      %p168 = scmp.eq.s32.totalorder %s27, 0
      %p169 = por %p167, %p168
      %p170 = scmp.ne.s32.totalorder %s158, %s159
      %p171 = scmp.eq.s32.totalorder %s28, 5
      %p172 = por %p170, %p171
      %p174 = scmp.ne.s32.totalorder %s159, %s173
      %p175 = scmp.eq.s32.totalorder %s28, 0
      %p176 = por %p174, %p175
      %s177 = ssub.s32 %s22, %s29
      %p178 = scmp.eq.s32.totalorder %s177, 0
      %s180 = sadd.s32 %s179, 1
      %s181 = scalar_select %p178, %s179, %s180
      %p184 = pneg %p178
      %p185 = scmp.eq.s32.totalorder %s22, 5
      %p186 = por %p184, %p185
      %p187 = scmp.ne.s32.totalorder %s179, %s182
      %p188 = scmp.eq.s32.totalorder %s22, 0
      %p189 = por %p187, %p188
      %p190 = scmp.ne.s32.totalorder %s179, %s182
      %p191 = scmp.eq.s32.totalorder %s27, 5
      %p192 = por %p190, %p191
      %p193 = scmp.ne.s32.totalorder %s182, %s183
      %p194 = scmp.eq.s32.totalorder %s27, 0
      %p195 = por %p193, %p194
      %p196 = scmp.ne.s32.totalorder %s182, %s183
      %p197 = scmp.eq.s32.totalorder %s28, 5
      %p198 = por %p196, %p197
      %p200 = scmp.ne.s32.totalorder %s183, %s199
      %p201 = scmp.eq.s32.totalorder %s28, 0
      %p202 = por %p200, %p201
      %s203 = ssub.s32 %s22, %s29
      %p204 = scmp.eq.s32.totalorder %s203, 0
      %s206 = sadd.s32 %s205, 1
      %s207 = scalar_select %p204, %s205, %s206
      %p210 = pneg %p204
      %p211 = scmp.eq.s32.totalorder %s22, 5
      %p212 = por %p210, %p211
      %p213 = scmp.ne.s32.totalorder %s205, %s208
      %p214 = scmp.eq.s32.totalorder %s22, 0
      %p215 = por %p213, %p214
      %p216 = scmp.ne.s32.totalorder %s205, %s208
      %p217 = scmp.eq.s32.totalorder %s27, 5
      %p218 = por %p216, %p217
      %p219 = scmp.ne.s32.totalorder %s208, %s209
      %p220 = scmp.eq.s32.totalorder %s27, 0
      %p221 = por %p219, %p220
      %p222 = scmp.ne.s32.totalorder %s208, %s209
      %p223 = scmp.eq.s32.totalorder %s28, 5
      %p224 = por %p222, %p223
      %p226 = scmp.ne.s32.totalorder %s209, %s225
      %p227 = scmp.eq.s32.totalorder %s28, 0
      %p228 = por %p226, %p227
      %s229 = ssub.s32 %s22, %s29
      %p230 = scmp.eq.s32.totalorder %s229, 0
      %s232 = sadd.s32 %s231, 1
      %s233 = scalar_select %p230, %s231, %s232
      %p236 = pneg %p230
      %p237 = scmp.eq.s32.totalorder %s22, 5
      %p238 = por %p236, %p237
      %p239 = scmp.ne.s32.totalorder %s231, %s234
      %p240 = scmp.eq.s32.totalorder %s22, 0
      %p241 = por %p239, %p240
      %p242 = scmp.ne.s32.totalorder %s231, %s234
      %p243 = scmp.eq.s32.totalorder %s27, 5
      %p244 = por %p242, %p243
      %p245 = scmp.ne.s32.totalorder %s234, %s235
      %p246 = scmp.eq.s32.totalorder %s27, 0
      %p247 = por %p245, %p246
      %p248 = scmp.ne.s32.totalorder %s234, %s235
      %p249 = scmp.eq.s32.totalorder %s28, 5
      %p250 = por %p248, %p249
      %p252 = scmp.ne.s32.totalorder %s235, %s251
      %p253 = scmp.eq.s32.totalorder %s28, 0
      %p254 = por %p252, %p253
      %p255 = scmp.le.s32.totalorder 1, %s22
      %p256 = scmp.lt.s32.totalorder %s22, 7
      %p257 = pnand %p255, %p256
      %p258 = pneg %p257
      // Predicated region
      $region9: #{generator_forward.1} parent=5 // pred_check
        _
      $region10: #{generator_forward.1} parent=5 // pred_check_branch
        %260 = sbr.rel (%p257) target = $region12
      $region11: #{generator_forward.1} parent=5 // pred_region
        %s261 = ssub.s32 %s22, 1
        // Predicated region
        $region13: #{generator_forward.1} parent=11 // pred_check
          %p262 = pneg %p43
        $region14: #{generator_forward.1} parent=11 // pred_check_branch
          %264 = sbr.rel (%p262) target = $region16
        $region15: #{generator_forward.1} parent=11 // pred_region
          %266 = vsyncadd [#allocation3], 0
          %s268 = sshll.u32 %s0, 4
          %s269 = int_to_ptr.hbm [resolvable:$true] %s268
          %s270 = sshll.u32 [#allocation2], 4
          %s271 = int_to_ptr.vmem [resolvable:$true] %s270
          %273 = dma.hbm_to_vmem [thread:$0]  %s269, 32, %s271, [#allocation3]
        $region16: #{generator_forward.1} parent=11 // pred_fallthru
          _
        // Predicated region
        $region17: #{generator_forward.1} parent=11 // pred_check
          %p274 = pneg %p64
        $region18: #{generator_forward.1} parent=11 // pred_check_branch
          %276 = sbr.rel (%p274) target = $region20
        $region19: #{generator_forward.1} parent=11 // pred_region
          %278 = vsyncadd [#allocation5], 0
          %s279 = sshll.u32 %s1, 4
          %s280 = int_to_ptr.hbm [resolvable:$true] %s279
          %s281 = sshll.u32 [#allocation4], 4
          %s282 = int_to_ptr.vmem [resolvable:$true] %s281
          %287 = dma.hbm_to_vmem [thread:$0]  %s280, 512, %s282, [#allocation5], 128, 128, 8
        $region20: #{generator_forward.1} parent=11 // pred_fallthru
          _
        // Predicated region
        $region21: #{generator_forward.1} parent=11 // pred_check
          %p288 = pneg %p85
        $region22: #{generator_forward.1} parent=11 // pred_check_branch
          %290 = sbr.rel (%p288) target = $region24
        $region23: #{generator_forward.1} parent=11 // pred_region
          %292 = vsyncadd [#allocation5], 0
          %s294 = sshll.u32 %s2, 4
          %s295 = int_to_ptr.hbm [resolvable:$true] %s294
          %s296 = sshll.u32 [#allocation6], 4
          %s297 = int_to_ptr.vmem [resolvable:$true] %s296
          %299 = dma.hbm_to_vmem [thread:$0]  %s295, 16, %s297, [#allocation5]
        $region24: #{generator_forward.1} parent=11 // pred_fallthru
          _
        // Predicated region
        $region25: #{generator_forward.1} parent=11 // pred_check
          %p300 = pneg %p106
        $region26: #{generator_forward.1} parent=11 // pred_check_branch
          %302 = sbr.rel (%p300) target = $region28
        $region27: #{generator_forward.1} parent=11 // pred_region
          %304 = vsyncadd [#allocation8], 0
          %s305 = sshll.u32 %s3, 4
          %s306 = int_to_ptr.hbm [resolvable:$true] %s305
          %s307 = sshll.u32 [#allocation7], 4
          %s308 = int_to_ptr.vmem [resolvable:$true] %s307
          %313 = dma.hbm_to_vmem [thread:$0]  %s306, 4096, %s308, [#allocation8], 256, 256, 16
        $region28: #{generator_forward.1} parent=11 // pred_fallthru
          _
        // Predicated region
        $region29: #{generator_forward.1} parent=11 // pred_check
          %p314 = pneg %p127
        $region30: #{generator_forward.1} parent=11 // pred_check_branch
          %316 = sbr.rel (%p314) target = $region32
        $region31: #{generator_forward.1} parent=11 // pred_region
          %318 = vsyncadd [#allocation8], 0
          %s320 = sshll.u32 %s4, 4
          %s321 = int_to_ptr.hbm [resolvable:$true] %s320
          %s322 = sshll.u32 [#allocation9], 4
          %s323 = int_to_ptr.vmem [resolvable:$true] %s322
          %325 = dma.hbm_to_vmem [thread:$0]  %s321, 32, %s323, [#allocation8]
        $region32: #{generator_forward.1} parent=11 // pred_fallthru
          _
        // Predicated region
        $region33: #{generator_forward.1} parent=11 // pred_check
          %p326 = pneg %p148
        $region34: #{generator_forward.1} parent=11 // pred_check_branch
          %328 = sbr.rel (%p326) target = $region36
        $region35: #{generator_forward.1} parent=11 // pred_region
          %330 = vsyncadd [#allocation11], 0
          %s331 = sshll.u32 %s5, 4
          %s332 = int_to_ptr.hbm [resolvable:$true] %s331
          %s333 = sshll.u32 [#allocation10], 4
          %s334 = int_to_ptr.vmem [resolvable:$true] %s333
          %339 = dma.hbm_to_vmem [thread:$0]  %s332, 16384, %s334, [#allocation11], 512, 512, 32
        $region36: #{generator_forward.1} parent=11 // pred_fallthru
          _
        // Predicated region
        $region37: #{generator_forward.1} parent=11 // pred_check
          %p340 = pneg %p169
        $region38: #{generator_forward.1} parent=11 // pred_check_branch
          %342 = sbr.rel (%p340) target = $region40
        $region39: #{generator_forward.1} parent=11 // pred_region
          %344 = vsyncadd [#allocation11], 0
          %s346 = sshll.u32 %s6, 4
          %s347 = int_to_ptr.hbm [resolvable:$true] %s346
          %s348 = sshll.u32 [#allocation12], 4
          %s349 = int_to_ptr.vmem [resolvable:$true] %s348
          %351 = dma.hbm_to_vmem [thread:$0]  %s347, 64, %s349, [#allocation11]
        $region40: #{generator_forward.1} parent=11 // pred_fallthru
          _
      $region12: #{generator_forward.1} parent=5 // pred_fallthru
        _
      %p352 = scmp.lt.s32.totalorder %s22, 6
      // Predicated region
      $region41: #{generator_forward.1} parent=5 // pred_check
        %p353 = pneg %p352
      $region42: #{generator_forward.1} parent=5 // pred_check_branch
        %355 = sbr.rel (%p353) target = $region44
      $region43: #{generator_forward.1} parent=5 // pred_region
        // Predicated region
        $region45: #{generator_forward.1} parent=43 // pred_check
          %p356 = pneg %p189
        $region46: #{generator_forward.1} parent=43 // pred_check_branch
          %358 = sbr.rel (%p356) target = $region48
        $region47: #{generator_forward.1} parent=43 // pred_region
          %s359 = sand.u32 %s22, 1
          %s360 = scalar_lea.sflag [#allocation14], %s359
          %s361 = sand.u32 %s179, 1
          %s362 = smul.addr %s361, 4096
          %s363 = scalar_lea.vmem [#allocation13], %s362
          %s364 = smul.u32 16, %s22
          %366 = vsyncadd %s360, 0
          %s367 = smul.addr %s364, 4
          %s368 = scalar_lea.hbm %s7, %s367
          %s369 = sshll.u32 %s368, 4
          %s370 = int_to_ptr.hbm [resolvable:$true] %s369
          %s371 = sshll.u32 %s363, 4
          %s372 = int_to_ptr.vmem [resolvable:$true] %s371
          %377 = dma.hbm_to_vmem [thread:$0]  %s370, 65536, %s372, %s360, 6144, 1024, 64
        $region48: #{generator_forward.1} parent=43 // pred_fallthru
          _
        // Predicated region
        $region49: #{generator_forward.1} parent=43 // pred_check
          %p378 = pneg %p215
        $region50: #{generator_forward.1} parent=43 // pred_check_branch
          %380 = sbr.rel (%p378) target = $region52
        $region51: #{generator_forward.1} parent=43 // pred_region
          %s381 = sand.u32 %s22, 1
          %s382 = scalar_lea.sflag [#allocation14], %s381
          %s383 = sand.u32 %s205, 1
          %s384 = smul.addr %s383, 16
          %s385 = scalar_lea.vmem [#allocation15], %s384
          %s386 = smul.u32 16, %s22
          %388 = vsyncadd %s382, 0
          %s389 = scalar_lea.hbm %s8, %s386
          %s391 = sshll.u32 %s389, 4
          %s392 = int_to_ptr.hbm [resolvable:$true] %s391
          %s393 = sshll.u32 %s385, 4
          %s394 = int_to_ptr.vmem [resolvable:$true] %s393
          %396 = dma.hbm_to_vmem [thread:$0]  %s392, 256, %s394, %s382
        $region52: #{generator_forward.1} parent=43 // pred_fallthru
          _
      $region44: #{generator_forward.1} parent=5 // pred_fallthru
        _
      %p397 = scmp.le.s32.totalorder 1, %s22
      %p398 = scmp.lt.s32.totalorder %s22, 7
      %p399 = pnand %p397, %p398
      %p400 = pneg %p399
      // Predicated region
      $region53: #{generator_forward.1} parent=5 // pred_check
        _
      $region54: #{generator_forward.1} parent=5 // pred_check_branch
        %402 = sbr.rel (%p399) target = $region56
      $region55: #{generator_forward.1} parent=5 // pred_region
        %s403 = ssub.s32 %s22, 1
        // Predicated region
        $region57: #{generator_forward.1} parent=55 // pred_check
          %p404 = pneg %p43
        $region58: #{generator_forward.1} parent=55 // pred_check_branch
          %406 = sbr.rel (%p404) target = $region60
        $region59: #{generator_forward.1} parent=55 // pred_region
          %408 = dma.done [#allocation3], 32
        $region60: #{generator_forward.1} parent=55 // pred_fallthru
          _
        // Predicated region
        $region61: #{generator_forward.1} parent=55 // pred_check
          %p409 = pneg %p64
        $region62: #{generator_forward.1} parent=55 // pred_check_branch
          %411 = sbr.rel (%p409) target = $region64
        $region63: #{generator_forward.1} parent=55 // pred_region
          %413 = dma.done [#allocation5], 512
        $region64: #{generator_forward.1} parent=55 // pred_fallthru
          _
        // Predicated region
        $region65: #{generator_forward.1} parent=55 // pred_check
          %p414 = pneg %p85
        $region66: #{generator_forward.1} parent=55 // pred_check_branch
          %416 = sbr.rel (%p414) target = $region68
        $region67: #{generator_forward.1} parent=55 // pred_region
          %418 = dma.done [#allocation5], 16
        $region68: #{generator_forward.1} parent=55 // pred_fallthru
          _
        // Predicated region
        $region69: #{generator_forward.1} parent=55 // pred_check
          %p419 = pneg %p106
        $region70: #{generator_forward.1} parent=55 // pred_check_branch
          %421 = sbr.rel (%p419) target = $region72
        $region71: #{generator_forward.1} parent=55 // pred_region
          %423 = dma.done [#allocation8], 4096
        $region72: #{generator_forward.1} parent=55 // pred_fallthru
          _
        // Predicated region
        $region73: #{generator_forward.1} parent=55 // pred_check
          %p424 = pneg %p127
        $region74: #{generator_forward.1} parent=55 // pred_check_branch
          %426 = sbr.rel (%p424) target = $region76
        $region75: #{generator_forward.1} parent=55 // pred_region
          %428 = dma.done [#allocation8], 32
        $region76: #{generator_forward.1} parent=55 // pred_fallthru
          _
        // Predicated region
        $region77: #{generator_forward.1} parent=55 // pred_check
          %p429 = pneg %p148
        $region78: #{generator_forward.1} parent=55 // pred_check_branch
          %431 = sbr.rel (%p429) target = $region80
        $region79: #{generator_forward.1} parent=55 // pred_region
          %433 = dma.done [#allocation11], 16384
        $region80: #{generator_forward.1} parent=55 // pred_fallthru
          _
        // Predicated region
        $region81: #{generator_forward.1} parent=55 // pred_check
          %p434 = pneg %p169
        $region82: #{generator_forward.1} parent=55 // pred_check_branch
          %436 = sbr.rel (%p434) target = $region84
        $region83: #{generator_forward.1} parent=55 // pred_region
          %438 = dma.done [#allocation11], 64
        $region84: #{generator_forward.1} parent=55 // pred_fallthru
          _
        %s439 = sand.u32 %s27, 1
        %s440 = scalar_lea.sflag [#allocation14], %s439
        %s441 = sand.u32 %s182, 1
        %s442 = smul.addr %s441, 4096
        %s443 = scalar_lea.vmem [#allocation13], %s442
        // Predicated region
        $region85: #{generator_forward.1} parent=55 // pred_check
          %p444 = pneg %p195
        $region86: #{generator_forward.1} parent=55 // pred_check_branch
          %446 = sbr.rel (%p444) target = $region88
        $region87: #{generator_forward.1} parent=55 // pred_region
          %448 = dma.done %s440, 65536
        $region88: #{generator_forward.1} parent=55 // pred_fallthru
          _
        %s449 = sand.u32 %s27, 1
        %s450 = scalar_lea.sflag [#allocation14], %s449
        %s451 = sand.u32 %s208, 1
        %s452 = smul.addr %s451, 16
        %s453 = scalar_lea.vmem [#allocation15], %s452
        // Predicated region
        $region89: #{generator_forward.1} parent=55 // pred_check
          %p454 = pneg %p221
        $region90: #{generator_forward.1} parent=55 // pred_check_branch
          %456 = sbr.rel (%p454) target = $region92
        $region91: #{generator_forward.1} parent=55 // pred_region
          %458 = dma.done %s450, 256
        $region92: #{generator_forward.1} parent=55 // pred_fallthru
          _
        %p459 = pneg %p43
        %p460 = pneg %p40
        %p461 = pneg %p64
        %p462 = pneg %p61
        %p463 = pneg %p85
        %p464 = pneg %p82
        %p465 = pneg %p106
        %p466 = pneg %p103
        %p467 = pneg %p127
        %p468 = pneg %p124
        %p469 = pneg %p148
        %p470 = pneg %p145
        %p471 = pneg %p169
        %p472 = pneg %p166
        %s473 = sand.u32 %s27, 1
        %s474 = scalar_lea.sflag [#allocation14], %s473
        %s475 = sand.u32 %s182, 1
        %s476 = smul.addr %s475, 4096
        %s477 = scalar_lea.vmem [#allocation13], %s476
        %p478 = pneg %p195
        %p479 = pneg %p192
        %s480 = sand.u32 %s27, 1
        %s481 = scalar_lea.sflag [#allocation14], %s480
        %s482 = sand.u32 %s208, 1
        %s483 = smul.addr %s482, 16
        %s484 = scalar_lea.vmem [#allocation15], %s483
        %p485 = pneg %p221
        %p486 = pneg %p218
        %p487 = pneg %p247
        %p488 = pneg %p244
        %s489 = smul.u32 16, %s27
        %p490 = scmp.lt.s32.totalorder %s489, 95
        %s491 = scalar_select %p490, %s489, 95
        %s492 = smul.addr %s491, 2
        %s493 = scalar_lea.vmem %s9, %s492
        %s494 = smul.u32 16, %s27
        %s495 = smul.u32 16, %s27
        %s496 = smul.u32 16, %s27
        %p497 = scmp.lt.s32.totalorder %s496, 95
        %s498 = scalar_select %p497, %s496, 95
        %s499 = smul.addr %s498, 2
        %s500 = scalar_lea.vmem %s9, %s499
        %s501 = smul.u32 16, %s27
        %v502 = vld [vmem:[#allocation2] sm:$0x3]
        %v503 = vld [vmem:[#allocation4] sm:$0xff]
        %v504 = vld [vmem:[#allocation4 + $0x8] sm:$0xff]
        %v505 = vld [vmem:[#allocation4 + $0x10] sm:$0xff]
        %v506 = vld [vmem:[#allocation4 + $0x18] sm:$0xff]
        %v507 = vld [vmem:[#allocation6] sm:$0x1]
        %v509 = vperm.slane %v507, 0
        %vm511 = vcmask 261120
        %v513 = vsel %vm511, %v502, 0
        %515 = vmatpush.msra.mxu0 0.0
        %516 = vmatpush.msra.mxu0 0.0
        %517 = vmatpush.msra.mxu0 0.0
        %518 = vmatpush.msra.mxu0 0.0
        %519 = vmatpush.msra.mxu0 0.0
        %520 = vmatpush.msra.mxu0 0.0
        %521 = vmatpush.msra.mxu0 0.0
        %522 = vmatpush.msra.mxu0 0.0
        %523 = vmatpush.msra.mxu0 0.0
        %524 = vmatpush.msra.mxu0 0.0
        %525 = vmatpush.msra.mxu0 0.0
        %526 = vmatpush.msra.mxu0 0.0
        %527 = vmatpush.msra.mxu0 %v506
        %528 = vmatpush.msra.mxu0 %v505
        %529 = vmatpush.msra.mxu0 %v504
        %530 = vmatpush.msra.mxu0 %v503
        %531 = vmatmul.f32.gmra.mxu0 %v513
        %v532 = vpop.f32.mrf.mxu0
        %v533 = vadd.f32 %v509, %v532
        %534 = vdwg.mxu0
        %v535 = vmax.f32 %v533, 0.0
        %v536 = vld [vmem:[#allocation7] sm:$0xff]
        %v537 = vld [vmem:[#allocation7 + $0x8] sm:$0xff]
        %v538 = vld [vmem:[#allocation7 + $0x10] sm:$0xff]
        %v539 = vld [vmem:[#allocation7 + $0x18] sm:$0xff]
        %v540 = vld [vmem:[#allocation7 + $0x20] sm:$0xff]
        %v541 = vld [vmem:[#allocation7 + $0x28] sm:$0xff]
        %v542 = vld [vmem:[#allocation7 + $0x30] sm:$0xff]
        %v543 = vld [vmem:[#allocation7 + $0x38] sm:$0xff]
        %v544 = vld [vmem:[#allocation7 + $0x40] sm:$0xff]
        %v545 = vld [vmem:[#allocation7 + $0x48] sm:$0xff]
        %v546 = vld [vmem:[#allocation7 + $0x50] sm:$0xff]
        %v547 = vld [vmem:[#allocation7 + $0x58] sm:$0xff]
        %v548 = vld [vmem:[#allocation7 + $0x60] sm:$0xff]
        %v549 = vld [vmem:[#allocation7 + $0x68] sm:$0xff]
        %v550 = vld [vmem:[#allocation7 + $0x70] sm:$0xff]
        %v551 = vld [vmem:[#allocation7 + $0x78] sm:$0xff]
        %v552 = vld [vmem:[#allocation7 + $0x80] sm:$0xff]
        %v553 = vld [vmem:[#allocation7 + $0x88] sm:$0xff]
        %v554 = vld [vmem:[#allocation7 + $0x90] sm:$0xff]
        %v555 = vld [vmem:[#allocation7 + $0x98] sm:$0xff]
        %v556 = vld [vmem:[#allocation7 + $0xa0] sm:$0xff]
        %v557 = vld [vmem:[#allocation7 + $0xa8] sm:$0xff]
        %v558 = vld [vmem:[#allocation7 + $0xb0] sm:$0xff]
        %v559 = vld [vmem:[#allocation7 + $0xb8] sm:$0xff]
        %v560 = vld [vmem:[#allocation7 + $0xc0] sm:$0xff]
        %v561 = vld [vmem:[#allocation7 + $0xc8] sm:$0xff]
        %v562 = vld [vmem:[#allocation7 + $0xd0] sm:$0xff]
        %v563 = vld [vmem:[#allocation7 + $0xd8] sm:$0xff]
        %v564 = vld [vmem:[#allocation7 + $0xe0] sm:$0xff]
        %v565 = vld [vmem:[#allocation7 + $0xe8] sm:$0xff]
        %v566 = vld [vmem:[#allocation7 + $0xf0] sm:$0xff]
        %v567 = vld [vmem:[#allocation7 + $0xf8] sm:$0xff]
        %v568 = vld [vmem:[#allocation9] sm:$0x3]
        %v570 = vperm.slane %v568, 0
        %v571 = vperm.slane %v568, 1
        %574 = vmatpush.msra.mxu0 %v566
        %575 = vmatpush.msra.mxu0 %v564
        %576 = vmatpush.msra.mxu0 %v562
        %577 = vmatpush.msra.mxu0 %v560
        %578 = vmatpush.msra.mxu0 %v558
        %579 = vmatpush.msra.mxu0 %v556
        %580 = vmatpush.msra.mxu0 %v554
        %581 = vmatpush.msra.mxu0 %v552
        %582 = vmatpush.msra.mxu0 %v550
        %583 = vmatpush.msra.mxu0 %v548
        %584 = vmatpush.msra.mxu0 %v546
        %585 = vmatpush.msra.mxu0 %v544
        %586 = vmatpush.msra.mxu0 %v542
        %587 = vmatpush.msra.mxu0 %v540
        %588 = vmatpush.msra.mxu0 %v538
        %589 = vmatpush.msra.mxu0 %v536
        %590 = vmatmul.f32.gmra.mxu0 %v535
        %v591 = vpop.f32.mrf.mxu0
        %v592 = vadd.f32 %v570, %v591
        %593 = vdwg.mxu0
        %594 = vmatpush.msra.mxu0 %v567
        %595 = vmatpush.msra.mxu0 %v565
        %596 = vmatpush.msra.mxu0 %v563
        %597 = vmatpush.msra.mxu0 %v561
        %598 = vmatpush.msra.mxu0 %v559
        %599 = vmatpush.msra.mxu0 %v557
        %600 = vmatpush.msra.mxu0 %v555
        %601 = vmatpush.msra.mxu0 %v553
        %602 = vmatpush.msra.mxu0 %v551
        %603 = vmatpush.msra.mxu0 %v549
        %604 = vmatpush.msra.mxu0 %v547
        %605 = vmatpush.msra.mxu0 %v545
        %606 = vmatpush.msra.mxu0 %v543
        %607 = vmatpush.msra.mxu0 %v541
        %608 = vmatpush.msra.mxu0 %v539
        %609 = vmatpush.msra.mxu0 %v537
        %610 = vmatmul.f32.gmra.mxu0 %v535
        %v611 = vpop.f32.mrf.mxu0
        %v612 = vadd.f32 %v571, %v611
        %613 = vdwg.mxu0
        %v614 = vmax.f32 %v592, 0.0
        %v615 = vmax.f32 %v612, 0.0
        %v616 = vld [vmem:[#allocation10] sm:$0xff]
        %v617 = vld [vmem:[#allocation10 + $0x8] sm:$0xff]
        %v618 = vld [vmem:[#allocation10 + $0x10] sm:$0xff]
        %v619 = vld [vmem:[#allocation10 + $0x18] sm:$0xff]
        %v620 = vld [vmem:[#allocation10 + $0x20] sm:$0xff]
        %v621 = vld [vmem:[#allocation10 + $0x28] sm:$0xff]
        %v622 = vld [vmem:[#allocation10 + $0x30] sm:$0xff]
        %v623 = vld [vmem:[#allocation10 + $0x38] sm:$0xff]
        %v624 = vld [vmem:[#allocation10 + $0x40] sm:$0xff]
        %v625 = vld [vmem:[#allocation10 + $0x48] sm:$0xff]
        %v626 = vld [vmem:[#allocation10 + $0x50] sm:$0xff]
        %v627 = vld [vmem:[#allocation10 + $0x58] sm:$0xff]
        %v628 = vld [vmem:[#allocation10 + $0x60] sm:$0xff]
        %v629 = vld [vmem:[#allocation10 + $0x68] sm:$0xff]
        %v630 = vld [vmem:[#allocation10 + $0x70] sm:$0xff]
        %v631 = vld [vmem:[#allocation10 + $0x78] sm:$0xff]
        %v632 = vld [vmem:[#allocation10 + $0x80] sm:$0xff]
        %v633 = vld [vmem:[#allocation10 + $0x88] sm:$0xff]
        %v634 = vld [vmem:[#allocation10 + $0x90] sm:$0xff]
        %v635 = vld [vmem:[#allocation10 + $0x98] sm:$0xff]
        %v636 = vld [vmem:[#allocation10 + $0xa0] sm:$0xff]
        %v637 = vld [vmem:[#allocation10 + $0xa8] sm:$0xff]
        %v638 = vld [vmem:[#allocation10 + $0xb0] sm:$0xff]
        %v639 = vld [vmem:[#allocation10 + $0xb8] sm:$0xff]
        %v640 = vld [vmem:[#allocation10 + $0xc0] sm:$0xff]
        %v641 = vld [vmem:[#allocation10 + $0xc8] sm:$0xff]
        %v642 = vld [vmem:[#allocation10 + $0xd0] sm:$0xff]
        %v643 = vld [vmem:[#allocation10 + $0xd8] sm:$0xff]
        %v644 = vld [vmem:[#allocation10 + $0xe0] sm:$0xff]
        %v645 = vld [vmem:[#allocation10 + $0xe8] sm:$0xff]
        %v646 = vld [vmem:[#allocation10 + $0xf0] sm:$0xff]
        %v647 = vld [vmem:[#allocation10 + $0xf8] sm:$0xff]
        %v648 = vld [vmem:[#allocation10 + $0x100] sm:$0xff]
        %v649 = vld [vmem:[#allocation10 + $0x108] sm:$0xff]
        %v650 = vld [vmem:[#allocation10 + $0x110] sm:$0xff]
        %v651 = vld [vmem:[#allocation10 + $0x118] sm:$0xff]
        %v652 = vld [vmem:[#allocation10 + $0x120] sm:$0xff]
        %v653 = vld [vmem:[#allocation10 + $0x128] sm:$0xff]
        %v654 = vld [vmem:[#allocation10 + $0x130] sm:$0xff]
        %v655 = vld [vmem:[#allocation10 + $0x138] sm:$0xff]
        %v656 = vld [vmem:[#allocation10 + $0x140] sm:$0xff]
        %v657 = vld [vmem:[#allocation10 + $0x148] sm:$0xff]
        %v658 = vld [vmem:[#allocation10 + $0x150] sm:$0xff]
        %v659 = vld [vmem:[#allocation10 + $0x158] sm:$0xff]
        %v660 = vld [vmem:[#allocation10 + $0x160] sm:$0xff]
        %v661 = vld [vmem:[#allocation10 + $0x168] sm:$0xff]
        %v662 = vld [vmem:[#allocation10 + $0x170] sm:$0xff]
        %v663 = vld [vmem:[#allocation10 + $0x178] sm:$0xff]
        %v664 = vld [vmem:[#allocation10 + $0x180] sm:$0xff]
        %v665 = vld [vmem:[#allocation10 + $0x188] sm:$0xff]
        %v666 = vld [vmem:[#allocation10 + $0x190] sm:$0xff]
        %v667 = vld [vmem:[#allocation10 + $0x198] sm:$0xff]
        %v668 = vld [vmem:[#allocation10 + $0x1a0] sm:$0xff]
        %v669 = vld [vmem:[#allocation10 + $0x1a8] sm:$0xff]
        %v670 = vld [vmem:[#allocation10 + $0x1b0] sm:$0xff]
        %v671 = vld [vmem:[#allocation10 + $0x1b8] sm:$0xff]
        %v672 = vld [vmem:[#allocation10 + $0x1c0] sm:$0xff]
        %v673 = vld [vmem:[#allocation10 + $0x1c8] sm:$0xff]
        %v674 = vld [vmem:[#allocation10 + $0x1d0] sm:$0xff]
        %v675 = vld [vmem:[#allocation10 + $0x1d8] sm:$0xff]
        %v676 = vld [vmem:[#allocation10 + $0x1e0] sm:$0xff]
        %v677 = vld [vmem:[#allocation10 + $0x1e8] sm:$0xff]
        %v678 = vld [vmem:[#allocation10 + $0x1f0] sm:$0xff]
        %v679 = vld [vmem:[#allocation10 + $0x1f8] sm:$0xff]
        %v680 = vld [vmem:[#allocation10 + $0x200] sm:$0xff]
        %v681 = vld [vmem:[#allocation10 + $0x208] sm:$0xff]
        %v682 = vld [vmem:[#allocation10 + $0x210] sm:$0xff]
        %v683 = vld [vmem:[#allocation10 + $0x218] sm:$0xff]
        %v684 = vld [vmem:[#allocation10 + $0x220] sm:$0xff]
        %v685 = vld [vmem:[#allocation10 + $0x228] sm:$0xff]
        %v686 = vld [vmem:[#allocation10 + $0x230] sm:$0xff]
        %v687 = vld [vmem:[#allocation10 + $0x238] sm:$0xff]
        %v688 = vld [vmem:[#allocation10 + $0x240] sm:$0xff]
        %v689 = vld [vmem:[#allocation10 + $0x248] sm:$0xff]
        %v690 = vld [vmem:[#allocation10 + $0x250] sm:$0xff]
        %v691 = vld [vmem:[#allocation10 + $0x258] sm:$0xff]
        %v692 = vld [vmem:[#allocation10 + $0x260] sm:$0xff]
        %v693 = vld [vmem:[#allocation10 + $0x268] sm:$0xff]
        %v694 = vld [vmem:[#allocation10 + $0x270] sm:$0xff]
        %v695 = vld [vmem:[#allocation10 + $0x278] sm:$0xff]
        %v696 = vld [vmem:[#allocation10 + $0x280] sm:$0xff]
        %v697 = vld [vmem:[#allocation10 + $0x288] sm:$0xff]
        %v698 = vld [vmem:[#allocation10 + $0x290] sm:$0xff]
        %v699 = vld [vmem:[#allocation10 + $0x298] sm:$0xff]
        %v700 = vld [vmem:[#allocation10 + $0x2a0] sm:$0xff]
        %v701 = vld [vmem:[#allocation10 + $0x2a8] sm:$0xff]
        %v702 = vld [vmem:[#allocation10 + $0x2b0] sm:$0xff]
        %v703 = vld [vmem:[#allocation10 + $0x2b8] sm:$0xff]
        %v704 = vld [vmem:[#allocation10 + $0x2c0] sm:$0xff]
        %v705 = vld [vmem:[#allocation10 + $0x2c8] sm:$0xff]
        %v706 = vld [vmem:[#allocation10 + $0x2d0] sm:$0xff]
        %v707 = vld [vmem:[#allocation10 + $0x2d8] sm:$0xff]
        %v708 = vld [vmem:[#allocation10 + $0x2e0] sm:$0xff]
        %v709 = vld [vmem:[#allocation10 + $0x2e8] sm:$0xff]
        %v710 = vld [vmem:[#allocation10 + $0x2f0] sm:$0xff]
        %v711 = vld [vmem:[#allocation10 + $0x2f8] sm:$0xff]
        %v712 = vld [vmem:[#allocation10 + $0x300] sm:$0xff]
        %v713 = vld [vmem:[#allocation10 + $0x308] sm:$0xff]
        %v714 = vld [vmem:[#allocation10 + $0x310] sm:$0xff]
        %v715 = vld [vmem:[#allocation10 + $0x318] sm:$0xff]
        %v716 = vld [vmem:[#allocation10 + $0x320] sm:$0xff]
        %v717 = vld [vmem:[#allocation10 + $0x328] sm:$0xff]
        %v718 = vld [vmem:[#allocation10 + $0x330] sm:$0xff]
        %v719 = vld [vmem:[#allocation10 + $0x338] sm:$0xff]
        %v720 = vld [vmem:[#allocation10 + $0x340] sm:$0xff]
        %v721 = vld [vmem:[#allocation10 + $0x348] sm:$0xff]
        %v722 = vld [vmem:[#allocation10 + $0x350] sm:$0xff]
        %v723 = vld [vmem:[#allocation10 + $0x358] sm:$0xff]
        %v724 = vld [vmem:[#allocation10 + $0x360] sm:$0xff]
        %v725 = vld [vmem:[#allocation10 + $0x368] sm:$0xff]
        %v726 = vld [vmem:[#allocation10 + $0x370] sm:$0xff]
        %v727 = vld [vmem:[#allocation10 + $0x378] sm:$0xff]
        %v728 = vld [vmem:[#allocation10 + $0x380] sm:$0xff]
        %v729 = vld [vmem:[#allocation10 + $0x388] sm:$0xff]
        %v730 = vld [vmem:[#allocation10 + $0x390] sm:$0xff]
        %v731 = vld [vmem:[#allocation10 + $0x398] sm:$0xff]
        %v732 = vld [vmem:[#allocation10 + $0x3a0] sm:$0xff]
        %v733 = vld [vmem:[#allocation10 + $0x3a8] sm:$0xff]
        %v734 = vld [vmem:[#allocation10 + $0x3b0] sm:$0xff]
        %v735 = vld [vmem:[#allocation10 + $0x3b8] sm:$0xff]
        %v736 = vld [vmem:[#allocation10 + $0x3c0] sm:$0xff]
        %v737 = vld [vmem:[#allocation10 + $0x3c8] sm:$0xff]
        %v738 = vld [vmem:[#allocation10 + $0x3d0] sm:$0xff]
        %v739 = vld [vmem:[#allocation10 + $0x3d8] sm:$0xff]
        %v740 = vld [vmem:[#allocation10 + $0x3e0] sm:$0xff]
        %v741 = vld [vmem:[#allocation10 + $0x3e8] sm:$0xff]
        %v742 = vld [vmem:[#allocation10 + $0x3f0] sm:$0xff]
        %v743 = vld [vmem:[#allocation10 + $0x3f8] sm:$0xff]
        %v744 = vld [vmem:[#allocation12] sm:$0xf]
        %v746 = vperm.slane %v744, 0
        %v747 = vperm.slane %v744, 1
        %v748 = vperm.slane %v744, 2
        %v749 = vperm.slane %v744, 3
        %754 = vmatpush.msra.mxu0 %v676
        %755 = vmatpush.msra.mxu0 %v672
        %756 = vmatpush.msra.mxu0 %v668
        %757 = vmatpush.msra.mxu0 %v664
        %758 = vmatpush.msra.mxu0 %v660
        %759 = vmatpush.msra.mxu0 %v656
        %760 = vmatpush.msra.mxu0 %v652
        %761 = vmatpush.msra.mxu0 %v648
        %762 = vmatpush.msra.mxu0 %v644
        %763 = vmatpush.msra.mxu0 %v640
        %764 = vmatpush.msra.mxu0 %v636
        %765 = vmatpush.msra.mxu0 %v632
        %766 = vmatpush.msra.mxu0 %v628
        %767 = vmatpush.msra.mxu0 %v624
        %768 = vmatpush.msra.mxu0 %v620
        %769 = vmatpush.msra.mxu0 %v616
        %770 = vmatmul.f32.gmra.mxu0 %v614
        %v771 = vpop.f32.mrf.mxu0
        %v772 = vadd.f32 %v746, %v771
        %773 = vdwg.mxu0
        %774 = vmatpush.msra.mxu0 %v740
        %775 = vmatpush.msra.mxu0 %v736
        %776 = vmatpush.msra.mxu0 %v732
        %777 = vmatpush.msra.mxu0 %v728
        %778 = vmatpush.msra.mxu0 %v724
        %779 = vmatpush.msra.mxu0 %v720
        %780 = vmatpush.msra.mxu0 %v716
        %781 = vmatpush.msra.mxu0 %v712
        %782 = vmatpush.msra.mxu0 %v708
        %783 = vmatpush.msra.mxu0 %v704
        %784 = vmatpush.msra.mxu0 %v700
        %785 = vmatpush.msra.mxu0 %v696
        %786 = vmatpush.msra.mxu0 %v692
        %787 = vmatpush.msra.mxu0 %v688
        %788 = vmatpush.msra.mxu0 %v684
        %789 = vmatpush.msra.mxu0 %v680
        %790 = vmatmul.f32.gmra.mxu0 %v615
        %v791 = vpop.f32.mrf.mxu0
        %v792 = vadd.f32 %v772, %v791
        %793 = vdwg.mxu0
        %794 = vmatpush.msra.mxu0 %v677
        %795 = vmatpush.msra.mxu0 %v673
        %796 = vmatpush.msra.mxu0 %v669
        %797 = vmatpush.msra.mxu0 %v665
        %798 = vmatpush.msra.mxu0 %v661
        %799 = vmatpush.msra.mxu0 %v657
        %800 = vmatpush.msra.mxu0 %v653
        %801 = vmatpush.msra.mxu0 %v649
        %802 = vmatpush.msra.mxu0 %v645
        %803 = vmatpush.msra.mxu0 %v641
        %804 = vmatpush.msra.mxu0 %v637
        %805 = vmatpush.msra.mxu0 %v633
        %806 = vmatpush.msra.mxu0 %v629
        %807 = vmatpush.msra.mxu0 %v625
        %808 = vmatpush.msra.mxu0 %v621
        %809 = vmatpush.msra.mxu0 %v617
        %810 = vmatmul.f32.gmra.mxu0 %v614
        %v811 = vpop.f32.mrf.mxu0
        %v812 = vadd.f32 %v747, %v811
        %813 = vdwg.mxu0
        %814 = vmatpush.msra.mxu0 %v741
        %815 = vmatpush.msra.mxu0 %v737
        %816 = vmatpush.msra.mxu0 %v733
        %817 = vmatpush.msra.mxu0 %v729
        %818 = vmatpush.msra.mxu0 %v725
        %819 = vmatpush.msra.mxu0 %v721
        %820 = vmatpush.msra.mxu0 %v717
        %821 = vmatpush.msra.mxu0 %v713
        %822 = vmatpush.msra.mxu0 %v709
        %823 = vmatpush.msra.mxu0 %v705
        %824 = vmatpush.msra.mxu0 %v701
        %825 = vmatpush.msra.mxu0 %v697
        %826 = vmatpush.msra.mxu0 %v693
        %827 = vmatpush.msra.mxu0 %v689
        %828 = vmatpush.msra.mxu0 %v685
        %829 = vmatpush.msra.mxu0 %v681
        %830 = vmatmul.f32.gmra.mxu0 %v615
        %v831 = vpop.f32.mrf.mxu0
        %v832 = vadd.f32 %v812, %v831
        %833 = vdwg.mxu0
        %834 = vmatpush.msra.mxu0 %v678
        %835 = vmatpush.msra.mxu0 %v674
        %836 = vmatpush.msra.mxu0 %v670
        %837 = vmatpush.msra.mxu0 %v666
        %838 = vmatpush.msra.mxu0 %v662
        %839 = vmatpush.msra.mxu0 %v658
        %840 = vmatpush.msra.mxu0 %v654
        %841 = vmatpush.msra.mxu0 %v650
        %842 = vmatpush.msra.mxu0 %v646
        %843 = vmatpush.msra.mxu0 %v642
        %844 = vmatpush.msra.mxu0 %v638
        %845 = vmatpush.msra.mxu0 %v634
        %846 = vmatpush.msra.mxu0 %v630
        %847 = vmatpush.msra.mxu0 %v626
        %848 = vmatpush.msra.mxu0 %v622
        %849 = vmatpush.msra.mxu0 %v618
        %850 = vmatmul.f32.gmra.mxu0 %v614
        %v851 = vpop.f32.mrf.mxu0
        %v852 = vadd.f32 %v748, %v851
        %853 = vdwg.mxu0
        %854 = vmatpush.msra.mxu0 %v742
        %855 = vmatpush.msra.mxu0 %v738
        %856 = vmatpush.msra.mxu0 %v734
        %857 = vmatpush.msra.mxu0 %v730
        %858 = vmatpush.msra.mxu0 %v726
        %859 = vmatpush.msra.mxu0 %v722
        %860 = vmatpush.msra.mxu0 %v718
        %861 = vmatpush.msra.mxu0 %v714
        %862 = vmatpush.msra.mxu0 %v710
        %863 = vmatpush.msra.mxu0 %v706
        %864 = vmatpush.msra.mxu0 %v702
        %865 = vmatpush.msra.mxu0 %v698
        %866 = vmatpush.msra.mxu0 %v694
        %867 = vmatpush.msra.mxu0 %v690
        %868 = vmatpush.msra.mxu0 %v686
        %869 = vmatpush.msra.mxu0 %v682
        %870 = vmatmul.f32.gmra.mxu0 %v615
        %v871 = vpop.f32.mrf.mxu0
        %v872 = vadd.f32 %v852, %v871
        %873 = vdwg.mxu0
        %874 = vmatpush.msra.mxu0 %v679
        %875 = vmatpush.msra.mxu0 %v675
        %876 = vmatpush.msra.mxu0 %v671
        %877 = vmatpush.msra.mxu0 %v667
        %878 = vmatpush.msra.mxu0 %v663
        %879 = vmatpush.msra.mxu0 %v659
        %880 = vmatpush.msra.mxu0 %v655
        %881 = vmatpush.msra.mxu0 %v651
        %882 = vmatpush.msra.mxu0 %v647
        %883 = vmatpush.msra.mxu0 %v643
        %884 = vmatpush.msra.mxu0 %v639
        %885 = vmatpush.msra.mxu0 %v635
        %886 = vmatpush.msra.mxu0 %v631
        %887 = vmatpush.msra.mxu0 %v627
        %888 = vmatpush.msra.mxu0 %v623
        %889 = vmatpush.msra.mxu0 %v619
        %890 = vmatmul.f32.gmra.mxu0 %v614
        %v891 = vpop.f32.mrf.mxu0
        %v892 = vadd.f32 %v749, %v891
        %893 = vdwg.mxu0
        %894 = vmatpush.msra.mxu0 %v743
        %895 = vmatpush.msra.mxu0 %v739
        %896 = vmatpush.msra.mxu0 %v735
        %897 = vmatpush.msra.mxu0 %v731
        %898 = vmatpush.msra.mxu0 %v727
        %899 = vmatpush.msra.mxu0 %v723
        %900 = vmatpush.msra.mxu0 %v719
        %901 = vmatpush.msra.mxu0 %v715
        %902 = vmatpush.msra.mxu0 %v711
        %903 = vmatpush.msra.mxu0 %v707
        %904 = vmatpush.msra.mxu0 %v703
        %905 = vmatpush.msra.mxu0 %v699
        %906 = vmatpush.msra.mxu0 %v695
        %907 = vmatpush.msra.mxu0 %v691
        %908 = vmatpush.msra.mxu0 %v687
        %909 = vmatpush.msra.mxu0 %v683
        %910 = vmatmul.f32.gmra.mxu0 %v615
        %v911 = vpop.f32.mrf.mxu0
        %v912 = vadd.f32 %v892, %v911
        %913 = vdwg.mxu0
        %v914 = vmax.f32 %v792, 0.0
        %v915 = vmax.f32 %v832, 0.0
        %v916 = vmax.f32 %v872, 0.0
        %v917 = vmax.f32 %v912, 0.0
        %v918 = vpack.c.bf16 %v914, %v914
        %v919 = vpack.c.bf16 %v915, %v915
        %v920 = vpack.c.bf16 %v916, %v916
        %v921 = vpack.c.bf16 %v917, %v917
        %v922 = vld [vmem:[%s443] sm:$0xff]
        %v923 = vld [vmem:[%s443 + $0x8] sm:$0xff]
        %v924 = vld [vmem:[%s443 + $0x10] sm:$0xff]
        %v925 = vld [vmem:[%s443 + $0x18] sm:$0xff]
        %v926 = vld [vmem:[%s443 + $0x20] sm:$0xff]
        %v927 = vld [vmem:[%s443 + $0x28] sm:$0xff]
        %v928 = vld [vmem:[%s443 + $0x30] sm:$0xff]
        %v929 = vld [vmem:[%s443 + $0x38] sm:$0xff]
        %v930 = vld [vmem:[%s443 + $0x40] sm:$0xff]
        %v931 = vld [vmem:[%s443 + $0x48] sm:$0xff]
        %v932 = vld [vmem:[%s443 + $0x50] sm:$0xff]
        %v933 = vld [vmem:[%s443 + $0x58] sm:$0xff]
        %v934 = vld [vmem:[%s443 + $0x60] sm:$0xff]
        %v935 = vld [vmem:[%s443 + $0x68] sm:$0xff]
        %v936 = vld [vmem:[%s443 + $0x70] sm:$0xff]
        %v937 = vld [vmem:[%s443 + $0x78] sm:$0xff]
        %v938 = vld [vmem:[%s443 + $0x80] sm:$0xff]
        %v939 = vld [vmem:[%s443 + $0x88] sm:$0xff]
        %v940 = vld [vmem:[%s443 + $0x90] sm:$0xff]
        %v941 = vld [vmem:[%s443 + $0x98] sm:$0xff]
        %v942 = vld [vmem:[%s443 + $0xa0] sm:$0xff]
        %v943 = vld [vmem:[%s443 + $0xa8] sm:$0xff]
        %v944 = vld [vmem:[%s443 + $0xb0] sm:$0xff]
        %v945 = vld [vmem:[%s443 + $0xb8] sm:$0xff]
        %v946 = vld [vmem:[%s443 + $0xc0] sm:$0xff]
        %v947 = vld [vmem:[%s443 + $0xc8] sm:$0xff]
        %v948 = vld [vmem:[%s443 + $0xd0] sm:$0xff]
        %v949 = vld [vmem:[%s443 + $0xd8] sm:$0xff]
        %v950 = vld [vmem:[%s443 + $0xe0] sm:$0xff]
        %v951 = vld [vmem:[%s443 + $0xe8] sm:$0xff]
        %v952 = vld [vmem:[%s443 + $0xf0] sm:$0xff]
        %v953 = vld [vmem:[%s443 + $0xf8] sm:$0xff]
        %v954 = vld [vmem:[%s443 + $0x100] sm:$0xff]
        %v955 = vld [vmem:[%s443 + $0x108] sm:$0xff]
        %v956 = vld [vmem:[%s443 + $0x110] sm:$0xff]
        %v957 = vld [vmem:[%s443 + $0x118] sm:$0xff]
        %v958 = vld [vmem:[%s443 + $0x120] sm:$0xff]
        %v959 = vld [vmem:[%s443 + $0x128] sm:$0xff]
        %v960 = vld [vmem:[%s443 + $0x130] sm:$0xff]
        %v961 = vld [vmem:[%s443 + $0x138] sm:$0xff]
        %v962 = vld [vmem:[%s443 + $0x140] sm:$0xff]
        %v963 = vld [vmem:[%s443 + $0x148] sm:$0xff]
        %v964 = vld [vmem:[%s443 + $0x150] sm:$0xff]
        %v965 = vld [vmem:[%s443 + $0x158] sm:$0xff]
        %v966 = vld [vmem:[%s443 + $0x160] sm:$0xff]
        %v967 = vld [vmem:[%s443 + $0x168] sm:$0xff]
        %v968 = vld [vmem:[%s443 + $0x170] sm:$0xff]
        %v969 = vld [vmem:[%s443 + $0x178] sm:$0xff]
        %v970 = vld [vmem:[%s443 + $0x180] sm:$0xff]
        %v971 = vld [vmem:[%s443 + $0x188] sm:$0xff]
        %v972 = vld [vmem:[%s443 + $0x190] sm:$0xff]
        %v973 = vld [vmem:[%s443 + $0x198] sm:$0xff]
        %v974 = vld [vmem:[%s443 + $0x1a0] sm:$0xff]
        %v975 = vld [vmem:[%s443 + $0x1a8] sm:$0xff]
        %v976 = vld [vmem:[%s443 + $0x1b0] sm:$0xff]
        %v977 = vld [vmem:[%s443 + $0x1b8] sm:$0xff]
        %v978 = vld [vmem:[%s443 + $0x1c0] sm:$0xff]
        %v979 = vld [vmem:[%s443 + $0x1c8] sm:$0xff]
        %v980 = vld [vmem:[%s443 + $0x1d0] sm:$0xff]
        %v981 = vld [vmem:[%s443 + $0x1d8] sm:$0xff]
        %v982 = vld [vmem:[%s443 + $0x1e0] sm:$0xff]
        %v983 = vld [vmem:[%s443 + $0x1e8] sm:$0xff]
        %v984 = vld [vmem:[%s443 + $0x1f0] sm:$0xff]
        %v985 = vld [vmem:[%s443 + $0x1f8] sm:$0xff]
        %v986 = vld [vmem:[%s443 + $0x200] sm:$0xff]
        %v987 = vld [vmem:[%s443 + $0x208] sm:$0xff]
        %v988 = vld [vmem:[%s443 + $0x210] sm:$0xff]
        %v989 = vld [vmem:[%s443 + $0x218] sm:$0xff]
        %v990 = vld [vmem:[%s443 + $0x220] sm:$0xff]
        %v991 = vld [vmem:[%s443 + $0x228] sm:$0xff]
        %v992 = vld [vmem:[%s443 + $0x230] sm:$0xff]
        %v993 = vld [vmem:[%s443 + $0x238] sm:$0xff]
        %v994 = vld [vmem:[%s443 + $0x240] sm:$0xff]
        %v995 = vld [vmem:[%s443 + $0x248] sm:$0xff]
        %v996 = vld [vmem:[%s443 + $0x250] sm:$0xff]
        %v997 = vld [vmem:[%s443 + $0x258] sm:$0xff]
        %v998 = vld [vmem:[%s443 + $0x260] sm:$0xff]
        %v999 = vld [vmem:[%s443 + $0x268] sm:$0xff]
        %v1000 = vld [vmem:[%s443 + $0x270] sm:$0xff]
        %v1001 = vld [vmem:[%s443 + $0x278] sm:$0xff]
        %v1002 = vld [vmem:[%s443 + $0x280] sm:$0xff]
        %v1003 = vld [vmem:[%s443 + $0x288] sm:$0xff]
        %v1004 = vld [vmem:[%s443 + $0x290] sm:$0xff]
        %v1005 = vld [vmem:[%s443 + $0x298] sm:$0xff]
        %v1006 = vld [vmem:[%s443 + $0x2a0] sm:$0xff]
        %v1007 = vld [vmem:[%s443 + $0x2a8] sm:$0xff]
        %v1008 = vld [vmem:[%s443 + $0x2b0] sm:$0xff]
        %v1009 = vld [vmem:[%s443 + $0x2b8] sm:$0xff]
        %v1010 = vld [vmem:[%s443 + $0x2c0] sm:$0xff]
        %v1011 = vld [vmem:[%s443 + $0x2c8] sm:$0xff]
        %v1012 = vld [vmem:[%s443 + $0x2d0] sm:$0xff]
        %v1013 = vld [vmem:[%s443 + $0x2d8] sm:$0xff]
        %v1014 = vld [vmem:[%s443 + $0x2e0] sm:$0xff]
        %v1015 = vld [vmem:[%s443 + $0x2e8] sm:$0xff]
        %v1016 = vld [vmem:[%s443 + $0x2f0] sm:$0xff]
        %v1017 = vld [vmem:[%s443 + $0x2f8] sm:$0xff]
        %v1018 = vld [vmem:[%s443 + $0x300] sm:$0xff]
        %v1019 = vld [vmem:[%s443 + $0x308] sm:$0xff]
        %v1020 = vld [vmem:[%s443 + $0x310] sm:$0xff]
        %v1021 = vld [vmem:[%s443 + $0x318] sm:$0xff]
        %v1022 = vld [vmem:[%s443 + $0x320] sm:$0xff]
        %v1023 = vld [vmem:[%s443 + $0x328] sm:$0xff]
        %v1024 = vld [vmem:[%s443 + $0x330] sm:$0xff]
        %v1025 = vld [vmem:[%s443 + $0x338] sm:$0xff]
        %v1026 = vld [vmem:[%s443 + $0x340] sm:$0xff]
        %v1027 = vld [vmem:[%s443 + $0x348] sm:$0xff]
        %v1028 = vld [vmem:[%s443 + $0x350] sm:$0xff]
        %v1029 = vld [vmem:[%s443 + $0x358] sm:$0xff]
        %v1030 = vld [vmem:[%s443 + $0x360] sm:$0xff]
        %v1031 = vld [vmem:[%s443 + $0x368] sm:$0xff]
        %v1032 = vld [vmem:[%s443 + $0x370] sm:$0xff]
        %v1033 = vld [vmem:[%s443 + $0x378] sm:$0xff]
        %v1034 = vld [vmem:[%s443 + $0x380] sm:$0xff]
        %v1035 = vld [vmem:[%s443 + $0x388] sm:$0xff]
        %v1036 = vld [vmem:[%s443 + $0x390] sm:$0xff]
        %v1037 = vld [vmem:[%s443 + $0x398] sm:$0xff]
        %v1038 = vld [vmem:[%s443 + $0x3a0] sm:$0xff]
        %v1039 = vld [vmem:[%s443 + $0x3a8] sm:$0xff]
        %v1040 = vld [vmem:[%s443 + $0x3b0] sm:$0xff]
        %v1041 = vld [vmem:[%s443 + $0x3b8] sm:$0xff]
        %v1042 = vld [vmem:[%s443 + $0x3c0] sm:$0xff]
        %v1043 = vld [vmem:[%s443 + $0x3c8] sm:$0xff]
        %v1044 = vld [vmem:[%s443 + $0x3d0] sm:$0xff]
        %v1045 = vld [vmem:[%s443 + $0x3d8] sm:$0xff]
        %v1046 = vld [vmem:[%s443 + $0x3e0] sm:$0xff]
        %v1047 = vld [vmem:[%s443 + $0x3e8] sm:$0xff]
        %v1048 = vld [vmem:[%s443 + $0x3f0] sm:$0xff]
        %v1049 = vld [vmem:[%s443 + $0x3f8] sm:$0xff]
        %v1050 = vld [vmem:[%s443 + $0x400] sm:$0xff]
        %v1051 = vld [vmem:[%s443 + $0x408] sm:$0xff]
        %v1052 = vld [vmem:[%s443 + $0x410] sm:$0xff]
        %v1053 = vld [vmem:[%s443 + $0x418] sm:$0xff]
        %v1054 = vld [vmem:[%s443 + $0x420] sm:$0xff]
        %v1055 = vld [vmem:[%s443 + $0x428] sm:$0xff]
        %v1056 = vld [vmem:[%s443 + $0x430] sm:$0xff]
        %v1057 = vld [vmem:[%s443 + $0x438] sm:$0xff]
        %v1058 = vld [vmem:[%s443 + $0x440] sm:$0xff]
        %v1059 = vld [vmem:[%s443 + $0x448] sm:$0xff]
        %v1060 = vld [vmem:[%s443 + $0x450] sm:$0xff]
        %v1061 = vld [vmem:[%s443 + $0x458] sm:$0xff]
        %v1062 = vld [vmem:[%s443 + $0x460] sm:$0xff]
        %v1063 = vld [vmem:[%s443 + $0x468] sm:$0xff]
        %v1064 = vld [vmem:[%s443 + $0x470] sm:$0xff]
        %v1065 = vld [vmem:[%s443 + $0x478] sm:$0xff]
        %v1066 = vld [vmem:[%s443 + $0x480] sm:$0xff]
        %v1067 = vld [vmem:[%s443 + $0x488] sm:$0xff]
        %v1068 = vld [vmem:[%s443 + $0x490] sm:$0xff]
        %v1069 = vld [vmem:[%s443 + $0x498] sm:$0xff]
        %v1070 = vld [vmem:[%s443 + $0x4a0] sm:$0xff]
        %v1071 = vld [vmem:[%s443 + $0x4a8] sm:$0xff]
        %v1072 = vld [vmem:[%s443 + $0x4b0] sm:$0xff]
        %v1073 = vld [vmem:[%s443 + $0x4b8] sm:$0xff]
        %v1074 = vld [vmem:[%s443 + $0x4c0] sm:$0xff]
        %v1075 = vld [vmem:[%s443 + $0x4c8] sm:$0xff]
        %v1076 = vld [vmem:[%s443 + $0x4d0] sm:$0xff]
        %v1077 = vld [vmem:[%s443 + $0x4d8] sm:$0xff]
        %v1078 = vld [vmem:[%s443 + $0x4e0] sm:$0xff]
        %v1079 = vld [vmem:[%s443 + $0x4e8] sm:$0xff]
        %v1080 = vld [vmem:[%s443 + $0x4f0] sm:$0xff]
        %v1081 = vld [vmem:[%s443 + $0x4f8] sm:$0xff]
        %v1082 = vld [vmem:[%s443 + $0x500] sm:$0xff]
        %v1083 = vld [vmem:[%s443 + $0x508] sm:$0xff]
        %v1084 = vld [vmem:[%s443 + $0x510] sm:$0xff]
        %v1085 = vld [vmem:[%s443 + $0x518] sm:$0xff]
        %v1086 = vld [vmem:[%s443 + $0x520] sm:$0xff]
        %v1087 = vld [vmem:[%s443 + $0x528] sm:$0xff]
        %v1088 = vld [vmem:[%s443 + $0x530] sm:$0xff]
        %v1089 = vld [vmem:[%s443 + $0x538] sm:$0xff]
        %v1090 = vld [vmem:[%s443 + $0x540] sm:$0xff]
        %v1091 = vld [vmem:[%s443 + $0x548] sm:$0xff]
        %v1092 = vld [vmem:[%s443 + $0x550] sm:$0xff]
        %v1093 = vld [vmem:[%s443 + $0x558] sm:$0xff]
        %v1094 = vld [vmem:[%s443 + $0x560] sm:$0xff]
        %v1095 = vld [vmem:[%s443 + $0x568] sm:$0xff]
        %v1096 = vld [vmem:[%s443 + $0x570] sm:$0xff]
        %v1097 = vld [vmem:[%s443 + $0x578] sm:$0xff]
        %v1098 = vld [vmem:[%s443 + $0x580] sm:$0xff]
        %v1099 = vld [vmem:[%s443 + $0x588] sm:$0xff]
        %v1100 = vld [vmem:[%s443 + $0x590] sm:$0xff]
        %v1101 = vld [vmem:[%s443 + $0x598] sm:$0xff]
        %v1102 = vld [vmem:[%s443 + $0x5a0] sm:$0xff]
        %v1103 = vld [vmem:[%s443 + $0x5a8] sm:$0xff]
        %v1104 = vld [vmem:[%s443 + $0x5b0] sm:$0xff]
        %v1105 = vld [vmem:[%s443 + $0x5b8] sm:$0xff]
        %v1106 = vld [vmem:[%s443 + $0x5c0] sm:$0xff]
        %v1107 = vld [vmem:[%s443 + $0x5c8] sm:$0xff]
        %v1108 = vld [vmem:[%s443 + $0x5d0] sm:$0xff]
        %v1109 = vld [vmem:[%s443 + $0x5d8] sm:$0xff]
        %v1110 = vld [vmem:[%s443 + $0x5e0] sm:$0xff]
        %v1111 = vld [vmem:[%s443 + $0x5e8] sm:$0xff]
        %v1112 = vld [vmem:[%s443 + $0x5f0] sm:$0xff]
        %v1113 = vld [vmem:[%s443 + $0x5f8] sm:$0xff]
        %v1114 = vld [vmem:[%s443 + $0x600] sm:$0xff]
        %v1115 = vld [vmem:[%s443 + $0x608] sm:$0xff]
        %v1116 = vld [vmem:[%s443 + $0x610] sm:$0xff]
        %v1117 = vld [vmem:[%s443 + $0x618] sm:$0xff]
        %v1118 = vld [vmem:[%s443 + $0x620] sm:$0xff]
        %v1119 = vld [vmem:[%s443 + $0x628] sm:$0xff]
        %v1120 = vld [vmem:[%s443 + $0x630] sm:$0xff]
        %v1121 = vld [vmem:[%s443 + $0x638] sm:$0xff]
        %v1122 = vld [vmem:[%s443 + $0x640] sm:$0xff]
        %v1123 = vld [vmem:[%s443 + $0x648] sm:$0xff]
        %v1124 = vld [vmem:[%s443 + $0x650] sm:$0xff]
        %v1125 = vld [vmem:[%s443 + $0x658] sm:$0xff]
        %v1126 = vld [vmem:[%s443 + $0x660] sm:$0xff]
        %v1127 = vld [vmem:[%s443 + $0x668] sm:$0xff]
        %v1128 = vld [vmem:[%s443 + $0x670] sm:$0xff]
        %v1129 = vld [vmem:[%s443 + $0x678] sm:$0xff]
        %v1130 = vld [vmem:[%s443 + $0x680] sm:$0xff]
        %v1131 = vld [vmem:[%s443 + $0x688] sm:$0xff]
        %v1132 = vld [vmem:[%s443 + $0x690] sm:$0xff]
        %v1133 = vld [vmem:[%s443 + $0x698] sm:$0xff]
        %v1134 = vld [vmem:[%s443 + $0x6a0] sm:$0xff]
        %v1135 = vld [vmem:[%s443 + $0x6a8] sm:$0xff]
        %v1136 = vld [vmem:[%s443 + $0x6b0] sm:$0xff]
        %v1137 = vld [vmem:[%s443 + $0x6b8] sm:$0xff]
        %v1138 = vld [vmem:[%s443 + $0x6c0] sm:$0xff]
        %v1139 = vld [vmem:[%s443 + $0x6c8] sm:$0xff]
        %v1140 = vld [vmem:[%s443 + $0x6d0] sm:$0xff]
        %v1141 = vld [vmem:[%s443 + $0x6d8] sm:$0xff]
        %v1142 = vld [vmem:[%s443 + $0x6e0] sm:$0xff]
        %v1143 = vld [vmem:[%s443 + $0x6e8] sm:$0xff]
        %v1144 = vld [vmem:[%s443 + $0x6f0] sm:$0xff]
        %v1145 = vld [vmem:[%s443 + $0x6f8] sm:$0xff]
        %v1146 = vld [vmem:[%s443 + $0x700] sm:$0xff]
        %v1147 = vld [vmem:[%s443 + $0x708] sm:$0xff]
        %v1148 = vld [vmem:[%s443 + $0x710] sm:$0xff]
        %v1149 = vld [vmem:[%s443 + $0x718] sm:$0xff]
        %v1150 = vld [vmem:[%s443 + $0x720] sm:$0xff]
        %v1151 = vld [vmem:[%s443 + $0x728] sm:$0xff]
        %v1152 = vld [vmem:[%s443 + $0x730] sm:$0xff]
        %v1153 = vld [vmem:[%s443 + $0x738] sm:$0xff]
        %v1154 = vld [vmem:[%s443 + $0x740] sm:$0xff]
        %v1155 = vld [vmem:[%s443 + $0x748] sm:$0xff]
        %v1156 = vld [vmem:[%s443 + $0x750] sm:$0xff]
        %v1157 = vld [vmem:[%s443 + $0x758] sm:$0xff]
        %v1158 = vld [vmem:[%s443 + $0x760] sm:$0xff]
        %v1159 = vld [vmem:[%s443 + $0x768] sm:$0xff]
        %v1160 = vld [vmem:[%s443 + $0x770] sm:$0xff]
        %v1161 = vld [vmem:[%s443 + $0x778] sm:$0xff]
        %v1162 = vld [vmem:[%s443 + $0x780] sm:$0xff]
        %v1163 = vld [vmem:[%s443 + $0x788] sm:$0xff]
        %v1164 = vld [vmem:[%s443 + $0x790] sm:$0xff]
        %v1165 = vld [vmem:[%s443 + $0x798] sm:$0xff]
        %v1166 = vld [vmem:[%s443 + $0x7a0] sm:$0xff]
        %v1167 = vld [vmem:[%s443 + $0x7a8] sm:$0xff]
        %v1168 = vld [vmem:[%s443 + $0x7b0] sm:$0xff]
        %v1169 = vld [vmem:[%s443 + $0x7b8] sm:$0xff]
        %v1170 = vld [vmem:[%s443 + $0x7c0] sm:$0xff]
        %v1171 = vld [vmem:[%s443 + $0x7c8] sm:$0xff]
        %v1172 = vld [vmem:[%s443 + $0x7d0] sm:$0xff]
        %v1173 = vld [vmem:[%s443 + $0x7d8] sm:$0xff]
        %v1174 = vld [vmem:[%s443 + $0x7e0] sm:$0xff]
        %v1175 = vld [vmem:[%s443 + $0x7e8] sm:$0xff]
        %v1176 = vld [vmem:[%s443 + $0x7f0] sm:$0xff]
        %v1177 = vld [vmem:[%s443 + $0x7f8] sm:$0xff]
        %v1178 = vld [vmem:[%s443 + $0x800] sm:$0xff]
        %v1179 = vld [vmem:[%s443 + $0x808] sm:$0xff]
        %v1180 = vld [vmem:[%s443 + $0x810] sm:$0xff]
        %v1181 = vld [vmem:[%s443 + $0x818] sm:$0xff]
        %v1182 = vld [vmem:[%s443 + $0x820] sm:$0xff]
        %v1183 = vld [vmem:[%s443 + $0x828] sm:$0xff]
        %v1184 = vld [vmem:[%s443 + $0x830] sm:$0xff]
        %v1185 = vld [vmem:[%s443 + $0x838] sm:$0xff]
        %v1186 = vld [vmem:[%s443 + $0x840] sm:$0xff]
        %v1187 = vld [vmem:[%s443 + $0x848] sm:$0xff]
        %v1188 = vld [vmem:[%s443 + $0x850] sm:$0xff]
        %v1189 = vld [vmem:[%s443 + $0x858] sm:$0xff]
        %v1190 = vld [vmem:[%s443 + $0x860] sm:$0xff]
        %v1191 = vld [vmem:[%s443 + $0x868] sm:$0xff]
        %v1192 = vld [vmem:[%s443 + $0x870] sm:$0xff]
        %v1193 = vld [vmem:[%s443 + $0x878] sm:$0xff]
        %v1194 = vld [vmem:[%s443 + $0x880] sm:$0xff]
        %v1195 = vld [vmem:[%s443 + $0x888] sm:$0xff]
        %v1196 = vld [vmem:[%s443 + $0x890] sm:$0xff]
        %v1197 = vld [vmem:[%s443 + $0x898] sm:$0xff]
        %v1198 = vld [vmem:[%s443 + $0x8a0] sm:$0xff]
        %v1199 = vld [vmem:[%s443 + $0x8a8] sm:$0xff]
        %v1200 = vld [vmem:[%s443 + $0x8b0] sm:$0xff]
        %v1201 = vld [vmem:[%s443 + $0x8b8] sm:$0xff]
        %v1202 = vld [vmem:[%s443 + $0x8c0] sm:$0xff]
        %v1203 = vld [vmem:[%s443 + $0x8c8] sm:$0xff]
        %v1204 = vld [vmem:[%s443 + $0x8d0] sm:$0xff]
        %v1205 = vld [vmem:[%s443 + $0x8d8] sm:$0xff]
        %v1206 = vld [vmem:[%s443 + $0x8e0] sm:$0xff]
        %v1207 = vld [vmem:[%s443 + $0x8e8] sm:$0xff]
        %v1208 = vld [vmem:[%s443 + $0x8f0] sm:$0xff]
        %v1209 = vld [vmem:[%s443 + $0x8f8] sm:$0xff]
        %v1210 = vld [vmem:[%s443 + $0x900] sm:$0xff]
        %v1211 = vld [vmem:[%s443 + $0x908] sm:$0xff]
        %v1212 = vld [vmem:[%s443 + $0x910] sm:$0xff]
        %v1213 = vld [vmem:[%s443 + $0x918] sm:$0xff]
        %v1214 = vld [vmem:[%s443 + $0x920] sm:$0xff]
        %v1215 = vld [vmem:[%s443 + $0x928] sm:$0xff]
        %v1216 = vld [vmem:[%s443 + $0x930] sm:$0xff]
        %v1217 = vld [vmem:[%s443 + $0x938] sm:$0xff]
        %v1218 = vld [vmem:[%s443 + $0x940] sm:$0xff]
        %v1219 = vld [vmem:[%s443 + $0x948] sm:$0xff]
        %v1220 = vld [vmem:[%s443 + $0x950] sm:$0xff]
        %v1221 = vld [vmem:[%s443 + $0x958] sm:$0xff]
        %v1222 = vld [vmem:[%s443 + $0x960] sm:$0xff]
        %v1223 = vld [vmem:[%s443 + $0x968] sm:$0xff]
        %v1224 = vld [vmem:[%s443 + $0x970] sm:$0xff]
        %v1225 = vld [vmem:[%s443 + $0x978] sm:$0xff]
        %v1226 = vld [vmem:[%s443 + $0x980] sm:$0xff]
        %v1227 = vld [vmem:[%s443 + $0x988] sm:$0xff]
        %v1228 = vld [vmem:[%s443 + $0x990] sm:$0xff]
        %v1229 = vld [vmem:[%s443 + $0x998] sm:$0xff]
        %v1230 = vld [vmem:[%s443 + $0x9a0] sm:$0xff]
        %v1231 = vld [vmem:[%s443 + $0x9a8] sm:$0xff]
        %v1232 = vld [vmem:[%s443 + $0x9b0] sm:$0xff]
        %v1233 = vld [vmem:[%s443 + $0x9b8] sm:$0xff]
        %v1234 = vld [vmem:[%s443 + $0x9c0] sm:$0xff]
        %v1235 = vld [vmem:[%s443 + $0x9c8] sm:$0xff]
        %v1236 = vld [vmem:[%s443 + $0x9d0] sm:$0xff]
        %v1237 = vld [vmem:[%s443 + $0x9d8] sm:$0xff]
        %v1238 = vld [vmem:[%s443 + $0x9e0] sm:$0xff]
        %v1239 = vld [vmem:[%s443 + $0x9e8] sm:$0xff]
        %v1240 = vld [vmem:[%s443 + $0x9f0] sm:$0xff]
        %v1241 = vld [vmem:[%s443 + $0x9f8] sm:$0xff]
        %v1242 = vld [vmem:[%s443 + $0xa00] sm:$0xff]
        %v1243 = vld [vmem:[%s443 + $0xa08] sm:$0xff]
        %v1244 = vld [vmem:[%s443 + $0xa10] sm:$0xff]
        %v1245 = vld [vmem:[%s443 + $0xa18] sm:$0xff]
        %v1246 = vld [vmem:[%s443 + $0xa20] sm:$0xff]
        %v1247 = vld [vmem:[%s443 + $0xa28] sm:$0xff]
        %v1248 = vld [vmem:[%s443 + $0xa30] sm:$0xff]
        %v1249 = vld [vmem:[%s443 + $0xa38] sm:$0xff]
        %v1250 = vld [vmem:[%s443 + $0xa40] sm:$0xff]
        %v1251 = vld [vmem:[%s443 + $0xa48] sm:$0xff]
        %v1252 = vld [vmem:[%s443 + $0xa50] sm:$0xff]
        %v1253 = vld [vmem:[%s443 + $0xa58] sm:$0xff]
        %v1254 = vld [vmem:[%s443 + $0xa60] sm:$0xff]
        %v1255 = vld [vmem:[%s443 + $0xa68] sm:$0xff]
        %v1256 = vld [vmem:[%s443 + $0xa70] sm:$0xff]
        %v1257 = vld [vmem:[%s443 + $0xa78] sm:$0xff]
        %v1258 = vld [vmem:[%s443 + $0xa80] sm:$0xff]
        %v1259 = vld [vmem:[%s443 + $0xa88] sm:$0xff]
        %v1260 = vld [vmem:[%s443 + $0xa90] sm:$0xff]
        %v1261 = vld [vmem:[%s443 + $0xa98] sm:$0xff]
        %v1262 = vld [vmem:[%s443 + $0xaa0] sm:$0xff]
        %v1263 = vld [vmem:[%s443 + $0xaa8] sm:$0xff]
        %v1264 = vld [vmem:[%s443 + $0xab0] sm:$0xff]
        %v1265 = vld [vmem:[%s443 + $0xab8] sm:$0xff]
        %v1266 = vld [vmem:[%s443 + $0xac0] sm:$0xff]
        %v1267 = vld [vmem:[%s443 + $0xac8] sm:$0xff]
        %v1268 = vld [vmem:[%s443 + $0xad0] sm:$0xff]
        %v1269 = vld [vmem:[%s443 + $0xad8] sm:$0xff]
        %v1270 = vld [vmem:[%s443 + $0xae0] sm:$0xff]
        %v1271 = vld [vmem:[%s443 + $0xae8] sm:$0xff]
        %v1272 = vld [vmem:[%s443 + $0xaf0] sm:$0xff]
        %v1273 = vld [vmem:[%s443 + $0xaf8] sm:$0xff]
        %v1274 = vld [vmem:[%s443 + $0xb00] sm:$0xff]
        %v1275 = vld [vmem:[%s443 + $0xb08] sm:$0xff]
        %v1276 = vld [vmem:[%s443 + $0xb10] sm:$0xff]
        %v1277 = vld [vmem:[%s443 + $0xb18] sm:$0xff]
        %v1278 = vld [vmem:[%s443 + $0xb20] sm:$0xff]
        %v1279 = vld [vmem:[%s443 + $0xb28] sm:$0xff]
        %v1280 = vld [vmem:[%s443 + $0xb30] sm:$0xff]
        %v1281 = vld [vmem:[%s443 + $0xb38] sm:$0xff]
        %v1282 = vld [vmem:[%s443 + $0xb40] sm:$0xff]
        %v1283 = vld [vmem:[%s443 + $0xb48] sm:$0xff]
        %v1284 = vld [vmem:[%s443 + $0xb50] sm:$0xff]
        %v1285 = vld [vmem:[%s443 + $0xb58] sm:$0xff]
        %v1286 = vld [vmem:[%s443 + $0xb60] sm:$0xff]
        %v1287 = vld [vmem:[%s443 + $0xb68] sm:$0xff]
        %v1288 = vld [vmem:[%s443 + $0xb70] sm:$0xff]
        %v1289 = vld [vmem:[%s443 + $0xb78] sm:$0xff]
        %v1290 = vld [vmem:[%s443 + $0xb80] sm:$0xff]
        %v1291 = vld [vmem:[%s443 + $0xb88] sm:$0xff]
        %v1292 = vld [vmem:[%s443 + $0xb90] sm:$0xff]
        %v1293 = vld [vmem:[%s443 + $0xb98] sm:$0xff]
        %v1294 = vld [vmem:[%s443 + $0xba0] sm:$0xff]
        %v1295 = vld [vmem:[%s443 + $0xba8] sm:$0xff]
        %v1296 = vld [vmem:[%s443 + $0xbb0] sm:$0xff]
        %v1297 = vld [vmem:[%s443 + $0xbb8] sm:$0xff]
        %v1298 = vld [vmem:[%s443 + $0xbc0] sm:$0xff]
        %v1299 = vld [vmem:[%s443 + $0xbc8] sm:$0xff]
        %v1300 = vld [vmem:[%s443 + $0xbd0] sm:$0xff]
        %v1301 = vld [vmem:[%s443 + $0xbd8] sm:$0xff]
        %v1302 = vld [vmem:[%s443 + $0xbe0] sm:$0xff]
        %v1303 = vld [vmem:[%s443 + $0xbe8] sm:$0xff]
        %v1304 = vld [vmem:[%s443 + $0xbf0] sm:$0xff]
        %v1305 = vld [vmem:[%s443 + $0xbf8] sm:$0xff]
        %v1306 = vld [vmem:[%s443 + $0xc00] sm:$0xff]
        %v1307 = vld [vmem:[%s443 + $0xc08] sm:$0xff]
        %v1308 = vld [vmem:[%s443 + $0xc10] sm:$0xff]
        %v1309 = vld [vmem:[%s443 + $0xc18] sm:$0xff]
        %v1310 = vld [vmem:[%s443 + $0xc20] sm:$0xff]
        %v1311 = vld [vmem:[%s443 + $0xc28] sm:$0xff]
        %v1312 = vld [vmem:[%s443 + $0xc30] sm:$0xff]
        %v1313 = vld [vmem:[%s443 + $0xc38] sm:$0xff]
        %v1314 = vld [vmem:[%s443 + $0xc40] sm:$0xff]
        %v1315 = vld [vmem:[%s443 + $0xc48] sm:$0xff]
        %v1316 = vld [vmem:[%s443 + $0xc50] sm:$0xff]
        %v1317 = vld [vmem:[%s443 + $0xc58] sm:$0xff]
        %v1318 = vld [vmem:[%s443 + $0xc60] sm:$0xff]
        %v1319 = vld [vmem:[%s443 + $0xc68] sm:$0xff]
        %v1320 = vld [vmem:[%s443 + $0xc70] sm:$0xff]
        %v1321 = vld [vmem:[%s443 + $0xc78] sm:$0xff]
        %v1322 = vld [vmem:[%s443 + $0xc80] sm:$0xff]
        %v1323 = vld [vmem:[%s443 + $0xc88] sm:$0xff]
        %v1324 = vld [vmem:[%s443 + $0xc90] sm:$0xff]
        %v1325 = vld [vmem:[%s443 + $0xc98] sm:$0xff]
        %v1326 = vld [vmem:[%s443 + $0xca0] sm:$0xff]
        %v1327 = vld [vmem:[%s443 + $0xca8] sm:$0xff]
        %v1328 = vld [vmem:[%s443 + $0xcb0] sm:$0xff]
        %v1329 = vld [vmem:[%s443 + $0xcb8] sm:$0xff]
        %v1330 = vld [vmem:[%s443 + $0xcc0] sm:$0xff]
        %v1331 = vld [vmem:[%s443 + $0xcc8] sm:$0xff]
        %v1332 = vld [vmem:[%s443 + $0xcd0] sm:$0xff]
        %v1333 = vld [vmem:[%s443 + $0xcd8] sm:$0xff]
        %v1334 = vld [vmem:[%s443 + $0xce0] sm:$0xff]
        %v1335 = vld [vmem:[%s443 + $0xce8] sm:$0xff]
        %v1336 = vld [vmem:[%s443 + $0xcf0] sm:$0xff]
        %v1337 = vld [vmem:[%s443 + $0xcf8] sm:$0xff]
        %v1338 = vld [vmem:[%s443 + $0xd00] sm:$0xff]
        %v1339 = vld [vmem:[%s443 + $0xd08] sm:$0xff]
        %v1340 = vld [vmem:[%s443 + $0xd10] sm:$0xff]
        %v1341 = vld [vmem:[%s443 + $0xd18] sm:$0xff]
        %v1342 = vld [vmem:[%s443 + $0xd20] sm:$0xff]
        %v1343 = vld [vmem:[%s443 + $0xd28] sm:$0xff]
        %v1344 = vld [vmem:[%s443 + $0xd30] sm:$0xff]
        %v1345 = vld [vmem:[%s443 + $0xd38] sm:$0xff]
        %v1346 = vld [vmem:[%s443 + $0xd40] sm:$0xff]
        %v1347 = vld [vmem:[%s443 + $0xd48] sm:$0xff]
        %v1348 = vld [vmem:[%s443 + $0xd50] sm:$0xff]
        %v1349 = vld [vmem:[%s443 + $0xd58] sm:$0xff]
        %v1350 = vld [vmem:[%s443 + $0xd60] sm:$0xff]
        %v1351 = vld [vmem:[%s443 + $0xd68] sm:$0xff]
        %v1352 = vld [vmem:[%s443 + $0xd70] sm:$0xff]
        %v1353 = vld [vmem:[%s443 + $0xd78] sm:$0xff]
        %v1354 = vld [vmem:[%s443 + $0xd80] sm:$0xff]
        %v1355 = vld [vmem:[%s443 + $0xd88] sm:$0xff]
        %v1356 = vld [vmem:[%s443 + $0xd90] sm:$0xff]
        %v1357 = vld [vmem:[%s443 + $0xd98] sm:$0xff]
        %v1358 = vld [vmem:[%s443 + $0xda0] sm:$0xff]
        %v1359 = vld [vmem:[%s443 + $0xda8] sm:$0xff]
        %v1360 = vld [vmem:[%s443 + $0xdb0] sm:$0xff]
        %v1361 = vld [vmem:[%s443 + $0xdb8] sm:$0xff]
        %v1362 = vld [vmem:[%s443 + $0xdc0] sm:$0xff]
        %v1363 = vld [vmem:[%s443 + $0xdc8] sm:$0xff]
        %v1364 = vld [vmem:[%s443 + $0xdd0] sm:$0xff]
        %v1365 = vld [vmem:[%s443 + $0xdd8] sm:$0xff]
        %v1366 = vld [vmem:[%s443 + $0xde0] sm:$0xff]
        %v1367 = vld [vmem:[%s443 + $0xde8] sm:$0xff]
        %v1368 = vld [vmem:[%s443 + $0xdf0] sm:$0xff]
        %v1369 = vld [vmem:[%s443 + $0xdf8] sm:$0xff]
        %v1370 = vld [vmem:[%s443 + $0xe00] sm:$0xff]
        %v1371 = vld [vmem:[%s443 + $0xe08] sm:$0xff]
        %v1372 = vld [vmem:[%s443 + $0xe10] sm:$0xff]
        %v1373 = vld [vmem:[%s443 + $0xe18] sm:$0xff]
        %v1374 = vld [vmem:[%s443 + $0xe20] sm:$0xff]
        %v1375 = vld [vmem:[%s443 + $0xe28] sm:$0xff]
        %v1376 = vld [vmem:[%s443 + $0xe30] sm:$0xff]
        %v1377 = vld [vmem:[%s443 + $0xe38] sm:$0xff]
        %v1378 = vld [vmem:[%s443 + $0xe40] sm:$0xff]
        %v1379 = vld [vmem:[%s443 + $0xe48] sm:$0xff]
        %v1380 = vld [vmem:[%s443 + $0xe50] sm:$0xff]
        %v1381 = vld [vmem:[%s443 + $0xe58] sm:$0xff]
        %v1382 = vld [vmem:[%s443 + $0xe60] sm:$0xff]
        %v1383 = vld [vmem:[%s443 + $0xe68] sm:$0xff]
        %v1384 = vld [vmem:[%s443 + $0xe70] sm:$0xff]
        %v1385 = vld [vmem:[%s443 + $0xe78] sm:$0xff]
        %v1386 = vld [vmem:[%s443 + $0xe80] sm:$0xff]
        %v1387 = vld [vmem:[%s443 + $0xe88] sm:$0xff]
        %v1388 = vld [vmem:[%s443 + $0xe90] sm:$0xff]
        %v1389 = vld [vmem:[%s443 + $0xe98] sm:$0xff]
        %v1390 = vld [vmem:[%s443 + $0xea0] sm:$0xff]
        %v1391 = vld [vmem:[%s443 + $0xea8] sm:$0xff]
        %v1392 = vld [vmem:[%s443 + $0xeb0] sm:$0xff]
        %v1393 = vld [vmem:[%s443 + $0xeb8] sm:$0xff]
        %v1394 = vld [vmem:[%s443 + $0xec0] sm:$0xff]
        %v1395 = vld [vmem:[%s443 + $0xec8] sm:$0xff]
        %v1396 = vld [vmem:[%s443 + $0xed0] sm:$0xff]
        %v1397 = vld [vmem:[%s443 + $0xed8] sm:$0xff]
        %v1398 = vld [vmem:[%s443 + $0xee0] sm:$0xff]
        %v1399 = vld [vmem:[%s443 + $0xee8] sm:$0xff]
        %v1400 = vld [vmem:[%s443 + $0xef0] sm:$0xff]
        %v1401 = vld [vmem:[%s443 + $0xef8] sm:$0xff]
        %v1402 = vld [vmem:[%s443 + $0xf00] sm:$0xff]
        %v1403 = vld [vmem:[%s443 + $0xf08] sm:$0xff]
        %v1404 = vld [vmem:[%s443 + $0xf10] sm:$0xff]
        %v1405 = vld [vmem:[%s443 + $0xf18] sm:$0xff]
        %v1406 = vld [vmem:[%s443 + $0xf20] sm:$0xff]
        %v1407 = vld [vmem:[%s443 + $0xf28] sm:$0xff]
        %v1408 = vld [vmem:[%s443 + $0xf30] sm:$0xff]
        %v1409 = vld [vmem:[%s443 + $0xf38] sm:$0xff]
        %v1410 = vld [vmem:[%s443 + $0xf40] sm:$0xff]
        %v1411 = vld [vmem:[%s443 + $0xf48] sm:$0xff]
        %v1412 = vld [vmem:[%s443 + $0xf50] sm:$0xff]
        %v1413 = vld [vmem:[%s443 + $0xf58] sm:$0xff]
        %v1414 = vld [vmem:[%s443 + $0xf60] sm:$0xff]
        %v1415 = vld [vmem:[%s443 + $0xf68] sm:$0xff]
        %v1416 = vld [vmem:[%s443 + $0xf70] sm:$0xff]
        %v1417 = vld [vmem:[%s443 + $0xf78] sm:$0xff]
        %v1418 = vld [vmem:[%s443 + $0xf80] sm:$0xff]
        %v1419 = vld [vmem:[%s443 + $0xf88] sm:$0xff]
        %v1420 = vld [vmem:[%s443 + $0xf90] sm:$0xff]
        %v1421 = vld [vmem:[%s443 + $0xf98] sm:$0xff]
        %v1422 = vld [vmem:[%s443 + $0xfa0] sm:$0xff]
        %v1423 = vld [vmem:[%s443 + $0xfa8] sm:$0xff]
        %v1424 = vld [vmem:[%s443 + $0xfb0] sm:$0xff]
        %v1425 = vld [vmem:[%s443 + $0xfb8] sm:$0xff]
        %v1426 = vld [vmem:[%s443 + $0xfc0] sm:$0xff]
        %v1427 = vld [vmem:[%s443 + $0xfc8] sm:$0xff]
        %v1428 = vld [vmem:[%s443 + $0xfd0] sm:$0xff]
        %v1429 = vld [vmem:[%s443 + $0xfd8] sm:$0xff]
        %v1430 = vld [vmem:[%s443 + $0xfe0] sm:$0xff]
        %v1431 = vld [vmem:[%s443 + $0xfe8] sm:$0xff]
        %v1432 = vld [vmem:[%s443 + $0xff0] sm:$0xff]
        %v1433 = vld [vmem:[%s443 + $0xff8] sm:$0xff]
        %v1434 = vld [vmem:[%s453] sm:$0xff]
        %v1435 = vld [vmem:[%s453 + $0x8] sm:$0xff]
        %v1438 = vperm.slane %v1434, 0
        %v1439 = vperm.slane %v1434, 1
        %v1440 = vperm.slane %v1434, 2
        %v1441 = vperm.slane %v1434, 3
        %v1442 = vperm.slane %v1434, 4
        %v1443 = vperm.slane %v1434, 5
        %v1444 = vperm.slane %v1434, 6
        %v1445 = vperm.slane %v1434, 7
        %v1446 = vperm.slane %v1435, 0
        %v1447 = vperm.slane %v1435, 1
        %v1448 = vperm.slane %v1435, 2
        %v1449 = vperm.slane %v1435, 3
        %v1450 = vperm.slane %v1435, 4
        %v1451 = vperm.slane %v1435, 5
        %v1452 = vperm.slane %v1435, 6
        %v1453 = vperm.slane %v1435, 7
        %v1982 = vunpack.c.l.b16 %v922
        %v1983 = vunpack.c.h.b16 %v922
        %v1984 = vunpack.c.l.b16 %v923
        %v1985 = vunpack.c.h.b16 %v923
        %v1986 = vunpack.c.l.b16 %v924
        %v1987 = vunpack.c.h.b16 %v924
        %v1988 = vunpack.c.l.b16 %v925
        %v1989 = vunpack.c.h.b16 %v925
        %v1990 = vunpack.c.l.b16 %v926
        %v1991 = vunpack.c.h.b16 %v926
        %v1992 = vunpack.c.l.b16 %v927
        %v1993 = vunpack.c.h.b16 %v927
        %v1994 = vunpack.c.l.b16 %v928
        %v1995 = vunpack.c.h.b16 %v928
        %v1996 = vunpack.c.l.b16 %v929
        %v1997 = vunpack.c.h.b16 %v929
        %v1998 = vunpack.c.l.b16 %v930
        %v1999 = vunpack.c.h.b16 %v930
        %v2000 = vunpack.c.l.b16 %v931
        %v2001 = vunpack.c.h.b16 %v931
        %v2002 = vunpack.c.l.b16 %v932
        %v2003 = vunpack.c.h.b16 %v932
        %v2004 = vunpack.c.l.b16 %v933
        %v2005 = vunpack.c.h.b16 %v933
        %v2006 = vunpack.c.l.b16 %v934
        %v2007 = vunpack.c.h.b16 %v934
        %v2008 = vunpack.c.l.b16 %v935
        %v2009 = vunpack.c.h.b16 %v935
        %v2010 = vunpack.c.l.b16 %v936
        %v2011 = vunpack.c.h.b16 %v936
        %v2012 = vunpack.c.l.b16 %v937
        %v2013 = vunpack.c.h.b16 %v937
        %v2014 = vunpack.c.l.b16 %v938
        %v2015 = vunpack.c.h.b16 %v938
        %v2016 = vunpack.c.l.b16 %v939
        %v2017 = vunpack.c.h.b16 %v939
        %v2018 = vunpack.c.l.b16 %v940
        %v2019 = vunpack.c.h.b16 %v940
        %v2020 = vunpack.c.l.b16 %v941
        %v2021 = vunpack.c.h.b16 %v941
        %v2022 = vunpack.c.l.b16 %v942
        %v2023 = vunpack.c.h.b16 %v942
        %v2024 = vunpack.c.l.b16 %v943
        %v2025 = vunpack.c.h.b16 %v943
        %v2026 = vunpack.c.l.b16 %v944
        %v2027 = vunpack.c.h.b16 %v944
        %v2028 = vunpack.c.l.b16 %v945
        %v2029 = vunpack.c.h.b16 %v945
        %v2030 = vunpack.c.l.b16 %v946
        %v2031 = vunpack.c.h.b16 %v946
        %v2032 = vunpack.c.l.b16 %v947
        %v2033 = vunpack.c.h.b16 %v947
        %v2034 = vunpack.c.l.b16 %v948
        %v2035 = vunpack.c.h.b16 %v948
        %v2036 = vunpack.c.l.b16 %v949
        %v2037 = vunpack.c.h.b16 %v949
        %v2038 = vunpack.c.l.b16 %v950
        %v2039 = vunpack.c.h.b16 %v950
        %v2040 = vunpack.c.l.b16 %v951
        %v2041 = vunpack.c.h.b16 %v951
        %v2042 = vunpack.c.l.b16 %v952
        %v2043 = vunpack.c.h.b16 %v952
        %v2044 = vunpack.c.l.b16 %v953
        %v2045 = vunpack.c.h.b16 %v953
        %v2046 = vunpack.c.l.b16 %v954
        %v2047 = vunpack.c.h.b16 %v954
        %v2048 = vunpack.c.l.b16 %v955
        %v2049 = vunpack.c.h.b16 %v955
        %v2050 = vunpack.c.l.b16 %v956
        %v2051 = vunpack.c.h.b16 %v956
        %v2052 = vunpack.c.l.b16 %v957
        %v2053 = vunpack.c.h.b16 %v957
        %v2054 = vunpack.c.l.b16 %v958
        %v2055 = vunpack.c.h.b16 %v958
        %v2056 = vunpack.c.l.b16 %v959
        %v2057 = vunpack.c.h.b16 %v959
        %v2058 = vunpack.c.l.b16 %v960
        %v2059 = vunpack.c.h.b16 %v960
        %v2060 = vunpack.c.l.b16 %v961
        %v2061 = vunpack.c.h.b16 %v961
        %v2062 = vunpack.c.l.b16 %v962
        %v2063 = vunpack.c.h.b16 %v962
        %v2064 = vunpack.c.l.b16 %v963
        %v2065 = vunpack.c.h.b16 %v963
        %v2066 = vunpack.c.l.b16 %v964
        %v2067 = vunpack.c.h.b16 %v964
        %v2068 = vunpack.c.l.b16 %v965
        %v2069 = vunpack.c.h.b16 %v965
        %v2070 = vunpack.c.l.b16 %v966
        %v2071 = vunpack.c.h.b16 %v966
        %v2072 = vunpack.c.l.b16 %v967
        %v2073 = vunpack.c.h.b16 %v967
        %v2074 = vunpack.c.l.b16 %v968
        %v2075 = vunpack.c.h.b16 %v968
        %v2076 = vunpack.c.l.b16 %v969
        %v2077 = vunpack.c.h.b16 %v969
        %v2078 = vunpack.c.l.b16 %v970
        %v2079 = vunpack.c.h.b16 %v970
        %v2080 = vunpack.c.l.b16 %v971
        %v2081 = vunpack.c.h.b16 %v971
        %v2082 = vunpack.c.l.b16 %v972
        %v2083 = vunpack.c.h.b16 %v972
        %v2084 = vunpack.c.l.b16 %v973
        %v2085 = vunpack.c.h.b16 %v973
        %v2086 = vunpack.c.l.b16 %v974
        %v2087 = vunpack.c.h.b16 %v974
        %v2088 = vunpack.c.l.b16 %v975
        %v2089 = vunpack.c.h.b16 %v975
        %v2090 = vunpack.c.l.b16 %v976
        %v2091 = vunpack.c.h.b16 %v976
        %v2092 = vunpack.c.l.b16 %v977
        %v2093 = vunpack.c.h.b16 %v977
        %v2094 = vunpack.c.l.b16 %v978
        %v2095 = vunpack.c.h.b16 %v978
        %v2096 = vunpack.c.l.b16 %v979
        %v2097 = vunpack.c.h.b16 %v979
        %v2098 = vunpack.c.l.b16 %v980
        %v2099 = vunpack.c.h.b16 %v980
        %v2100 = vunpack.c.l.b16 %v981
        %v2101 = vunpack.c.h.b16 %v981
        %v2102 = vunpack.c.l.b16 %v982
        %v2103 = vunpack.c.h.b16 %v982
        %v2104 = vunpack.c.l.b16 %v983
        %v2105 = vunpack.c.h.b16 %v983
        %v2106 = vunpack.c.l.b16 %v984
        %v2107 = vunpack.c.h.b16 %v984
        %v2108 = vunpack.c.l.b16 %v985
        %v2109 = vunpack.c.h.b16 %v985
        %v2110 = vunpack.c.l.b16 %v986
        %v2111 = vunpack.c.h.b16 %v986
        %v2112 = vunpack.c.l.b16 %v987
        %v2113 = vunpack.c.h.b16 %v987
        %v2114 = vunpack.c.l.b16 %v988
        %v2115 = vunpack.c.h.b16 %v988
        %v2116 = vunpack.c.l.b16 %v989
        %v2117 = vunpack.c.h.b16 %v989
        %v2118 = vunpack.c.l.b16 %v990
        %v2119 = vunpack.c.h.b16 %v990
        %v2120 = vunpack.c.l.b16 %v991
        %v2121 = vunpack.c.h.b16 %v991
        %v2122 = vunpack.c.l.b16 %v992
        %v2123 = vunpack.c.h.b16 %v992
        %v2124 = vunpack.c.l.b16 %v993
        %v2125 = vunpack.c.h.b16 %v993
        %v2126 = vunpack.c.l.b16 %v994
        %v2127 = vunpack.c.h.b16 %v994
        %v2128 = vunpack.c.l.b16 %v995
        %v2129 = vunpack.c.h.b16 %v995
        %v2130 = vunpack.c.l.b16 %v996
        %v2131 = vunpack.c.h.b16 %v996
        %v2132 = vunpack.c.l.b16 %v997
        %v2133 = vunpack.c.h.b16 %v997
        %v2134 = vunpack.c.l.b16 %v998
        %v2135 = vunpack.c.h.b16 %v998
        %v2136 = vunpack.c.l.b16 %v999
        %v2137 = vunpack.c.h.b16 %v999
        %v2138 = vunpack.c.l.b16 %v1000
        %v2139 = vunpack.c.h.b16 %v1000
        %v2140 = vunpack.c.l.b16 %v1001
        %v2141 = vunpack.c.h.b16 %v1001
        %v2142 = vunpack.c.l.b16 %v1002
        %v2143 = vunpack.c.h.b16 %v1002
        %v2144 = vunpack.c.l.b16 %v1003
        %v2145 = vunpack.c.h.b16 %v1003
        %v2146 = vunpack.c.l.b16 %v1004
        %v2147 = vunpack.c.h.b16 %v1004
        %v2148 = vunpack.c.l.b16 %v1005
        %v2149 = vunpack.c.h.b16 %v1005
        %v2150 = vunpack.c.l.b16 %v1006
        %v2151 = vunpack.c.h.b16 %v1006
        %v2152 = vunpack.c.l.b16 %v1007
        %v2153 = vunpack.c.h.b16 %v1007
        %v2154 = vunpack.c.l.b16 %v1008
        %v2155 = vunpack.c.h.b16 %v1008
        %v2156 = vunpack.c.l.b16 %v1009
        %v2157 = vunpack.c.h.b16 %v1009
        %v2158 = vunpack.c.l.b16 %v1010
        %v2159 = vunpack.c.h.b16 %v1010
        %v2160 = vunpack.c.l.b16 %v1011
        %v2161 = vunpack.c.h.b16 %v1011
        %v2162 = vunpack.c.l.b16 %v1012
        %v2163 = vunpack.c.h.b16 %v1012
        %v2164 = vunpack.c.l.b16 %v1013
        %v2165 = vunpack.c.h.b16 %v1013
        %v2166 = vunpack.c.l.b16 %v1014
        %v2167 = vunpack.c.h.b16 %v1014
        %v2168 = vunpack.c.l.b16 %v1015
        %v2169 = vunpack.c.h.b16 %v1015
        %v2170 = vunpack.c.l.b16 %v1016
        %v2171 = vunpack.c.h.b16 %v1016
        %v2172 = vunpack.c.l.b16 %v1017
        %v2173 = vunpack.c.h.b16 %v1017
        %v2174 = vunpack.c.l.b16 %v1018
        %v2175 = vunpack.c.h.b16 %v1018
        %v2176 = vunpack.c.l.b16 %v1019
        %v2177 = vunpack.c.h.b16 %v1019
        %v2178 = vunpack.c.l.b16 %v1020
        %v2179 = vunpack.c.h.b16 %v1020
        %v2180 = vunpack.c.l.b16 %v1021
        %v2181 = vunpack.c.h.b16 %v1021
        %v2182 = vunpack.c.l.b16 %v1022
        %v2183 = vunpack.c.h.b16 %v1022
        %v2184 = vunpack.c.l.b16 %v1023
        %v2185 = vunpack.c.h.b16 %v1023
        %v2186 = vunpack.c.l.b16 %v1024
        %v2187 = vunpack.c.h.b16 %v1024
        %v2188 = vunpack.c.l.b16 %v1025
        %v2189 = vunpack.c.h.b16 %v1025
        %v2190 = vunpack.c.l.b16 %v1026
        %v2191 = vunpack.c.h.b16 %v1026
        %v2192 = vunpack.c.l.b16 %v1027
        %v2193 = vunpack.c.h.b16 %v1027
        %v2194 = vunpack.c.l.b16 %v1028
        %v2195 = vunpack.c.h.b16 %v1028
        %v2196 = vunpack.c.l.b16 %v1029
        %v2197 = vunpack.c.h.b16 %v1029
        %v2198 = vunpack.c.l.b16 %v1030
        %v2199 = vunpack.c.h.b16 %v1030
        %v2200 = vunpack.c.l.b16 %v1031
        %v2201 = vunpack.c.h.b16 %v1031
        %v2202 = vunpack.c.l.b16 %v1032
        %v2203 = vunpack.c.h.b16 %v1032
        %v2204 = vunpack.c.l.b16 %v1033
        %v2205 = vunpack.c.h.b16 %v1033
        %v2206 = vunpack.c.l.b16 %v1034
        %v2207 = vunpack.c.h.b16 %v1034
        %v2208 = vunpack.c.l.b16 %v1035
        %v2209 = vunpack.c.h.b16 %v1035
        %v2210 = vunpack.c.l.b16 %v1036
        %v2211 = vunpack.c.h.b16 %v1036
        %v2212 = vunpack.c.l.b16 %v1037
        %v2213 = vunpack.c.h.b16 %v1037
        %v2214 = vunpack.c.l.b16 %v1038
        %v2215 = vunpack.c.h.b16 %v1038
        %v2216 = vunpack.c.l.b16 %v1039
        %v2217 = vunpack.c.h.b16 %v1039
        %v2218 = vunpack.c.l.b16 %v1040
        %v2219 = vunpack.c.h.b16 %v1040
        %v2220 = vunpack.c.l.b16 %v1041
        %v2221 = vunpack.c.h.b16 %v1041
        %v2222 = vunpack.c.l.b16 %v1042
        %v2223 = vunpack.c.h.b16 %v1042
        %v2224 = vunpack.c.l.b16 %v1043
        %v2225 = vunpack.c.h.b16 %v1043
        %v2226 = vunpack.c.l.b16 %v1044
        %v2227 = vunpack.c.h.b16 %v1044
        %v2228 = vunpack.c.l.b16 %v1045
        %v2229 = vunpack.c.h.b16 %v1045
        %v2230 = vunpack.c.l.b16 %v1046
        %v2231 = vunpack.c.h.b16 %v1046
        %v2232 = vunpack.c.l.b16 %v1047
        %v2233 = vunpack.c.h.b16 %v1047
        %v2234 = vunpack.c.l.b16 %v1048
        %v2235 = vunpack.c.h.b16 %v1048
        %v2236 = vunpack.c.l.b16 %v1049
        %v2237 = vunpack.c.h.b16 %v1049
        %v2238 = vunpack.c.l.b16 %v1050
        %v2239 = vunpack.c.h.b16 %v1050
        %v2240 = vunpack.c.l.b16 %v1051
        %v2241 = vunpack.c.h.b16 %v1051
        %v2242 = vunpack.c.l.b16 %v1052
        %v2243 = vunpack.c.h.b16 %v1052
        %v2244 = vunpack.c.l.b16 %v1053
        %v2245 = vunpack.c.h.b16 %v1053
        %v2246 = vunpack.c.l.b16 %v1054
        %v2247 = vunpack.c.h.b16 %v1054
        %v2248 = vunpack.c.l.b16 %v1055
        %v2249 = vunpack.c.h.b16 %v1055
        %v2250 = vunpack.c.l.b16 %v1056
        %v2251 = vunpack.c.h.b16 %v1056
        %v2252 = vunpack.c.l.b16 %v1057
        %v2253 = vunpack.c.h.b16 %v1057
        %v2254 = vunpack.c.l.b16 %v1058
        %v2255 = vunpack.c.h.b16 %v1058
        %v2256 = vunpack.c.l.b16 %v1059
        %v2257 = vunpack.c.h.b16 %v1059
        %v2258 = vunpack.c.l.b16 %v1060
        %v2259 = vunpack.c.h.b16 %v1060
        %v2260 = vunpack.c.l.b16 %v1061
        %v2261 = vunpack.c.h.b16 %v1061
        %v2262 = vunpack.c.l.b16 %v1062
        %v2263 = vunpack.c.h.b16 %v1062
        %v2264 = vunpack.c.l.b16 %v1063
        %v2265 = vunpack.c.h.b16 %v1063
        %v2266 = vunpack.c.l.b16 %v1064
        %v2267 = vunpack.c.h.b16 %v1064
        %v2268 = vunpack.c.l.b16 %v1065
        %v2269 = vunpack.c.h.b16 %v1065
        %v2270 = vunpack.c.l.b16 %v1066
        %v2271 = vunpack.c.h.b16 %v1066
        %v2272 = vunpack.c.l.b16 %v1067
        %v2273 = vunpack.c.h.b16 %v1067
        %v2274 = vunpack.c.l.b16 %v1068
        %v2275 = vunpack.c.h.b16 %v1068
        %v2276 = vunpack.c.l.b16 %v1069
        %v2277 = vunpack.c.h.b16 %v1069
        %v2278 = vunpack.c.l.b16 %v1070
        %v2279 = vunpack.c.h.b16 %v1070
        %v2280 = vunpack.c.l.b16 %v1071
        %v2281 = vunpack.c.h.b16 %v1071
        %v2282 = vunpack.c.l.b16 %v1072
        %v2283 = vunpack.c.h.b16 %v1072
        %v2284 = vunpack.c.l.b16 %v1073
        %v2285 = vunpack.c.h.b16 %v1073
        %v2286 = vunpack.c.l.b16 %v1074
        %v2287 = vunpack.c.h.b16 %v1074
        %v2288 = vunpack.c.l.b16 %v1075
        %v2289 = vunpack.c.h.b16 %v1075
        %v2290 = vunpack.c.l.b16 %v1076
        %v2291 = vunpack.c.h.b16 %v1076
        %v2292 = vunpack.c.l.b16 %v1077
        %v2293 = vunpack.c.h.b16 %v1077
        %v2294 = vunpack.c.l.b16 %v1078
        %v2295 = vunpack.c.h.b16 %v1078
        %v2296 = vunpack.c.l.b16 %v1079
        %v2297 = vunpack.c.h.b16 %v1079
        %v2298 = vunpack.c.l.b16 %v1080
        %v2299 = vunpack.c.h.b16 %v1080
        %v2300 = vunpack.c.l.b16 %v1081
        %v2301 = vunpack.c.h.b16 %v1081
        %v2302 = vunpack.c.l.b16 %v1082
        %v2303 = vunpack.c.h.b16 %v1082
        %v2304 = vunpack.c.l.b16 %v1083
        %v2305 = vunpack.c.h.b16 %v1083
        %v2306 = vunpack.c.l.b16 %v1084
        %v2307 = vunpack.c.h.b16 %v1084
        %v2308 = vunpack.c.l.b16 %v1085
        %v2309 = vunpack.c.h.b16 %v1085
        %v2310 = vunpack.c.l.b16 %v1086
        %v2311 = vunpack.c.h.b16 %v1086
        %v2312 = vunpack.c.l.b16 %v1087
        %v2313 = vunpack.c.h.b16 %v1087
        %v2314 = vunpack.c.l.b16 %v1088
        %v2315 = vunpack.c.h.b16 %v1088
        %v2316 = vunpack.c.l.b16 %v1089
        %v2317 = vunpack.c.h.b16 %v1089
        %v2318 = vunpack.c.l.b16 %v1090
        %v2319 = vunpack.c.h.b16 %v1090
        %v2320 = vunpack.c.l.b16 %v1091
        %v2321 = vunpack.c.h.b16 %v1091
        %v2322 = vunpack.c.l.b16 %v1092
        %v2323 = vunpack.c.h.b16 %v1092
        %v2324 = vunpack.c.l.b16 %v1093
        %v2325 = vunpack.c.h.b16 %v1093
        %v2326 = vunpack.c.l.b16 %v1094
        %v2327 = vunpack.c.h.b16 %v1094
        %v2328 = vunpack.c.l.b16 %v1095
        %v2329 = vunpack.c.h.b16 %v1095
        %v2330 = vunpack.c.l.b16 %v1096
        %v2331 = vunpack.c.h.b16 %v1096
        %v2332 = vunpack.c.l.b16 %v1097
        %v2333 = vunpack.c.h.b16 %v1097
        %v2334 = vunpack.c.l.b16 %v1098
        %v2335 = vunpack.c.h.b16 %v1098
        %v2336 = vunpack.c.l.b16 %v1099
        %v2337 = vunpack.c.h.b16 %v1099
        %v2338 = vunpack.c.l.b16 %v1100
        %v2339 = vunpack.c.h.b16 %v1100
        %v2340 = vunpack.c.l.b16 %v1101
        %v2341 = vunpack.c.h.b16 %v1101
        %v2342 = vunpack.c.l.b16 %v1102
        %v2343 = vunpack.c.h.b16 %v1102
        %v2344 = vunpack.c.l.b16 %v1103
        %v2345 = vunpack.c.h.b16 %v1103
        %v2346 = vunpack.c.l.b16 %v1104
        %v2347 = vunpack.c.h.b16 %v1104
        %v2348 = vunpack.c.l.b16 %v1105
        %v2349 = vunpack.c.h.b16 %v1105
        %v2350 = vunpack.c.l.b16 %v1106
        %v2351 = vunpack.c.h.b16 %v1106
        %v2352 = vunpack.c.l.b16 %v1107
        %v2353 = vunpack.c.h.b16 %v1107
        %v2354 = vunpack.c.l.b16 %v1108
        %v2355 = vunpack.c.h.b16 %v1108
        %v2356 = vunpack.c.l.b16 %v1109
        %v2357 = vunpack.c.h.b16 %v1109
        %v2358 = vunpack.c.l.b16 %v1110
        %v2359 = vunpack.c.h.b16 %v1110
        %v2360 = vunpack.c.l.b16 %v1111
        %v2361 = vunpack.c.h.b16 %v1111
        %v2362 = vunpack.c.l.b16 %v1112
        %v2363 = vunpack.c.h.b16 %v1112
        %v2364 = vunpack.c.l.b16 %v1113
        %v2365 = vunpack.c.h.b16 %v1113
        %v2366 = vunpack.c.l.b16 %v1114
        %v2367 = vunpack.c.h.b16 %v1114
        %v2368 = vunpack.c.l.b16 %v1115
        %v2369 = vunpack.c.h.b16 %v1115
        %v2370 = vunpack.c.l.b16 %v1116
        %v2371 = vunpack.c.h.b16 %v1116
        %v2372 = vunpack.c.l.b16 %v1117
        %v2373 = vunpack.c.h.b16 %v1117
        %v2374 = vunpack.c.l.b16 %v1118
        %v2375 = vunpack.c.h.b16 %v1118
        %v2376 = vunpack.c.l.b16 %v1119
        %v2377 = vunpack.c.h.b16 %v1119
        %v2378 = vunpack.c.l.b16 %v1120
        %v2379 = vunpack.c.h.b16 %v1120
        %v2380 = vunpack.c.l.b16 %v1121
        %v2381 = vunpack.c.h.b16 %v1121
        %v2382 = vunpack.c.l.b16 %v1122
        %v2383 = vunpack.c.h.b16 %v1122
        %v2384 = vunpack.c.l.b16 %v1123
        %v2385 = vunpack.c.h.b16 %v1123
        %v2386 = vunpack.c.l.b16 %v1124
        %v2387 = vunpack.c.h.b16 %v1124
        %v2388 = vunpack.c.l.b16 %v1125
        %v2389 = vunpack.c.h.b16 %v1125
        %v2390 = vunpack.c.l.b16 %v1126
        %v2391 = vunpack.c.h.b16 %v1126
        %v2392 = vunpack.c.l.b16 %v1127
        %v2393 = vunpack.c.h.b16 %v1127
        %v2394 = vunpack.c.l.b16 %v1128
        %v2395 = vunpack.c.h.b16 %v1128
        %v2396 = vunpack.c.l.b16 %v1129
        %v2397 = vunpack.c.h.b16 %v1129
        %v2398 = vunpack.c.l.b16 %v1130
        %v2399 = vunpack.c.h.b16 %v1130
        %v2400 = vunpack.c.l.b16 %v1131
        %v2401 = vunpack.c.h.b16 %v1131
        %v2402 = vunpack.c.l.b16 %v1132
        %v2403 = vunpack.c.h.b16 %v1132
        %v2404 = vunpack.c.l.b16 %v1133
        %v2405 = vunpack.c.h.b16 %v1133
        %v2406 = vunpack.c.l.b16 %v1134
        %v2407 = vunpack.c.h.b16 %v1134
        %v2408 = vunpack.c.l.b16 %v1135
        %v2409 = vunpack.c.h.b16 %v1135
        %v2410 = vunpack.c.l.b16 %v1136
        %v2411 = vunpack.c.h.b16 %v1136
        %v2412 = vunpack.c.l.b16 %v1137
        %v2413 = vunpack.c.h.b16 %v1137
        %v2414 = vunpack.c.l.b16 %v1138
        %v2415 = vunpack.c.h.b16 %v1138
        %v2416 = vunpack.c.l.b16 %v1139
        %v2417 = vunpack.c.h.b16 %v1139
        %v2418 = vunpack.c.l.b16 %v1140
        %v2419 = vunpack.c.h.b16 %v1140
        %v2420 = vunpack.c.l.b16 %v1141
        %v2421 = vunpack.c.h.b16 %v1141
        %v2422 = vunpack.c.l.b16 %v1142
        %v2423 = vunpack.c.h.b16 %v1142
        %v2424 = vunpack.c.l.b16 %v1143
        %v2425 = vunpack.c.h.b16 %v1143
        %v2426 = vunpack.c.l.b16 %v1144
        %v2427 = vunpack.c.h.b16 %v1144
        %v2428 = vunpack.c.l.b16 %v1145
        %v2429 = vunpack.c.h.b16 %v1145
        %v2430 = vunpack.c.l.b16 %v1146
        %v2431 = vunpack.c.h.b16 %v1146
        %v2432 = vunpack.c.l.b16 %v1147
        %v2433 = vunpack.c.h.b16 %v1147
        %v2434 = vunpack.c.l.b16 %v1148
        %v2435 = vunpack.c.h.b16 %v1148
        %v2436 = vunpack.c.l.b16 %v1149
        %v2437 = vunpack.c.h.b16 %v1149
        %v2438 = vunpack.c.l.b16 %v1150
        %v2439 = vunpack.c.h.b16 %v1150
        %v2440 = vunpack.c.l.b16 %v1151
        %v2441 = vunpack.c.h.b16 %v1151
        %v2442 = vunpack.c.l.b16 %v1152
        %v2443 = vunpack.c.h.b16 %v1152
        %v2444 = vunpack.c.l.b16 %v1153
        %v2445 = vunpack.c.h.b16 %v1153
        %v2446 = vunpack.c.l.b16 %v1154
        %v2447 = vunpack.c.h.b16 %v1154
        %v2448 = vunpack.c.l.b16 %v1155
        %v2449 = vunpack.c.h.b16 %v1155
        %v2450 = vunpack.c.l.b16 %v1156
        %v2451 = vunpack.c.h.b16 %v1156
        %v2452 = vunpack.c.l.b16 %v1157
        %v2453 = vunpack.c.h.b16 %v1157
        %v2454 = vunpack.c.l.b16 %v1158
        %v2455 = vunpack.c.h.b16 %v1158
        %v2456 = vunpack.c.l.b16 %v1159
        %v2457 = vunpack.c.h.b16 %v1159
        %v2458 = vunpack.c.l.b16 %v1160
        %v2459 = vunpack.c.h.b16 %v1160
        %v2460 = vunpack.c.l.b16 %v1161
        %v2461 = vunpack.c.h.b16 %v1161
        %v2462 = vunpack.c.l.b16 %v1162
        %v2463 = vunpack.c.h.b16 %v1162
        %v2464 = vunpack.c.l.b16 %v1163
        %v2465 = vunpack.c.h.b16 %v1163
        %v2466 = vunpack.c.l.b16 %v1164
        %v2467 = vunpack.c.h.b16 %v1164
        %v2468 = vunpack.c.l.b16 %v1165
        %v2469 = vunpack.c.h.b16 %v1165
        %v2470 = vunpack.c.l.b16 %v1166
        %v2471 = vunpack.c.h.b16 %v1166
        %v2472 = vunpack.c.l.b16 %v1167
        %v2473 = vunpack.c.h.b16 %v1167
        %v2474 = vunpack.c.l.b16 %v1168
        %v2475 = vunpack.c.h.b16 %v1168
        %v2476 = vunpack.c.l.b16 %v1169
        %v2477 = vunpack.c.h.b16 %v1169
        %v2478 = vunpack.c.l.b16 %v1170
        %v2479 = vunpack.c.h.b16 %v1170
        %v2480 = vunpack.c.l.b16 %v1171
        %v2481 = vunpack.c.h.b16 %v1171
        %v2482 = vunpack.c.l.b16 %v1172
        %v2483 = vunpack.c.h.b16 %v1172
        %v2484 = vunpack.c.l.b16 %v1173
        %v2485 = vunpack.c.h.b16 %v1173
        %v2486 = vunpack.c.l.b16 %v1174
        %v2487 = vunpack.c.h.b16 %v1174
        %v2488 = vunpack.c.l.b16 %v1175
        %v2489 = vunpack.c.h.b16 %v1175
        %v2490 = vunpack.c.l.b16 %v1176
        %v2491 = vunpack.c.h.b16 %v1176
        %v2492 = vunpack.c.l.b16 %v1177
        %v2493 = vunpack.c.h.b16 %v1177
        %v2494 = vunpack.c.l.b16 %v1178
        %v2495 = vunpack.c.h.b16 %v1178
        %v2496 = vunpack.c.l.b16 %v1179
        %v2497 = vunpack.c.h.b16 %v1179
        %v2498 = vunpack.c.l.b16 %v1180
        %v2499 = vunpack.c.h.b16 %v1180
        %v2500 = vunpack.c.l.b16 %v1181
        %v2501 = vunpack.c.h.b16 %v1181
        %v2502 = vunpack.c.l.b16 %v1182
        %v2503 = vunpack.c.h.b16 %v1182
        %v2504 = vunpack.c.l.b16 %v1183
        %v2505 = vunpack.c.h.b16 %v1183
        %v2506 = vunpack.c.l.b16 %v1184
        %v2507 = vunpack.c.h.b16 %v1184
        %v2508 = vunpack.c.l.b16 %v1185
        %v2509 = vunpack.c.h.b16 %v1185
        %v2510 = vunpack.c.l.b16 %v1186
        %v2511 = vunpack.c.h.b16 %v1186
        %v2512 = vunpack.c.l.b16 %v1187
        %v2513 = vunpack.c.h.b16 %v1187
        %v2514 = vunpack.c.l.b16 %v1188
        %v2515 = vunpack.c.h.b16 %v1188
        %v2516 = vunpack.c.l.b16 %v1189
        %v2517 = vunpack.c.h.b16 %v1189
        %v2518 = vunpack.c.l.b16 %v1190
        %v2519 = vunpack.c.h.b16 %v1190
        %v2520 = vunpack.c.l.b16 %v1191
        %v2521 = vunpack.c.h.b16 %v1191
        %v2522 = vunpack.c.l.b16 %v1192
        %v2523 = vunpack.c.h.b16 %v1192
        %v2524 = vunpack.c.l.b16 %v1193
        %v2525 = vunpack.c.h.b16 %v1193
        %v2526 = vunpack.c.l.b16 %v1194
        %v2527 = vunpack.c.h.b16 %v1194
        %v2528 = vunpack.c.l.b16 %v1195
        %v2529 = vunpack.c.h.b16 %v1195
        %v2530 = vunpack.c.l.b16 %v1196
        %v2531 = vunpack.c.h.b16 %v1196
        %v2532 = vunpack.c.l.b16 %v1197
        %v2533 = vunpack.c.h.b16 %v1197
        %v2534 = vunpack.c.l.b16 %v1198
        %v2535 = vunpack.c.h.b16 %v1198
        %v2536 = vunpack.c.l.b16 %v1199
        %v2537 = vunpack.c.h.b16 %v1199
        %v2538 = vunpack.c.l.b16 %v1200
        %v2539 = vunpack.c.h.b16 %v1200
        %v2540 = vunpack.c.l.b16 %v1201
        %v2541 = vunpack.c.h.b16 %v1201
        %v2542 = vunpack.c.l.b16 %v1202
        %v2543 = vunpack.c.h.b16 %v1202
        %v2544 = vunpack.c.l.b16 %v1203
        %v2545 = vunpack.c.h.b16 %v1203
        %v2546 = vunpack.c.l.b16 %v1204
        %v2547 = vunpack.c.h.b16 %v1204
        %v2548 = vunpack.c.l.b16 %v1205
        %v2549 = vunpack.c.h.b16 %v1205
        %v2550 = vunpack.c.l.b16 %v1206
        %v2551 = vunpack.c.h.b16 %v1206
        %v2552 = vunpack.c.l.b16 %v1207
        %v2553 = vunpack.c.h.b16 %v1207
        %v2554 = vunpack.c.l.b16 %v1208
        %v2555 = vunpack.c.h.b16 %v1208
        %v2556 = vunpack.c.l.b16 %v1209
        %v2557 = vunpack.c.h.b16 %v1209
        %v2558 = vunpack.c.l.b16 %v1210
        %v2559 = vunpack.c.h.b16 %v1210
        %v2560 = vunpack.c.l.b16 %v1211
        %v2561 = vunpack.c.h.b16 %v1211
        %v2562 = vunpack.c.l.b16 %v1212
        %v2563 = vunpack.c.h.b16 %v1212
        %v2564 = vunpack.c.l.b16 %v1213
        %v2565 = vunpack.c.h.b16 %v1213
        %v2566 = vunpack.c.l.b16 %v1214
        %v2567 = vunpack.c.h.b16 %v1214
        %v2568 = vunpack.c.l.b16 %v1215
        %v2569 = vunpack.c.h.b16 %v1215
        %v2570 = vunpack.c.l.b16 %v1216
        %v2571 = vunpack.c.h.b16 %v1216
        %v2572 = vunpack.c.l.b16 %v1217
        %v2573 = vunpack.c.h.b16 %v1217
        %v2574 = vunpack.c.l.b16 %v1218
        %v2575 = vunpack.c.h.b16 %v1218
        %v2576 = vunpack.c.l.b16 %v1219
        %v2577 = vunpack.c.h.b16 %v1219
        %v2578 = vunpack.c.l.b16 %v1220
        %v2579 = vunpack.c.h.b16 %v1220
        %v2580 = vunpack.c.l.b16 %v1221
        %v2581 = vunpack.c.h.b16 %v1221
        %v2582 = vunpack.c.l.b16 %v1222
        %v2583 = vunpack.c.h.b16 %v1222
        %v2584 = vunpack.c.l.b16 %v1223
        %v2585 = vunpack.c.h.b16 %v1223
        %v2586 = vunpack.c.l.b16 %v1224
        %v2587 = vunpack.c.h.b16 %v1224
        %v2588 = vunpack.c.l.b16 %v1225
        %v2589 = vunpack.c.h.b16 %v1225
        %v2590 = vunpack.c.l.b16 %v1226
        %v2591 = vunpack.c.h.b16 %v1226
        %v2592 = vunpack.c.l.b16 %v1227
        %v2593 = vunpack.c.h.b16 %v1227
        %v2594 = vunpack.c.l.b16 %v1228
        %v2595 = vunpack.c.h.b16 %v1228
        %v2596 = vunpack.c.l.b16 %v1229
        %v2597 = vunpack.c.h.b16 %v1229
        %v2598 = vunpack.c.l.b16 %v1230
        %v2599 = vunpack.c.h.b16 %v1230
        %v2600 = vunpack.c.l.b16 %v1231
        %v2601 = vunpack.c.h.b16 %v1231
        %v2602 = vunpack.c.l.b16 %v1232
        %v2603 = vunpack.c.h.b16 %v1232
        %v2604 = vunpack.c.l.b16 %v1233
        %v2605 = vunpack.c.h.b16 %v1233
        %v2606 = vunpack.c.l.b16 %v1234
        %v2607 = vunpack.c.h.b16 %v1234
        %v2608 = vunpack.c.l.b16 %v1235
        %v2609 = vunpack.c.h.b16 %v1235
        %v2610 = vunpack.c.l.b16 %v1236
        %v2611 = vunpack.c.h.b16 %v1236
        %v2612 = vunpack.c.l.b16 %v1237
        %v2613 = vunpack.c.h.b16 %v1237
        %v2614 = vunpack.c.l.b16 %v1238
        %v2615 = vunpack.c.h.b16 %v1238
        %v2616 = vunpack.c.l.b16 %v1239
        %v2617 = vunpack.c.h.b16 %v1239
        %v2618 = vunpack.c.l.b16 %v1240
        %v2619 = vunpack.c.h.b16 %v1240
        %v2620 = vunpack.c.l.b16 %v1241
        %v2621 = vunpack.c.h.b16 %v1241
        %v2622 = vunpack.c.l.b16 %v1242
        %v2623 = vunpack.c.h.b16 %v1242
        %v2624 = vunpack.c.l.b16 %v1243
        %v2625 = vunpack.c.h.b16 %v1243
        %v2626 = vunpack.c.l.b16 %v1244
        %v2627 = vunpack.c.h.b16 %v1244
        %v2628 = vunpack.c.l.b16 %v1245
        %v2629 = vunpack.c.h.b16 %v1245
        %v2630 = vunpack.c.l.b16 %v1246
        %v2631 = vunpack.c.h.b16 %v1246
        %v2632 = vunpack.c.l.b16 %v1247
        %v2633 = vunpack.c.h.b16 %v1247
        %v2634 = vunpack.c.l.b16 %v1248
        %v2635 = vunpack.c.h.b16 %v1248
        %v2636 = vunpack.c.l.b16 %v1249
        %v2637 = vunpack.c.h.b16 %v1249
        %v2638 = vunpack.c.l.b16 %v1250
        %v2639 = vunpack.c.h.b16 %v1250
        %v2640 = vunpack.c.l.b16 %v1251
        %v2641 = vunpack.c.h.b16 %v1251
        %v2642 = vunpack.c.l.b16 %v1252
        %v2643 = vunpack.c.h.b16 %v1252
        %v2644 = vunpack.c.l.b16 %v1253
        %v2645 = vunpack.c.h.b16 %v1253
        %v2646 = vunpack.c.l.b16 %v1254
        %v2647 = vunpack.c.h.b16 %v1254
        %v2648 = vunpack.c.l.b16 %v1255
        %v2649 = vunpack.c.h.b16 %v1255
        %v2650 = vunpack.c.l.b16 %v1256
        %v2651 = vunpack.c.h.b16 %v1256
        %v2652 = vunpack.c.l.b16 %v1257
        %v2653 = vunpack.c.h.b16 %v1257
        %v2654 = vunpack.c.l.b16 %v1258
        %v2655 = vunpack.c.h.b16 %v1258
        %v2656 = vunpack.c.l.b16 %v1259
        %v2657 = vunpack.c.h.b16 %v1259
        %v2658 = vunpack.c.l.b16 %v1260
        %v2659 = vunpack.c.h.b16 %v1260
        %v2660 = vunpack.c.l.b16 %v1261
        %v2661 = vunpack.c.h.b16 %v1261
        %v2662 = vunpack.c.l.b16 %v1262
        %v2663 = vunpack.c.h.b16 %v1262
        %v2664 = vunpack.c.l.b16 %v1263
        %v2665 = vunpack.c.h.b16 %v1263
        %v2666 = vunpack.c.l.b16 %v1264
        %v2667 = vunpack.c.h.b16 %v1264
        %v2668 = vunpack.c.l.b16 %v1265
        %v2669 = vunpack.c.h.b16 %v1265
        %v2670 = vunpack.c.l.b16 %v1266
        %v2671 = vunpack.c.h.b16 %v1266
        %v2672 = vunpack.c.l.b16 %v1267
        %v2673 = vunpack.c.h.b16 %v1267
        %v2674 = vunpack.c.l.b16 %v1268
        %v2675 = vunpack.c.h.b16 %v1268
        %v2676 = vunpack.c.l.b16 %v1269
        %v2677 = vunpack.c.h.b16 %v1269
        %v2678 = vunpack.c.l.b16 %v1270
        %v2679 = vunpack.c.h.b16 %v1270
        %v2680 = vunpack.c.l.b16 %v1271
        %v2681 = vunpack.c.h.b16 %v1271
        %v2682 = vunpack.c.l.b16 %v1272
        %v2683 = vunpack.c.h.b16 %v1272
        %v2684 = vunpack.c.l.b16 %v1273
        %v2685 = vunpack.c.h.b16 %v1273
        %v2686 = vunpack.c.l.b16 %v1274
        %v2687 = vunpack.c.h.b16 %v1274
        %v2688 = vunpack.c.l.b16 %v1275
        %v2689 = vunpack.c.h.b16 %v1275
        %v2690 = vunpack.c.l.b16 %v1276
        %v2691 = vunpack.c.h.b16 %v1276
        %v2692 = vunpack.c.l.b16 %v1277
        %v2693 = vunpack.c.h.b16 %v1277
        %v2694 = vunpack.c.l.b16 %v1278
        %v2695 = vunpack.c.h.b16 %v1278
        %v2696 = vunpack.c.l.b16 %v1279
        %v2697 = vunpack.c.h.b16 %v1279
        %v2698 = vunpack.c.l.b16 %v1280
        %v2699 = vunpack.c.h.b16 %v1280
        %v2700 = vunpack.c.l.b16 %v1281
        %v2701 = vunpack.c.h.b16 %v1281
        %v2702 = vunpack.c.l.b16 %v1282
        %v2703 = vunpack.c.h.b16 %v1282
        %v2704 = vunpack.c.l.b16 %v1283
        %v2705 = vunpack.c.h.b16 %v1283
        %v2706 = vunpack.c.l.b16 %v1284
        %v2707 = vunpack.c.h.b16 %v1284
        %v2708 = vunpack.c.l.b16 %v1285
        %v2709 = vunpack.c.h.b16 %v1285
        %v2710 = vunpack.c.l.b16 %v1286
        %v2711 = vunpack.c.h.b16 %v1286
        %v2712 = vunpack.c.l.b16 %v1287
        %v2713 = vunpack.c.h.b16 %v1287
        %v2714 = vunpack.c.l.b16 %v1288
        %v2715 = vunpack.c.h.b16 %v1288
        %v2716 = vunpack.c.l.b16 %v1289
        %v2717 = vunpack.c.h.b16 %v1289
        %v2718 = vunpack.c.l.b16 %v1290
        %v2719 = vunpack.c.h.b16 %v1290
        %v2720 = vunpack.c.l.b16 %v1291
        %v2721 = vunpack.c.h.b16 %v1291
        %v2722 = vunpack.c.l.b16 %v1292
        %v2723 = vunpack.c.h.b16 %v1292
        %v2724 = vunpack.c.l.b16 %v1293
        %v2725 = vunpack.c.h.b16 %v1293
        %v2726 = vunpack.c.l.b16 %v1294
        %v2727 = vunpack.c.h.b16 %v1294
        %v2728 = vunpack.c.l.b16 %v1295
        %v2729 = vunpack.c.h.b16 %v1295
        %v2730 = vunpack.c.l.b16 %v1296
        %v2731 = vunpack.c.h.b16 %v1296
        %v2732 = vunpack.c.l.b16 %v1297
        %v2733 = vunpack.c.h.b16 %v1297
        %v2734 = vunpack.c.l.b16 %v1298
        %v2735 = vunpack.c.h.b16 %v1298
        %v2736 = vunpack.c.l.b16 %v1299
        %v2737 = vunpack.c.h.b16 %v1299
        %v2738 = vunpack.c.l.b16 %v1300
        %v2739 = vunpack.c.h.b16 %v1300
        %v2740 = vunpack.c.l.b16 %v1301
        %v2741 = vunpack.c.h.b16 %v1301
        %v2742 = vunpack.c.l.b16 %v1302
        %v2743 = vunpack.c.h.b16 %v1302
        %v2744 = vunpack.c.l.b16 %v1303
        %v2745 = vunpack.c.h.b16 %v1303
        %v2746 = vunpack.c.l.b16 %v1304
        %v2747 = vunpack.c.h.b16 %v1304
        %v2748 = vunpack.c.l.b16 %v1305
        %v2749 = vunpack.c.h.b16 %v1305
        %v2750 = vunpack.c.l.b16 %v1306
        %v2751 = vunpack.c.h.b16 %v1306
        %v2752 = vunpack.c.l.b16 %v1307
        %v2753 = vunpack.c.h.b16 %v1307
        %v2754 = vunpack.c.l.b16 %v1308
        %v2755 = vunpack.c.h.b16 %v1308
        %v2756 = vunpack.c.l.b16 %v1309
        %v2757 = vunpack.c.h.b16 %v1309
        %v2758 = vunpack.c.l.b16 %v1310
        %v2759 = vunpack.c.h.b16 %v1310
        %v2760 = vunpack.c.l.b16 %v1311
        %v2761 = vunpack.c.h.b16 %v1311
        %v2762 = vunpack.c.l.b16 %v1312
        %v2763 = vunpack.c.h.b16 %v1312
        %v2764 = vunpack.c.l.b16 %v1313
        %v2765 = vunpack.c.h.b16 %v1313
        %v2766 = vunpack.c.l.b16 %v1314
        %v2767 = vunpack.c.h.b16 %v1314
        %v2768 = vunpack.c.l.b16 %v1315
        %v2769 = vunpack.c.h.b16 %v1315
        %v2770 = vunpack.c.l.b16 %v1316
        %v2771 = vunpack.c.h.b16 %v1316
        %v2772 = vunpack.c.l.b16 %v1317
        %v2773 = vunpack.c.h.b16 %v1317
        %v2774 = vunpack.c.l.b16 %v1318
        %v2775 = vunpack.c.h.b16 %v1318
        %v2776 = vunpack.c.l.b16 %v1319
        %v2777 = vunpack.c.h.b16 %v1319
        %v2778 = vunpack.c.l.b16 %v1320
        %v2779 = vunpack.c.h.b16 %v1320
        %v2780 = vunpack.c.l.b16 %v1321
        %v2781 = vunpack.c.h.b16 %v1321
        %v2782 = vunpack.c.l.b16 %v1322
        %v2783 = vunpack.c.h.b16 %v1322
        %v2784 = vunpack.c.l.b16 %v1323
        %v2785 = vunpack.c.h.b16 %v1323
        %v2786 = vunpack.c.l.b16 %v1324
        %v2787 = vunpack.c.h.b16 %v1324
        %v2788 = vunpack.c.l.b16 %v1325
        %v2789 = vunpack.c.h.b16 %v1325
        %v2790 = vunpack.c.l.b16 %v1326
        %v2791 = vunpack.c.h.b16 %v1326
        %v2792 = vunpack.c.l.b16 %v1327
        %v2793 = vunpack.c.h.b16 %v1327
        %v2794 = vunpack.c.l.b16 %v1328
        %v2795 = vunpack.c.h.b16 %v1328
        %v2796 = vunpack.c.l.b16 %v1329
        %v2797 = vunpack.c.h.b16 %v1329
        %v2798 = vunpack.c.l.b16 %v1330
        %v2799 = vunpack.c.h.b16 %v1330
        %v2800 = vunpack.c.l.b16 %v1331
        %v2801 = vunpack.c.h.b16 %v1331
        %v2802 = vunpack.c.l.b16 %v1332
        %v2803 = vunpack.c.h.b16 %v1332
        %v2804 = vunpack.c.l.b16 %v1333
        %v2805 = vunpack.c.h.b16 %v1333
        %v2806 = vunpack.c.l.b16 %v1334
        %v2807 = vunpack.c.h.b16 %v1334
        %v2808 = vunpack.c.l.b16 %v1335
        %v2809 = vunpack.c.h.b16 %v1335
        %v2810 = vunpack.c.l.b16 %v1336
        %v2811 = vunpack.c.h.b16 %v1336
        %v2812 = vunpack.c.l.b16 %v1337
        %v2813 = vunpack.c.h.b16 %v1337
        %v2814 = vunpack.c.l.b16 %v1338
        %v2815 = vunpack.c.h.b16 %v1338
        %v2816 = vunpack.c.l.b16 %v1339
        %v2817 = vunpack.c.h.b16 %v1339
        %v2818 = vunpack.c.l.b16 %v1340
        %v2819 = vunpack.c.h.b16 %v1340
        %v2820 = vunpack.c.l.b16 %v1341
        %v2821 = vunpack.c.h.b16 %v1341
        %v2822 = vunpack.c.l.b16 %v1342
        %v2823 = vunpack.c.h.b16 %v1342
        %v2824 = vunpack.c.l.b16 %v1343
        %v2825 = vunpack.c.h.b16 %v1343
        %v2826 = vunpack.c.l.b16 %v1344
        %v2827 = vunpack.c.h.b16 %v1344
        %v2828 = vunpack.c.l.b16 %v1345
        %v2829 = vunpack.c.h.b16 %v1345
        %v2830 = vunpack.c.l.b16 %v1346
        %v2831 = vunpack.c.h.b16 %v1346
        %v2832 = vunpack.c.l.b16 %v1347
        %v2833 = vunpack.c.h.b16 %v1347
        %v2834 = vunpack.c.l.b16 %v1348
        %v2835 = vunpack.c.h.b16 %v1348
        %v2836 = vunpack.c.l.b16 %v1349
        %v2837 = vunpack.c.h.b16 %v1349
        %v2838 = vunpack.c.l.b16 %v1350
        %v2839 = vunpack.c.h.b16 %v1350
        %v2840 = vunpack.c.l.b16 %v1351
        %v2841 = vunpack.c.h.b16 %v1351
        %v2842 = vunpack.c.l.b16 %v1352
        %v2843 = vunpack.c.h.b16 %v1352
        %v2844 = vunpack.c.l.b16 %v1353
        %v2845 = vunpack.c.h.b16 %v1353
        %v2846 = vunpack.c.l.b16 %v1354
        %v2847 = vunpack.c.h.b16 %v1354
        %v2848 = vunpack.c.l.b16 %v1355
        %v2849 = vunpack.c.h.b16 %v1355
        %v2850 = vunpack.c.l.b16 %v1356
        %v2851 = vunpack.c.h.b16 %v1356
        %v2852 = vunpack.c.l.b16 %v1357
        %v2853 = vunpack.c.h.b16 %v1357
        %v2854 = vunpack.c.l.b16 %v1358
        %v2855 = vunpack.c.h.b16 %v1358
        %v2856 = vunpack.c.l.b16 %v1359
        %v2857 = vunpack.c.h.b16 %v1359
        %v2858 = vunpack.c.l.b16 %v1360
        %v2859 = vunpack.c.h.b16 %v1360
        %v2860 = vunpack.c.l.b16 %v1361
        %v2861 = vunpack.c.h.b16 %v1361
        %v2862 = vunpack.c.l.b16 %v1362
        %v2863 = vunpack.c.h.b16 %v1362
        %v2864 = vunpack.c.l.b16 %v1363
        %v2865 = vunpack.c.h.b16 %v1363
        %v2866 = vunpack.c.l.b16 %v1364
        %v2867 = vunpack.c.h.b16 %v1364
        %v2868 = vunpack.c.l.b16 %v1365
        %v2869 = vunpack.c.h.b16 %v1365
        %v2870 = vunpack.c.l.b16 %v1366
        %v2871 = vunpack.c.h.b16 %v1366
        %v2872 = vunpack.c.l.b16 %v1367
        %v2873 = vunpack.c.h.b16 %v1367
        %v2874 = vunpack.c.l.b16 %v1368
        %v2875 = vunpack.c.h.b16 %v1368
        %v2876 = vunpack.c.l.b16 %v1369
        %v2877 = vunpack.c.h.b16 %v1369
        %v2878 = vunpack.c.l.b16 %v1370
        %v2879 = vunpack.c.h.b16 %v1370
        %v2880 = vunpack.c.l.b16 %v1371
        %v2881 = vunpack.c.h.b16 %v1371
        %v2882 = vunpack.c.l.b16 %v1372
        %v2883 = vunpack.c.h.b16 %v1372
        %v2884 = vunpack.c.l.b16 %v1373
        %v2885 = vunpack.c.h.b16 %v1373
        %v2886 = vunpack.c.l.b16 %v1374
        %v2887 = vunpack.c.h.b16 %v1374
        %v2888 = vunpack.c.l.b16 %v1375
        %v2889 = vunpack.c.h.b16 %v1375
        %v2890 = vunpack.c.l.b16 %v1376
        %v2891 = vunpack.c.h.b16 %v1376
        %v2892 = vunpack.c.l.b16 %v1377
        %v2893 = vunpack.c.h.b16 %v1377
        %v2894 = vunpack.c.l.b16 %v1378
        %v2895 = vunpack.c.h.b16 %v1378
        %v2896 = vunpack.c.l.b16 %v1379
        %v2897 = vunpack.c.h.b16 %v1379
        %v2898 = vunpack.c.l.b16 %v1380
        %v2899 = vunpack.c.h.b16 %v1380
        %v2900 = vunpack.c.l.b16 %v1381
        %v2901 = vunpack.c.h.b16 %v1381
        %v2902 = vunpack.c.l.b16 %v1382
        %v2903 = vunpack.c.h.b16 %v1382
        %v2904 = vunpack.c.l.b16 %v1383
        %v2905 = vunpack.c.h.b16 %v1383
        %v2906 = vunpack.c.l.b16 %v1384
        %v2907 = vunpack.c.h.b16 %v1384
        %v2908 = vunpack.c.l.b16 %v1385
        %v2909 = vunpack.c.h.b16 %v1385
        %v2910 = vunpack.c.l.b16 %v1386
        %v2911 = vunpack.c.h.b16 %v1386
        %v2912 = vunpack.c.l.b16 %v1387
        %v2913 = vunpack.c.h.b16 %v1387
        %v2914 = vunpack.c.l.b16 %v1388
        %v2915 = vunpack.c.h.b16 %v1388
        %v2916 = vunpack.c.l.b16 %v1389
        %v2917 = vunpack.c.h.b16 %v1389
        %v2918 = vunpack.c.l.b16 %v1390
        %v2919 = vunpack.c.h.b16 %v1390
        %v2920 = vunpack.c.l.b16 %v1391
        %v2921 = vunpack.c.h.b16 %v1391
        %v2922 = vunpack.c.l.b16 %v1392
        %v2923 = vunpack.c.h.b16 %v1392
        %v2924 = vunpack.c.l.b16 %v1393
        %v2925 = vunpack.c.h.b16 %v1393
        %v2926 = vunpack.c.l.b16 %v1394
        %v2927 = vunpack.c.h.b16 %v1394
        %v2928 = vunpack.c.l.b16 %v1395
        %v2929 = vunpack.c.h.b16 %v1395
        %v2930 = vunpack.c.l.b16 %v1396
        %v2931 = vunpack.c.h.b16 %v1396
        %v2932 = vunpack.c.l.b16 %v1397
        %v2933 = vunpack.c.h.b16 %v1397
        %v2934 = vunpack.c.l.b16 %v1398
        %v2935 = vunpack.c.h.b16 %v1398
        %v2936 = vunpack.c.l.b16 %v1399
        %v2937 = vunpack.c.h.b16 %v1399
        %v2938 = vunpack.c.l.b16 %v1400
        %v2939 = vunpack.c.h.b16 %v1400
        %v2940 = vunpack.c.l.b16 %v1401
        %v2941 = vunpack.c.h.b16 %v1401
        %v2942 = vunpack.c.l.b16 %v1402
        %v2943 = vunpack.c.h.b16 %v1402
        %v2944 = vunpack.c.l.b16 %v1403
        %v2945 = vunpack.c.h.b16 %v1403
        %v2946 = vunpack.c.l.b16 %v1404
        %v2947 = vunpack.c.h.b16 %v1404
        %v2948 = vunpack.c.l.b16 %v1405
        %v2949 = vunpack.c.h.b16 %v1405
        %v2950 = vunpack.c.l.b16 %v1406
        %v2951 = vunpack.c.h.b16 %v1406
        %v2952 = vunpack.c.l.b16 %v1407
        %v2953 = vunpack.c.h.b16 %v1407
        %v2954 = vunpack.c.l.b16 %v1408
        %v2955 = vunpack.c.h.b16 %v1408
        %v2956 = vunpack.c.l.b16 %v1409
        %v2957 = vunpack.c.h.b16 %v1409
        %v2958 = vunpack.c.l.b16 %v1410
        %v2959 = vunpack.c.h.b16 %v1410
        %v2960 = vunpack.c.l.b16 %v1411
        %v2961 = vunpack.c.h.b16 %v1411
        %v2962 = vunpack.c.l.b16 %v1412
        %v2963 = vunpack.c.h.b16 %v1412
        %v2964 = vunpack.c.l.b16 %v1413
        %v2965 = vunpack.c.h.b16 %v1413
        %v2966 = vunpack.c.l.b16 %v1414
        %v2967 = vunpack.c.h.b16 %v1414
        %v2968 = vunpack.c.l.b16 %v1415
        %v2969 = vunpack.c.h.b16 %v1415
        %v2970 = vunpack.c.l.b16 %v1416
        %v2971 = vunpack.c.h.b16 %v1416
        %v2972 = vunpack.c.l.b16 %v1417
        %v2973 = vunpack.c.h.b16 %v1417
        %v2974 = vunpack.c.l.b16 %v1418
        %v2975 = vunpack.c.h.b16 %v1418
        %v2976 = vunpack.c.l.b16 %v1419
        %v2977 = vunpack.c.h.b16 %v1419
        %v2978 = vunpack.c.l.b16 %v1420
        %v2979 = vunpack.c.h.b16 %v1420
        %v2980 = vunpack.c.l.b16 %v1421
        %v2981 = vunpack.c.h.b16 %v1421
        %v2982 = vunpack.c.l.b16 %v1422
        %v2983 = vunpack.c.h.b16 %v1422
        %v2984 = vunpack.c.l.b16 %v1423
        %v2985 = vunpack.c.h.b16 %v1423
        %v2986 = vunpack.c.l.b16 %v1424
        %v2987 = vunpack.c.h.b16 %v1424
        %v2988 = vunpack.c.l.b16 %v1425
        %v2989 = vunpack.c.h.b16 %v1425
        %v2990 = vunpack.c.l.b16 %v1426
        %v2991 = vunpack.c.h.b16 %v1426
        %v2992 = vunpack.c.l.b16 %v1427
        %v2993 = vunpack.c.h.b16 %v1427
        %v2994 = vunpack.c.l.b16 %v1428
        %v2995 = vunpack.c.h.b16 %v1428
        %v2996 = vunpack.c.l.b16 %v1429
        %v2997 = vunpack.c.h.b16 %v1429
        %v2998 = vunpack.c.l.b16 %v1430
        %v2999 = vunpack.c.h.b16 %v1430
        %v3000 = vunpack.c.l.b16 %v1431
        %v3001 = vunpack.c.h.b16 %v1431
        %v3002 = vunpack.c.l.b16 %v1432
        %v3003 = vunpack.c.h.b16 %v1432
        %v3004 = vunpack.c.l.b16 %v1433
        %v3005 = vunpack.c.h.b16 %v1433
        %v3006 = vpack.c.b16 %v1998, %v1982
        %v3007 = vpack.c.b16 %v1999, %v1983
        %v3008 = vpack.c.b16 %v2000, %v1984
        %v3009 = vpack.c.b16 %v2001, %v1985
        %v3010 = vpack.c.b16 %v2002, %v1986
        %v3011 = vpack.c.b16 %v2003, %v1987
        %v3012 = vpack.c.b16 %v2004, %v1988
        %v3013 = vpack.c.b16 %v2005, %v1989
        %v3014 = vpack.c.b16 %v2006, %v1990
        %v3015 = vpack.c.b16 %v2007, %v1991
        %v3016 = vpack.c.b16 %v2008, %v1992
        %v3017 = vpack.c.b16 %v2009, %v1993
        %v3018 = vpack.c.b16 %v2010, %v1994
        %v3019 = vpack.c.b16 %v2011, %v1995
        %v3020 = vpack.c.b16 %v2012, %v1996
        %v3021 = vpack.c.b16 %v2013, %v1997
        %v3022 = vpack.c.b16 %v2030, %v2014
        %v3023 = vpack.c.b16 %v2031, %v2015
        %v3024 = vpack.c.b16 %v2032, %v2016
        %v3025 = vpack.c.b16 %v2033, %v2017
        %v3026 = vpack.c.b16 %v2034, %v2018
        %v3027 = vpack.c.b16 %v2035, %v2019
        %v3028 = vpack.c.b16 %v2036, %v2020
        %v3029 = vpack.c.b16 %v2037, %v2021
        %v3030 = vpack.c.b16 %v2038, %v2022
        %v3031 = vpack.c.b16 %v2039, %v2023
        %v3032 = vpack.c.b16 %v2040, %v2024
        %v3033 = vpack.c.b16 %v2041, %v2025
        %v3034 = vpack.c.b16 %v2042, %v2026
        %v3035 = vpack.c.b16 %v2043, %v2027
        %v3036 = vpack.c.b16 %v2044, %v2028
        %v3037 = vpack.c.b16 %v2045, %v2029
        %v3038 = vpack.c.b16 %v2062, %v2046
        %v3039 = vpack.c.b16 %v2063, %v2047
        %v3040 = vpack.c.b16 %v2064, %v2048
        %v3041 = vpack.c.b16 %v2065, %v2049
        %v3042 = vpack.c.b16 %v2066, %v2050
        %v3043 = vpack.c.b16 %v2067, %v2051
        %v3044 = vpack.c.b16 %v2068, %v2052
        %v3045 = vpack.c.b16 %v2069, %v2053
        %v3046 = vpack.c.b16 %v2070, %v2054
        %v3047 = vpack.c.b16 %v2071, %v2055
        %v3048 = vpack.c.b16 %v2072, %v2056
        %v3049 = vpack.c.b16 %v2073, %v2057
        %v3050 = vpack.c.b16 %v2074, %v2058
        %v3051 = vpack.c.b16 %v2075, %v2059
        %v3052 = vpack.c.b16 %v2076, %v2060
        %v3053 = vpack.c.b16 %v2077, %v2061
        %v3054 = vpack.c.b16 %v2094, %v2078
        %v3055 = vpack.c.b16 %v2095, %v2079
        %v3056 = vpack.c.b16 %v2096, %v2080
        %v3057 = vpack.c.b16 %v2097, %v2081
        %v3058 = vpack.c.b16 %v2098, %v2082
        %v3059 = vpack.c.b16 %v2099, %v2083
        %v3060 = vpack.c.b16 %v2100, %v2084
        %v3061 = vpack.c.b16 %v2101, %v2085
        %v3062 = vpack.c.b16 %v2102, %v2086
        %v3063 = vpack.c.b16 %v2103, %v2087
        %v3064 = vpack.c.b16 %v2104, %v2088
        %v3065 = vpack.c.b16 %v2105, %v2089
        %v3066 = vpack.c.b16 %v2106, %v2090
        %v3067 = vpack.c.b16 %v2107, %v2091
        %v3068 = vpack.c.b16 %v2108, %v2092
        %v3069 = vpack.c.b16 %v2109, %v2093
        %v3070 = vpack.c.b16 %v2126, %v2110
        %v3071 = vpack.c.b16 %v2127, %v2111
        %v3072 = vpack.c.b16 %v2128, %v2112
        %v3073 = vpack.c.b16 %v2129, %v2113
        %v3074 = vpack.c.b16 %v2130, %v2114
        %v3075 = vpack.c.b16 %v2131, %v2115
        %v3076 = vpack.c.b16 %v2132, %v2116
        %v3077 = vpack.c.b16 %v2133, %v2117
        %v3078 = vpack.c.b16 %v2134, %v2118
        %v3079 = vpack.c.b16 %v2135, %v2119
        %v3080 = vpack.c.b16 %v2136, %v2120
        %v3081 = vpack.c.b16 %v2137, %v2121
        %v3082 = vpack.c.b16 %v2138, %v2122
        %v3083 = vpack.c.b16 %v2139, %v2123
        %v3084 = vpack.c.b16 %v2140, %v2124
        %v3085 = vpack.c.b16 %v2141, %v2125
        %v3086 = vpack.c.b16 %v2158, %v2142
        %v3087 = vpack.c.b16 %v2159, %v2143
        %v3088 = vpack.c.b16 %v2160, %v2144
        %v3089 = vpack.c.b16 %v2161, %v2145
        %v3090 = vpack.c.b16 %v2162, %v2146
        %v3091 = vpack.c.b16 %v2163, %v2147
        %v3092 = vpack.c.b16 %v2164, %v2148
        %v3093 = vpack.c.b16 %v2165, %v2149
        %v3094 = vpack.c.b16 %v2166, %v2150
        %v3095 = vpack.c.b16 %v2167, %v2151
        %v3096 = vpack.c.b16 %v2168, %v2152
        %v3097 = vpack.c.b16 %v2169, %v2153
        %v3098 = vpack.c.b16 %v2170, %v2154
        %v3099 = vpack.c.b16 %v2171, %v2155
        %v3100 = vpack.c.b16 %v2172, %v2156
        %v3101 = vpack.c.b16 %v2173, %v2157
        %v3102 = vpack.c.b16 %v2190, %v2174
        %v3103 = vpack.c.b16 %v2191, %v2175
        %v3104 = vpack.c.b16 %v2192, %v2176
        %v3105 = vpack.c.b16 %v2193, %v2177
        %v3106 = vpack.c.b16 %v2194, %v2178
        %v3107 = vpack.c.b16 %v2195, %v2179
        %v3108 = vpack.c.b16 %v2196, %v2180
        %v3109 = vpack.c.b16 %v2197, %v2181
        %v3110 = vpack.c.b16 %v2198, %v2182
        %v3111 = vpack.c.b16 %v2199, %v2183
        %v3112 = vpack.c.b16 %v2200, %v2184
        %v3113 = vpack.c.b16 %v2201, %v2185
        %v3114 = vpack.c.b16 %v2202, %v2186
        %v3115 = vpack.c.b16 %v2203, %v2187
        %v3116 = vpack.c.b16 %v2204, %v2188
        %v3117 = vpack.c.b16 %v2205, %v2189
        %v3118 = vpack.c.b16 %v2222, %v2206
        %v3119 = vpack.c.b16 %v2223, %v2207
        %v3120 = vpack.c.b16 %v2224, %v2208
        %v3121 = vpack.c.b16 %v2225, %v2209
        %v3122 = vpack.c.b16 %v2226, %v2210
        %v3123 = vpack.c.b16 %v2227, %v2211
        %v3124 = vpack.c.b16 %v2228, %v2212
        %v3125 = vpack.c.b16 %v2229, %v2213
        %v3126 = vpack.c.b16 %v2230, %v2214
        %v3127 = vpack.c.b16 %v2231, %v2215
        %v3128 = vpack.c.b16 %v2232, %v2216
        %v3129 = vpack.c.b16 %v2233, %v2217
        %v3130 = vpack.c.b16 %v2234, %v2218
        %v3131 = vpack.c.b16 %v2235, %v2219
        %v3132 = vpack.c.b16 %v2236, %v2220
        %v3133 = vpack.c.b16 %v2237, %v2221
        %v3134 = vpack.c.b16 %v2254, %v2238
        %v3135 = vpack.c.b16 %v2255, %v2239
        %v3136 = vpack.c.b16 %v2256, %v2240
        %v3137 = vpack.c.b16 %v2257, %v2241
        %v3138 = vpack.c.b16 %v2258, %v2242
        %v3139 = vpack.c.b16 %v2259, %v2243
        %v3140 = vpack.c.b16 %v2260, %v2244
        %v3141 = vpack.c.b16 %v2261, %v2245
        %v3142 = vpack.c.b16 %v2262, %v2246
        %v3143 = vpack.c.b16 %v2263, %v2247
        %v3144 = vpack.c.b16 %v2264, %v2248
        %v3145 = vpack.c.b16 %v2265, %v2249
        %v3146 = vpack.c.b16 %v2266, %v2250
        %v3147 = vpack.c.b16 %v2267, %v2251
        %v3148 = vpack.c.b16 %v2268, %v2252
        %v3149 = vpack.c.b16 %v2269, %v2253
        %v3150 = vpack.c.b16 %v2286, %v2270
        %v3151 = vpack.c.b16 %v2287, %v2271
        %v3152 = vpack.c.b16 %v2288, %v2272
        %v3153 = vpack.c.b16 %v2289, %v2273
        %v3154 = vpack.c.b16 %v2290, %v2274
        %v3155 = vpack.c.b16 %v2291, %v2275
        %v3156 = vpack.c.b16 %v2292, %v2276
        %v3157 = vpack.c.b16 %v2293, %v2277
        %v3158 = vpack.c.b16 %v2294, %v2278
        %v3159 = vpack.c.b16 %v2295, %v2279
        %v3160 = vpack.c.b16 %v2296, %v2280
        %v3161 = vpack.c.b16 %v2297, %v2281
        %v3162 = vpack.c.b16 %v2298, %v2282
        %v3163 = vpack.c.b16 %v2299, %v2283
        %v3164 = vpack.c.b16 %v2300, %v2284
        %v3165 = vpack.c.b16 %v2301, %v2285
        %v3166 = vpack.c.b16 %v2318, %v2302
        %v3167 = vpack.c.b16 %v2319, %v2303
        %v3168 = vpack.c.b16 %v2320, %v2304
        %v3169 = vpack.c.b16 %v2321, %v2305
        %v3170 = vpack.c.b16 %v2322, %v2306
        %v3171 = vpack.c.b16 %v2323, %v2307
        %v3172 = vpack.c.b16 %v2324, %v2308
        %v3173 = vpack.c.b16 %v2325, %v2309
        %v3174 = vpack.c.b16 %v2326, %v2310
        %v3175 = vpack.c.b16 %v2327, %v2311
        %v3176 = vpack.c.b16 %v2328, %v2312
        %v3177 = vpack.c.b16 %v2329, %v2313
        %v3178 = vpack.c.b16 %v2330, %v2314
        %v3179 = vpack.c.b16 %v2331, %v2315
        %v3180 = vpack.c.b16 %v2332, %v2316
        %v3181 = vpack.c.b16 %v2333, %v2317
        %v3182 = vpack.c.b16 %v2350, %v2334
        %v3183 = vpack.c.b16 %v2351, %v2335
        %v3184 = vpack.c.b16 %v2352, %v2336
        %v3185 = vpack.c.b16 %v2353, %v2337
        %v3186 = vpack.c.b16 %v2354, %v2338
        %v3187 = vpack.c.b16 %v2355, %v2339
        %v3188 = vpack.c.b16 %v2356, %v2340
        %v3189 = vpack.c.b16 %v2357, %v2341
        %v3190 = vpack.c.b16 %v2358, %v2342
        %v3191 = vpack.c.b16 %v2359, %v2343
        %v3192 = vpack.c.b16 %v2360, %v2344
        %v3193 = vpack.c.b16 %v2361, %v2345
        %v3194 = vpack.c.b16 %v2362, %v2346
        %v3195 = vpack.c.b16 %v2363, %v2347
        %v3196 = vpack.c.b16 %v2364, %v2348
        %v3197 = vpack.c.b16 %v2365, %v2349
        %v3198 = vpack.c.b16 %v2382, %v2366
        %v3199 = vpack.c.b16 %v2383, %v2367
        %v3200 = vpack.c.b16 %v2384, %v2368
        %v3201 = vpack.c.b16 %v2385, %v2369
        %v3202 = vpack.c.b16 %v2386, %v2370
        %v3203 = vpack.c.b16 %v2387, %v2371
        %v3204 = vpack.c.b16 %v2388, %v2372
        %v3205 = vpack.c.b16 %v2389, %v2373
        %v3206 = vpack.c.b16 %v2390, %v2374
        %v3207 = vpack.c.b16 %v2391, %v2375
        %v3208 = vpack.c.b16 %v2392, %v2376
        %v3209 = vpack.c.b16 %v2393, %v2377
        %v3210 = vpack.c.b16 %v2394, %v2378
        %v3211 = vpack.c.b16 %v2395, %v2379
        %v3212 = vpack.c.b16 %v2396, %v2380
        %v3213 = vpack.c.b16 %v2397, %v2381
        %v3214 = vpack.c.b16 %v2414, %v2398
        %v3215 = vpack.c.b16 %v2415, %v2399
        %v3216 = vpack.c.b16 %v2416, %v2400
        %v3217 = vpack.c.b16 %v2417, %v2401
        %v3218 = vpack.c.b16 %v2418, %v2402
        %v3219 = vpack.c.b16 %v2419, %v2403
        %v3220 = vpack.c.b16 %v2420, %v2404
        %v3221 = vpack.c.b16 %v2421, %v2405
        %v3222 = vpack.c.b16 %v2422, %v2406
        %v3223 = vpack.c.b16 %v2423, %v2407
        %v3224 = vpack.c.b16 %v2424, %v2408
        %v3225 = vpack.c.b16 %v2425, %v2409
        %v3226 = vpack.c.b16 %v2426, %v2410
        %v3227 = vpack.c.b16 %v2427, %v2411
        %v3228 = vpack.c.b16 %v2428, %v2412
        %v3229 = vpack.c.b16 %v2429, %v2413
        %v3230 = vpack.c.b16 %v2446, %v2430
        %v3231 = vpack.c.b16 %v2447, %v2431
        %v3232 = vpack.c.b16 %v2448, %v2432
        %v3233 = vpack.c.b16 %v2449, %v2433
        %v3234 = vpack.c.b16 %v2450, %v2434
        %v3235 = vpack.c.b16 %v2451, %v2435
        %v3236 = vpack.c.b16 %v2452, %v2436
        %v3237 = vpack.c.b16 %v2453, %v2437
        %v3238 = vpack.c.b16 %v2454, %v2438
        %v3239 = vpack.c.b16 %v2455, %v2439
        %v3240 = vpack.c.b16 %v2456, %v2440
        %v3241 = vpack.c.b16 %v2457, %v2441
        %v3242 = vpack.c.b16 %v2458, %v2442
        %v3243 = vpack.c.b16 %v2459, %v2443
        %v3244 = vpack.c.b16 %v2460, %v2444
        %v3245 = vpack.c.b16 %v2461, %v2445
        %v3246 = vpack.c.b16 %v2478, %v2462
        %v3247 = vpack.c.b16 %v2479, %v2463
        %v3248 = vpack.c.b16 %v2480, %v2464
        %v3249 = vpack.c.b16 %v2481, %v2465
        %v3250 = vpack.c.b16 %v2482, %v2466
        %v3251 = vpack.c.b16 %v2483, %v2467
        %v3252 = vpack.c.b16 %v2484, %v2468
        %v3253 = vpack.c.b16 %v2485, %v2469
        %v3254 = vpack.c.b16 %v2486, %v2470
        %v3255 = vpack.c.b16 %v2487, %v2471
        %v3256 = vpack.c.b16 %v2488, %v2472
        %v3257 = vpack.c.b16 %v2489, %v2473
        %v3258 = vpack.c.b16 %v2490, %v2474
        %v3259 = vpack.c.b16 %v2491, %v2475
        %v3260 = vpack.c.b16 %v2492, %v2476
        %v3261 = vpack.c.b16 %v2493, %v2477
        %v3262 = vpack.c.b16 %v2510, %v2494
        %v3263 = vpack.c.b16 %v2511, %v2495
        %v3264 = vpack.c.b16 %v2512, %v2496
        %v3265 = vpack.c.b16 %v2513, %v2497
        %v3266 = vpack.c.b16 %v2514, %v2498
        %v3267 = vpack.c.b16 %v2515, %v2499
        %v3268 = vpack.c.b16 %v2516, %v2500
        %v3269 = vpack.c.b16 %v2517, %v2501
        %v3270 = vpack.c.b16 %v2518, %v2502
        %v3271 = vpack.c.b16 %v2519, %v2503
        %v3272 = vpack.c.b16 %v2520, %v2504
        %v3273 = vpack.c.b16 %v2521, %v2505
        %v3274 = vpack.c.b16 %v2522, %v2506
        %v3275 = vpack.c.b16 %v2523, %v2507
        %v3276 = vpack.c.b16 %v2524, %v2508
        %v3277 = vpack.c.b16 %v2525, %v2509
        %v3278 = vpack.c.b16 %v2542, %v2526
        %v3279 = vpack.c.b16 %v2543, %v2527
        %v3280 = vpack.c.b16 %v2544, %v2528
        %v3281 = vpack.c.b16 %v2545, %v2529
        %v3282 = vpack.c.b16 %v2546, %v2530
        %v3283 = vpack.c.b16 %v2547, %v2531
        %v3284 = vpack.c.b16 %v2548, %v2532
        %v3285 = vpack.c.b16 %v2549, %v2533
        %v3286 = vpack.c.b16 %v2550, %v2534
        %v3287 = vpack.c.b16 %v2551, %v2535
        %v3288 = vpack.c.b16 %v2552, %v2536
        %v3289 = vpack.c.b16 %v2553, %v2537
        %v3290 = vpack.c.b16 %v2554, %v2538
        %v3291 = vpack.c.b16 %v2555, %v2539
        %v3292 = vpack.c.b16 %v2556, %v2540
        %v3293 = vpack.c.b16 %v2557, %v2541
        %v3294 = vpack.c.b16 %v2574, %v2558
        %v3295 = vpack.c.b16 %v2575, %v2559
        %v3296 = vpack.c.b16 %v2576, %v2560
        %v3297 = vpack.c.b16 %v2577, %v2561
        %v3298 = vpack.c.b16 %v2578, %v2562
        %v3299 = vpack.c.b16 %v2579, %v2563
        %v3300 = vpack.c.b16 %v2580, %v2564
        %v3301 = vpack.c.b16 %v2581, %v2565
        %v3302 = vpack.c.b16 %v2582, %v2566
        %v3303 = vpack.c.b16 %v2583, %v2567
        %v3304 = vpack.c.b16 %v2584, %v2568
        %v3305 = vpack.c.b16 %v2585, %v2569
        %v3306 = vpack.c.b16 %v2586, %v2570
        %v3307 = vpack.c.b16 %v2587, %v2571
        %v3308 = vpack.c.b16 %v2588, %v2572
        %v3309 = vpack.c.b16 %v2589, %v2573
        %v3310 = vpack.c.b16 %v2606, %v2590
        %v3311 = vpack.c.b16 %v2607, %v2591
        %v3312 = vpack.c.b16 %v2608, %v2592
        %v3313 = vpack.c.b16 %v2609, %v2593
        %v3314 = vpack.c.b16 %v2610, %v2594
        %v3315 = vpack.c.b16 %v2611, %v2595
        %v3316 = vpack.c.b16 %v2612, %v2596
        %v3317 = vpack.c.b16 %v2613, %v2597
        %v3318 = vpack.c.b16 %v2614, %v2598
        %v3319 = vpack.c.b16 %v2615, %v2599
        %v3320 = vpack.c.b16 %v2616, %v2600
        %v3321 = vpack.c.b16 %v2617, %v2601
        %v3322 = vpack.c.b16 %v2618, %v2602
        %v3323 = vpack.c.b16 %v2619, %v2603
        %v3324 = vpack.c.b16 %v2620, %v2604
        %v3325 = vpack.c.b16 %v2621, %v2605
        %v3326 = vpack.c.b16 %v2638, %v2622
        %v3327 = vpack.c.b16 %v2639, %v2623
        %v3328 = vpack.c.b16 %v2640, %v2624
        %v3329 = vpack.c.b16 %v2641, %v2625
        %v3330 = vpack.c.b16 %v2642, %v2626
        %v3331 = vpack.c.b16 %v2643, %v2627
        %v3332 = vpack.c.b16 %v2644, %v2628
        %v3333 = vpack.c.b16 %v2645, %v2629
        %v3334 = vpack.c.b16 %v2646, %v2630
        %v3335 = vpack.c.b16 %v2647, %v2631
        %v3336 = vpack.c.b16 %v2648, %v2632
        %v3337 = vpack.c.b16 %v2649, %v2633
        %v3338 = vpack.c.b16 %v2650, %v2634
        %v3339 = vpack.c.b16 %v2651, %v2635
        %v3340 = vpack.c.b16 %v2652, %v2636
        %v3341 = vpack.c.b16 %v2653, %v2637
        %v3342 = vpack.c.b16 %v2670, %v2654
        %v3343 = vpack.c.b16 %v2671, %v2655
        %v3344 = vpack.c.b16 %v2672, %v2656
        %v3345 = vpack.c.b16 %v2673, %v2657
        %v3346 = vpack.c.b16 %v2674, %v2658
        %v3347 = vpack.c.b16 %v2675, %v2659
        %v3348 = vpack.c.b16 %v2676, %v2660
        %v3349 = vpack.c.b16 %v2677, %v2661
        %v3350 = vpack.c.b16 %v2678, %v2662
        %v3351 = vpack.c.b16 %v2679, %v2663
        %v3352 = vpack.c.b16 %v2680, %v2664
        %v3353 = vpack.c.b16 %v2681, %v2665
        %v3354 = vpack.c.b16 %v2682, %v2666
        %v3355 = vpack.c.b16 %v2683, %v2667
        %v3356 = vpack.c.b16 %v2684, %v2668
        %v3357 = vpack.c.b16 %v2685, %v2669
        %v3358 = vpack.c.b16 %v2702, %v2686
        %v3359 = vpack.c.b16 %v2703, %v2687
        %v3360 = vpack.c.b16 %v2704, %v2688
        %v3361 = vpack.c.b16 %v2705, %v2689
        %v3362 = vpack.c.b16 %v2706, %v2690
        %v3363 = vpack.c.b16 %v2707, %v2691
        %v3364 = vpack.c.b16 %v2708, %v2692
        %v3365 = vpack.c.b16 %v2709, %v2693
        %v3366 = vpack.c.b16 %v2710, %v2694
        %v3367 = vpack.c.b16 %v2711, %v2695
        %v3368 = vpack.c.b16 %v2712, %v2696
        %v3369 = vpack.c.b16 %v2713, %v2697
        %v3370 = vpack.c.b16 %v2714, %v2698
        %v3371 = vpack.c.b16 %v2715, %v2699
        %v3372 = vpack.c.b16 %v2716, %v2700
        %v3373 = vpack.c.b16 %v2717, %v2701
        %v3374 = vpack.c.b16 %v2734, %v2718
        %v3375 = vpack.c.b16 %v2735, %v2719
        %v3376 = vpack.c.b16 %v2736, %v2720
        %v3377 = vpack.c.b16 %v2737, %v2721
        %v3378 = vpack.c.b16 %v2738, %v2722
        %v3379 = vpack.c.b16 %v2739, %v2723
        %v3380 = vpack.c.b16 %v2740, %v2724
        %v3381 = vpack.c.b16 %v2741, %v2725
        %v3382 = vpack.c.b16 %v2742, %v2726
        %v3383 = vpack.c.b16 %v2743, %v2727
        %v3384 = vpack.c.b16 %v2744, %v2728
        %v3385 = vpack.c.b16 %v2745, %v2729
        %v3386 = vpack.c.b16 %v2746, %v2730
        %v3387 = vpack.c.b16 %v2747, %v2731
        %v3388 = vpack.c.b16 %v2748, %v2732
        %v3389 = vpack.c.b16 %v2749, %v2733
        %v3390 = vpack.c.b16 %v2766, %v2750
        %v3391 = vpack.c.b16 %v2767, %v2751
        %v3392 = vpack.c.b16 %v2768, %v2752
        %v3393 = vpack.c.b16 %v2769, %v2753
        %v3394 = vpack.c.b16 %v2770, %v2754
        %v3395 = vpack.c.b16 %v2771, %v2755
        %v3396 = vpack.c.b16 %v2772, %v2756
        %v3397 = vpack.c.b16 %v2773, %v2757
        %v3398 = vpack.c.b16 %v2774, %v2758
        %v3399 = vpack.c.b16 %v2775, %v2759
        %v3400 = vpack.c.b16 %v2776, %v2760
        %v3401 = vpack.c.b16 %v2777, %v2761
        %v3402 = vpack.c.b16 %v2778, %v2762
        %v3403 = vpack.c.b16 %v2779, %v2763
        %v3404 = vpack.c.b16 %v2780, %v2764
        %v3405 = vpack.c.b16 %v2781, %v2765
        %v3406 = vpack.c.b16 %v2798, %v2782
        %v3407 = vpack.c.b16 %v2799, %v2783
        %v3408 = vpack.c.b16 %v2800, %v2784
        %v3409 = vpack.c.b16 %v2801, %v2785
        %v3410 = vpack.c.b16 %v2802, %v2786
        %v3411 = vpack.c.b16 %v2803, %v2787
        %v3412 = vpack.c.b16 %v2804, %v2788
        %v3413 = vpack.c.b16 %v2805, %v2789
        %v3414 = vpack.c.b16 %v2806, %v2790
        %v3415 = vpack.c.b16 %v2807, %v2791
        %v3416 = vpack.c.b16 %v2808, %v2792
        %v3417 = vpack.c.b16 %v2809, %v2793
        %v3418 = vpack.c.b16 %v2810, %v2794
        %v3419 = vpack.c.b16 %v2811, %v2795
        %v3420 = vpack.c.b16 %v2812, %v2796
        %v3421 = vpack.c.b16 %v2813, %v2797
        %v3422 = vpack.c.b16 %v2830, %v2814
        %v3423 = vpack.c.b16 %v2831, %v2815
        %v3424 = vpack.c.b16 %v2832, %v2816
        %v3425 = vpack.c.b16 %v2833, %v2817
        %v3426 = vpack.c.b16 %v2834, %v2818
        %v3427 = vpack.c.b16 %v2835, %v2819
        %v3428 = vpack.c.b16 %v2836, %v2820
        %v3429 = vpack.c.b16 %v2837, %v2821
        %v3430 = vpack.c.b16 %v2838, %v2822
        %v3431 = vpack.c.b16 %v2839, %v2823
        %v3432 = vpack.c.b16 %v2840, %v2824
        %v3433 = vpack.c.b16 %v2841, %v2825
        %v3434 = vpack.c.b16 %v2842, %v2826
        %v3435 = vpack.c.b16 %v2843, %v2827
        %v3436 = vpack.c.b16 %v2844, %v2828
        %v3437 = vpack.c.b16 %v2845, %v2829
        %v3438 = vpack.c.b16 %v2862, %v2846
        %v3439 = vpack.c.b16 %v2863, %v2847
        %v3440 = vpack.c.b16 %v2864, %v2848
        %v3441 = vpack.c.b16 %v2865, %v2849
        %v3442 = vpack.c.b16 %v2866, %v2850
        %v3443 = vpack.c.b16 %v2867, %v2851
        %v3444 = vpack.c.b16 %v2868, %v2852
        %v3445 = vpack.c.b16 %v2869, %v2853
        %v3446 = vpack.c.b16 %v2870, %v2854
        %v3447 = vpack.c.b16 %v2871, %v2855
        %v3448 = vpack.c.b16 %v2872, %v2856
        %v3449 = vpack.c.b16 %v2873, %v2857
        %v3450 = vpack.c.b16 %v2874, %v2858
        %v3451 = vpack.c.b16 %v2875, %v2859
        %v3452 = vpack.c.b16 %v2876, %v2860
        %v3453 = vpack.c.b16 %v2877, %v2861
        %v3454 = vpack.c.b16 %v2894, %v2878
        %v3455 = vpack.c.b16 %v2895, %v2879
        %v3456 = vpack.c.b16 %v2896, %v2880
        %v3457 = vpack.c.b16 %v2897, %v2881
        %v3458 = vpack.c.b16 %v2898, %v2882
        %v3459 = vpack.c.b16 %v2899, %v2883
        %v3460 = vpack.c.b16 %v2900, %v2884
        %v3461 = vpack.c.b16 %v2901, %v2885
        %v3462 = vpack.c.b16 %v2902, %v2886
        %v3463 = vpack.c.b16 %v2903, %v2887
        %v3464 = vpack.c.b16 %v2904, %v2888
        %v3465 = vpack.c.b16 %v2905, %v2889
        %v3466 = vpack.c.b16 %v2906, %v2890
        %v3467 = vpack.c.b16 %v2907, %v2891
        %v3468 = vpack.c.b16 %v2908, %v2892
        %v3469 = vpack.c.b16 %v2909, %v2893
        %v3470 = vpack.c.b16 %v2926, %v2910
        %v3471 = vpack.c.b16 %v2927, %v2911
        %v3472 = vpack.c.b16 %v2928, %v2912
        %v3473 = vpack.c.b16 %v2929, %v2913
        %v3474 = vpack.c.b16 %v2930, %v2914
        %v3475 = vpack.c.b16 %v2931, %v2915
        %v3476 = vpack.c.b16 %v2932, %v2916
        %v3477 = vpack.c.b16 %v2933, %v2917
        %v3478 = vpack.c.b16 %v2934, %v2918
        %v3479 = vpack.c.b16 %v2935, %v2919
        %v3480 = vpack.c.b16 %v2936, %v2920
        %v3481 = vpack.c.b16 %v2937, %v2921
        %v3482 = vpack.c.b16 %v2938, %v2922
        %v3483 = vpack.c.b16 %v2939, %v2923
        %v3484 = vpack.c.b16 %v2940, %v2924
        %v3485 = vpack.c.b16 %v2941, %v2925
        %v3486 = vpack.c.b16 %v2958, %v2942
        %v3487 = vpack.c.b16 %v2959, %v2943
        %v3488 = vpack.c.b16 %v2960, %v2944
        %v3489 = vpack.c.b16 %v2961, %v2945
        %v3490 = vpack.c.b16 %v2962, %v2946
        %v3491 = vpack.c.b16 %v2963, %v2947
        %v3492 = vpack.c.b16 %v2964, %v2948
        %v3493 = vpack.c.b16 %v2965, %v2949
        %v3494 = vpack.c.b16 %v2966, %v2950
        %v3495 = vpack.c.b16 %v2967, %v2951
        %v3496 = vpack.c.b16 %v2968, %v2952
        %v3497 = vpack.c.b16 %v2969, %v2953
        %v3498 = vpack.c.b16 %v2970, %v2954
        %v3499 = vpack.c.b16 %v2971, %v2955
        %v3500 = vpack.c.b16 %v2972, %v2956
        %v3501 = vpack.c.b16 %v2973, %v2957
        %v3502 = vpack.c.b16 %v2990, %v2974
        %v3503 = vpack.c.b16 %v2991, %v2975
        %v3504 = vpack.c.b16 %v2992, %v2976
        %v3505 = vpack.c.b16 %v2993, %v2977
        %v3506 = vpack.c.b16 %v2994, %v2978
        %v3507 = vpack.c.b16 %v2995, %v2979
        %v3508 = vpack.c.b16 %v2996, %v2980
        %v3509 = vpack.c.b16 %v2997, %v2981
        %v3510 = vpack.c.b16 %v2998, %v2982
        %v3511 = vpack.c.b16 %v2999, %v2983
        %v3512 = vpack.c.b16 %v3000, %v2984
        %v3513 = vpack.c.b16 %v3001, %v2985
        %v3514 = vpack.c.b16 %v3002, %v2986
        %v3515 = vpack.c.b16 %v3003, %v2987
        %v3516 = vpack.c.b16 %v3004, %v2988
        %v3517 = vpack.c.b16 %v3005, %v2989
        %4030 = vmatpush.bf16.msra.mxu0 %v3118
        %4031 = vmatpush.bf16.msra.mxu0 %v3102
        %4032 = vmatpush.bf16.msra.mxu0 %v3086
        %4033 = vmatpush.bf16.msra.mxu0 %v3070
        %4034 = vmatpush.bf16.msra.mxu0 %v3054
        %4035 = vmatpush.bf16.msra.mxu0 %v3038
        %4036 = vmatpush.bf16.msra.mxu0 %v3022
        %4037 = vmatpush.bf16.msra.mxu0 %v3006
        %4038 = vmatmul.bf16.gmra.mxu0 %v918
        %v4039 = vpop.f32.mrf.mxu0
        %v4040 = vadd.f32 %v1438, %v4039
        %v4041 = vpop.f32.mrf.mxu0
        %4042 = vdwg.mxu0
        %4043 = vmatpush.bf16.msra.mxu0 %v3246
        %4044 = vmatpush.bf16.msra.mxu0 %v3230
        %4045 = vmatpush.bf16.msra.mxu0 %v3214
        %4046 = vmatpush.bf16.msra.mxu0 %v3198
        %4047 = vmatpush.bf16.msra.mxu0 %v3182
        %4048 = vmatpush.bf16.msra.mxu0 %v3166
        %4049 = vmatpush.bf16.msra.mxu0 %v3150
        %4050 = vmatpush.bf16.msra.mxu0 %v3134
        %4051 = vmatmul.bf16.gmra.mxu0 %v919
        %v4052 = vpop.f32.mrf.mxu0
        %v4053 = vadd.f32 %v4040, %v4052
        %v4054 = vpop.f32.mrf.mxu0
        %4055 = vdwg.mxu0
        %4056 = vmatpush.bf16.msra.mxu0 %v3374
        %4057 = vmatpush.bf16.msra.mxu0 %v3358
        %4058 = vmatpush.bf16.msra.mxu0 %v3342
        %4059 = vmatpush.bf16.msra.mxu0 %v3326
        %4060 = vmatpush.bf16.msra.mxu0 %v3310
        %4061 = vmatpush.bf16.msra.mxu0 %v3294
        %4062 = vmatpush.bf16.msra.mxu0 %v3278
        %4063 = vmatpush.bf16.msra.mxu0 %v3262
        %4064 = vmatmul.bf16.gmra.mxu0 %v920
        %v4065 = vpop.f32.mrf.mxu0
        %v4066 = vadd.f32 %v4053, %v4065
        %v4067 = vpop.f32.mrf.mxu0
        %4068 = vdwg.mxu0
        %4069 = vmatpush.bf16.msra.mxu0 %v3502
        %4070 = vmatpush.bf16.msra.mxu0 %v3486
        %4071 = vmatpush.bf16.msra.mxu0 %v3470
        %4072 = vmatpush.bf16.msra.mxu0 %v3454
        %4073 = vmatpush.bf16.msra.mxu0 %v3438
        %4074 = vmatpush.bf16.msra.mxu0 %v3422
        %4075 = vmatpush.bf16.msra.mxu0 %v3406
        %4076 = vmatpush.bf16.msra.mxu0 %v3390
        %4077 = vmatmul.bf16.gmra.mxu0 %v921
        %v4078 = vpop.f32.mrf.mxu0
        %v4079 = vadd.f32 %v4066, %v4078
        %v4080 = vpop.f32.mrf.mxu0
        %4081 = vdwg.mxu0
        %4082 = vmatpush.bf16.msra.mxu0 %v3119
        %4083 = vmatpush.bf16.msra.mxu0 %v3103
        %4084 = vmatpush.bf16.msra.mxu0 %v3087
        %4085 = vmatpush.bf16.msra.mxu0 %v3071
        %4086 = vmatpush.bf16.msra.mxu0 %v3055
        %4087 = vmatpush.bf16.msra.mxu0 %v3039
        %4088 = vmatpush.bf16.msra.mxu0 %v3023
        %4089 = vmatpush.bf16.msra.mxu0 %v3007
        %4090 = vmatmul.bf16.gmra.mxu0 %v918
        %v4091 = vpop.f32.mrf.mxu0
        %v4092 = vadd.f32 %v1439, %v4091
        %v4093 = vpop.f32.mrf.mxu0
        %4094 = vdwg.mxu0
        %4095 = vmatpush.bf16.msra.mxu0 %v3247
        %4096 = vmatpush.bf16.msra.mxu0 %v3231
        %4097 = vmatpush.bf16.msra.mxu0 %v3215
        %4098 = vmatpush.bf16.msra.mxu0 %v3199
        %4099 = vmatpush.bf16.msra.mxu0 %v3183
        %4100 = vmatpush.bf16.msra.mxu0 %v3167
        %4101 = vmatpush.bf16.msra.mxu0 %v3151
        %4102 = vmatpush.bf16.msra.mxu0 %v3135
        %4103 = vmatmul.bf16.gmra.mxu0 %v919
        %v4104 = vpop.f32.mrf.mxu0
        %v4105 = vadd.f32 %v4092, %v4104
        %v4106 = vpop.f32.mrf.mxu0
        %4107 = vdwg.mxu0
        %4108 = vmatpush.bf16.msra.mxu0 %v3375
        %4109 = vmatpush.bf16.msra.mxu0 %v3359
        %4110 = vmatpush.bf16.msra.mxu0 %v3343
        %4111 = vmatpush.bf16.msra.mxu0 %v3327
        %4112 = vmatpush.bf16.msra.mxu0 %v3311
        %4113 = vmatpush.bf16.msra.mxu0 %v3295
        %4114 = vmatpush.bf16.msra.mxu0 %v3279
        %4115 = vmatpush.bf16.msra.mxu0 %v3263
        %4116 = vmatmul.bf16.gmra.mxu0 %v920
        %v4117 = vpop.f32.mrf.mxu0
        %v4118 = vadd.f32 %v4105, %v4117
        %v4119 = vpop.f32.mrf.mxu0
        %4120 = vdwg.mxu0
        %4121 = vmatpush.bf16.msra.mxu0 %v3503
        %4122 = vmatpush.bf16.msra.mxu0 %v3487
        %4123 = vmatpush.bf16.msra.mxu0 %v3471
        %4124 = vmatpush.bf16.msra.mxu0 %v3455
        %4125 = vmatpush.bf16.msra.mxu0 %v3439
        %4126 = vmatpush.bf16.msra.mxu0 %v3423
        %4127 = vmatpush.bf16.msra.mxu0 %v3407
        %4128 = vmatpush.bf16.msra.mxu0 %v3391
        %4129 = vmatmul.bf16.gmra.mxu0 %v921
        %v4130 = vpop.f32.mrf.mxu0
        %v4131 = vadd.f32 %v4118, %v4130
        %v4132 = vpop.f32.mrf.mxu0
        %4133 = vdwg.mxu0
        %4134 = vmatpush.bf16.msra.mxu0 %v3120
        %4135 = vmatpush.bf16.msra.mxu0 %v3104
        %4136 = vmatpush.bf16.msra.mxu0 %v3088
        %4137 = vmatpush.bf16.msra.mxu0 %v3072
        %4138 = vmatpush.bf16.msra.mxu0 %v3056
        %4139 = vmatpush.bf16.msra.mxu0 %v3040
        %4140 = vmatpush.bf16.msra.mxu0 %v3024
        %4141 = vmatpush.bf16.msra.mxu0 %v3008
        %4142 = vmatmul.bf16.gmra.mxu0 %v918
        %v4143 = vpop.f32.mrf.mxu0
        %v4144 = vadd.f32 %v1440, %v4143
        %v4145 = vpop.f32.mrf.mxu0
        %4146 = vdwg.mxu0
        %4147 = vmatpush.bf16.msra.mxu0 %v3248
        %4148 = vmatpush.bf16.msra.mxu0 %v3232
        %4149 = vmatpush.bf16.msra.mxu0 %v3216
        %4150 = vmatpush.bf16.msra.mxu0 %v3200
        %4151 = vmatpush.bf16.msra.mxu0 %v3184
        %4152 = vmatpush.bf16.msra.mxu0 %v3168
        %4153 = vmatpush.bf16.msra.mxu0 %v3152
        %4154 = vmatpush.bf16.msra.mxu0 %v3136
        %4155 = vmatmul.bf16.gmra.mxu0 %v919
        %v4156 = vpop.f32.mrf.mxu0
        %v4157 = vadd.f32 %v4144, %v4156
        %v4158 = vpop.f32.mrf.mxu0
        %4159 = vdwg.mxu0
        %4160 = vmatpush.bf16.msra.mxu0 %v3376
        %4161 = vmatpush.bf16.msra.mxu0 %v3360
        %4162 = vmatpush.bf16.msra.mxu0 %v3344
        %4163 = vmatpush.bf16.msra.mxu0 %v3328
        %4164 = vmatpush.bf16.msra.mxu0 %v3312
        %4165 = vmatpush.bf16.msra.mxu0 %v3296
        %4166 = vmatpush.bf16.msra.mxu0 %v3280
        %4167 = vmatpush.bf16.msra.mxu0 %v3264
        %4168 = vmatmul.bf16.gmra.mxu0 %v920
        %v4169 = vpop.f32.mrf.mxu0
        %v4170 = vadd.f32 %v4157, %v4169
        %v4171 = vpop.f32.mrf.mxu0
        %4172 = vdwg.mxu0
        %4173 = vmatpush.bf16.msra.mxu0 %v3504
        %4174 = vmatpush.bf16.msra.mxu0 %v3488
        %4175 = vmatpush.bf16.msra.mxu0 %v3472
        %4176 = vmatpush.bf16.msra.mxu0 %v3456
        %4177 = vmatpush.bf16.msra.mxu0 %v3440
        %4178 = vmatpush.bf16.msra.mxu0 %v3424
        %4179 = vmatpush.bf16.msra.mxu0 %v3408
        %4180 = vmatpush.bf16.msra.mxu0 %v3392
        %4181 = vmatmul.bf16.gmra.mxu0 %v921
        %v4182 = vpop.f32.mrf.mxu0
        %v4183 = vadd.f32 %v4170, %v4182
        %v4184 = vpop.f32.mrf.mxu0
        %4185 = vdwg.mxu0
        %4186 = vmatpush.bf16.msra.mxu0 %v3121
        %4187 = vmatpush.bf16.msra.mxu0 %v3105
        %4188 = vmatpush.bf16.msra.mxu0 %v3089
        %4189 = vmatpush.bf16.msra.mxu0 %v3073
        %4190 = vmatpush.bf16.msra.mxu0 %v3057
        %4191 = vmatpush.bf16.msra.mxu0 %v3041
        %4192 = vmatpush.bf16.msra.mxu0 %v3025
        %4193 = vmatpush.bf16.msra.mxu0 %v3009
        %4194 = vmatmul.bf16.gmra.mxu0 %v918
        %v4195 = vpop.f32.mrf.mxu0
        %v4196 = vadd.f32 %v1441, %v4195
        %v4197 = vpop.f32.mrf.mxu0
        %4198 = vdwg.mxu0
        %4199 = vmatpush.bf16.msra.mxu0 %v3249
        %4200 = vmatpush.bf16.msra.mxu0 %v3233
        %4201 = vmatpush.bf16.msra.mxu0 %v3217
        %4202 = vmatpush.bf16.msra.mxu0 %v3201
        %4203 = vmatpush.bf16.msra.mxu0 %v3185
        %4204 = vmatpush.bf16.msra.mxu0 %v3169
        %4205 = vmatpush.bf16.msra.mxu0 %v3153
        %4206 = vmatpush.bf16.msra.mxu0 %v3137
        %4207 = vmatmul.bf16.gmra.mxu0 %v919
        %v4208 = vpop.f32.mrf.mxu0
        %v4209 = vadd.f32 %v4196, %v4208
        %v4210 = vpop.f32.mrf.mxu0
        %4211 = vdwg.mxu0
        %4212 = vmatpush.bf16.msra.mxu0 %v3377
        %4213 = vmatpush.bf16.msra.mxu0 %v3361
        %4214 = vmatpush.bf16.msra.mxu0 %v3345
        %4215 = vmatpush.bf16.msra.mxu0 %v3329
        %4216 = vmatpush.bf16.msra.mxu0 %v3313
        %4217 = vmatpush.bf16.msra.mxu0 %v3297
        %4218 = vmatpush.bf16.msra.mxu0 %v3281
        %4219 = vmatpush.bf16.msra.mxu0 %v3265
        %4220 = vmatmul.bf16.gmra.mxu0 %v920
        %v4221 = vpop.f32.mrf.mxu0
        %v4222 = vadd.f32 %v4209, %v4221
        %v4223 = vpop.f32.mrf.mxu0
        %4224 = vdwg.mxu0
        %4225 = vmatpush.bf16.msra.mxu0 %v3505
        %4226 = vmatpush.bf16.msra.mxu0 %v3489
        %4227 = vmatpush.bf16.msra.mxu0 %v3473
        %4228 = vmatpush.bf16.msra.mxu0 %v3457
        %4229 = vmatpush.bf16.msra.mxu0 %v3441
        %4230 = vmatpush.bf16.msra.mxu0 %v3425
        %4231 = vmatpush.bf16.msra.mxu0 %v3409
        %4232 = vmatpush.bf16.msra.mxu0 %v3393
        %4233 = vmatmul.bf16.gmra.mxu0 %v921
        %v4234 = vpop.f32.mrf.mxu0
        %v4235 = vadd.f32 %v4222, %v4234
        %v4236 = vpop.f32.mrf.mxu0
        %4237 = vdwg.mxu0
        %4238 = vmatpush.bf16.msra.mxu0 %v3122
        %4239 = vmatpush.bf16.msra.mxu0 %v3106
        %4240 = vmatpush.bf16.msra.mxu0 %v3090
        %4241 = vmatpush.bf16.msra.mxu0 %v3074
        %4242 = vmatpush.bf16.msra.mxu0 %v3058
        %4243 = vmatpush.bf16.msra.mxu0 %v3042
        %4244 = vmatpush.bf16.msra.mxu0 %v3026
        %4245 = vmatpush.bf16.msra.mxu0 %v3010
        %4246 = vmatmul.bf16.gmra.mxu0 %v918
        %v4247 = vpop.f32.mrf.mxu0
        %v4248 = vadd.f32 %v1442, %v4247
        %v4249 = vpop.f32.mrf.mxu0
        %4250 = vdwg.mxu0
        %4251 = vmatpush.bf16.msra.mxu0 %v3250
        %4252 = vmatpush.bf16.msra.mxu0 %v3234
        %4253 = vmatpush.bf16.msra.mxu0 %v3218
        %4254 = vmatpush.bf16.msra.mxu0 %v3202
        %4255 = vmatpush.bf16.msra.mxu0 %v3186
        %4256 = vmatpush.bf16.msra.mxu0 %v3170
        %4257 = vmatpush.bf16.msra.mxu0 %v3154
        %4258 = vmatpush.bf16.msra.mxu0 %v3138
        %4259 = vmatmul.bf16.gmra.mxu0 %v919
        %v4260 = vpop.f32.mrf.mxu0
        %v4261 = vadd.f32 %v4248, %v4260
        %v4262 = vpop.f32.mrf.mxu0
        %4263 = vdwg.mxu0
        %4264 = vmatpush.bf16.msra.mxu0 %v3378
        %4265 = vmatpush.bf16.msra.mxu0 %v3362
        %4266 = vmatpush.bf16.msra.mxu0 %v3346
        %4267 = vmatpush.bf16.msra.mxu0 %v3330
        %4268 = vmatpush.bf16.msra.mxu0 %v3314
        %4269 = vmatpush.bf16.msra.mxu0 %v3298
        %4270 = vmatpush.bf16.msra.mxu0 %v3282
        %4271 = vmatpush.bf16.msra.mxu0 %v3266
        %4272 = vmatmul.bf16.gmra.mxu0 %v920
        %v4273 = vpop.f32.mrf.mxu0
        %v4274 = vadd.f32 %v4261, %v4273
        %v4275 = vpop.f32.mrf.mxu0
        %4276 = vdwg.mxu0
        %4277 = vmatpush.bf16.msra.mxu0 %v3506
        %4278 = vmatpush.bf16.msra.mxu0 %v3490
        %4279 = vmatpush.bf16.msra.mxu0 %v3474
        %4280 = vmatpush.bf16.msra.mxu0 %v3458
        %4281 = vmatpush.bf16.msra.mxu0 %v3442
        %4282 = vmatpush.bf16.msra.mxu0 %v3426
        %4283 = vmatpush.bf16.msra.mxu0 %v3410
        %4284 = vmatpush.bf16.msra.mxu0 %v3394
        %4285 = vmatmul.bf16.gmra.mxu0 %v921
        %v4286 = vpop.f32.mrf.mxu0
        %v4287 = vadd.f32 %v4274, %v4286
        %v4288 = vpop.f32.mrf.mxu0
        %4289 = vdwg.mxu0
        %4290 = vmatpush.bf16.msra.mxu0 %v3123
        %4291 = vmatpush.bf16.msra.mxu0 %v3107
        %4292 = vmatpush.bf16.msra.mxu0 %v3091
        %4293 = vmatpush.bf16.msra.mxu0 %v3075
        %4294 = vmatpush.bf16.msra.mxu0 %v3059
        %4295 = vmatpush.bf16.msra.mxu0 %v3043
        %4296 = vmatpush.bf16.msra.mxu0 %v3027
        %4297 = vmatpush.bf16.msra.mxu0 %v3011
        %4298 = vmatmul.bf16.gmra.mxu0 %v918
        %v4299 = vpop.f32.mrf.mxu0
        %v4300 = vadd.f32 %v1443, %v4299
        %v4301 = vpop.f32.mrf.mxu0
        %4302 = vdwg.mxu0
        %4303 = vmatpush.bf16.msra.mxu0 %v3251
        %4304 = vmatpush.bf16.msra.mxu0 %v3235
        %4305 = vmatpush.bf16.msra.mxu0 %v3219
        %4306 = vmatpush.bf16.msra.mxu0 %v3203
        %4307 = vmatpush.bf16.msra.mxu0 %v3187
        %4308 = vmatpush.bf16.msra.mxu0 %v3171
        %4309 = vmatpush.bf16.msra.mxu0 %v3155
        %4310 = vmatpush.bf16.msra.mxu0 %v3139
        %4311 = vmatmul.bf16.gmra.mxu0 %v919
        %v4312 = vpop.f32.mrf.mxu0
        %v4313 = vadd.f32 %v4300, %v4312
        %v4314 = vpop.f32.mrf.mxu0
        %4315 = vdwg.mxu0
        %4316 = vmatpush.bf16.msra.mxu0 %v3379
        %4317 = vmatpush.bf16.msra.mxu0 %v3363
        %4318 = vmatpush.bf16.msra.mxu0 %v3347
        %4319 = vmatpush.bf16.msra.mxu0 %v3331
        %4320 = vmatpush.bf16.msra.mxu0 %v3315
        %4321 = vmatpush.bf16.msra.mxu0 %v3299
        %4322 = vmatpush.bf16.msra.mxu0 %v3283
        %4323 = vmatpush.bf16.msra.mxu0 %v3267
        %4324 = vmatmul.bf16.gmra.mxu0 %v920
        %v4325 = vpop.f32.mrf.mxu0
        %v4326 = vadd.f32 %v4313, %v4325
        %v4327 = vpop.f32.mrf.mxu0
        %4328 = vdwg.mxu0
        %4329 = vmatpush.bf16.msra.mxu0 %v3507
        %4330 = vmatpush.bf16.msra.mxu0 %v3491
        %4331 = vmatpush.bf16.msra.mxu0 %v3475
        %4332 = vmatpush.bf16.msra.mxu0 %v3459
        %4333 = vmatpush.bf16.msra.mxu0 %v3443
        %4334 = vmatpush.bf16.msra.mxu0 %v3427
        %4335 = vmatpush.bf16.msra.mxu0 %v3411
        %4336 = vmatpush.bf16.msra.mxu0 %v3395
        %4337 = vmatmul.bf16.gmra.mxu0 %v921
        %v4338 = vpop.f32.mrf.mxu0
        %v4339 = vadd.f32 %v4326, %v4338
        %v4340 = vpop.f32.mrf.mxu0
        %4341 = vdwg.mxu0
        %4342 = vmatpush.bf16.msra.mxu0 %v3124
        %4343 = vmatpush.bf16.msra.mxu0 %v3108
        %4344 = vmatpush.bf16.msra.mxu0 %v3092
        %4345 = vmatpush.bf16.msra.mxu0 %v3076
        %4346 = vmatpush.bf16.msra.mxu0 %v3060
        %4347 = vmatpush.bf16.msra.mxu0 %v3044
        %4348 = vmatpush.bf16.msra.mxu0 %v3028
        %4349 = vmatpush.bf16.msra.mxu0 %v3012
        %4350 = vmatmul.bf16.gmra.mxu0 %v918
        %v4351 = vpop.f32.mrf.mxu0
        %v4352 = vadd.f32 %v1444, %v4351
        %v4353 = vpop.f32.mrf.mxu0
        %4354 = vdwg.mxu0
        %4355 = vmatpush.bf16.msra.mxu0 %v3252
        %4356 = vmatpush.bf16.msra.mxu0 %v3236
        %4357 = vmatpush.bf16.msra.mxu0 %v3220
        %4358 = vmatpush.bf16.msra.mxu0 %v3204
        %4359 = vmatpush.bf16.msra.mxu0 %v3188
        %4360 = vmatpush.bf16.msra.mxu0 %v3172
        %4361 = vmatpush.bf16.msra.mxu0 %v3156
        %4362 = vmatpush.bf16.msra.mxu0 %v3140
        %4363 = vmatmul.bf16.gmra.mxu0 %v919
        %v4364 = vpop.f32.mrf.mxu0
        %v4365 = vadd.f32 %v4352, %v4364
        %v4366 = vpop.f32.mrf.mxu0
        %4367 = vdwg.mxu0
        %4368 = vmatpush.bf16.msra.mxu0 %v3380
        %4369 = vmatpush.bf16.msra.mxu0 %v3364
        %4370 = vmatpush.bf16.msra.mxu0 %v3348
        %4371 = vmatpush.bf16.msra.mxu0 %v3332
        %4372 = vmatpush.bf16.msra.mxu0 %v3316
        %4373 = vmatpush.bf16.msra.mxu0 %v3300
        %4374 = vmatpush.bf16.msra.mxu0 %v3284
        %4375 = vmatpush.bf16.msra.mxu0 %v3268
        %4376 = vmatmul.bf16.gmra.mxu0 %v920
        %v4377 = vpop.f32.mrf.mxu0
        %v4378 = vadd.f32 %v4365, %v4377
        %v4379 = vpop.f32.mrf.mxu0
        %4380 = vdwg.mxu0
        %4381 = vmatpush.bf16.msra.mxu0 %v3508
        %4382 = vmatpush.bf16.msra.mxu0 %v3492
        %4383 = vmatpush.bf16.msra.mxu0 %v3476
        %4384 = vmatpush.bf16.msra.mxu0 %v3460
        %4385 = vmatpush.bf16.msra.mxu0 %v3444
        %4386 = vmatpush.bf16.msra.mxu0 %v3428
        %4387 = vmatpush.bf16.msra.mxu0 %v3412
        %4388 = vmatpush.bf16.msra.mxu0 %v3396
        %4389 = vmatmul.bf16.gmra.mxu0 %v921
        %v4390 = vpop.f32.mrf.mxu0
        %v4391 = vadd.f32 %v4378, %v4390
        %v4392 = vpop.f32.mrf.mxu0
        %4393 = vdwg.mxu0
        %4394 = vmatpush.bf16.msra.mxu0 %v3125
        %4395 = vmatpush.bf16.msra.mxu0 %v3109
        %4396 = vmatpush.bf16.msra.mxu0 %v3093
        %4397 = vmatpush.bf16.msra.mxu0 %v3077
        %4398 = vmatpush.bf16.msra.mxu0 %v3061
        %4399 = vmatpush.bf16.msra.mxu0 %v3045
        %4400 = vmatpush.bf16.msra.mxu0 %v3029
        %4401 = vmatpush.bf16.msra.mxu0 %v3013
        %4402 = vmatmul.bf16.gmra.mxu0 %v918
        %v4403 = vpop.f32.mrf.mxu0
        %v4404 = vadd.f32 %v1445, %v4403
        %v4405 = vpop.f32.mrf.mxu0
        %4406 = vdwg.mxu0
        %4407 = vmatpush.bf16.msra.mxu0 %v3253
        %4408 = vmatpush.bf16.msra.mxu0 %v3237
        %4409 = vmatpush.bf16.msra.mxu0 %v3221
        %4410 = vmatpush.bf16.msra.mxu0 %v3205
        %4411 = vmatpush.bf16.msra.mxu0 %v3189
        %4412 = vmatpush.bf16.msra.mxu0 %v3173
        %4413 = vmatpush.bf16.msra.mxu0 %v3157
        %4414 = vmatpush.bf16.msra.mxu0 %v3141
        %4415 = vmatmul.bf16.gmra.mxu0 %v919
        %v4416 = vpop.f32.mrf.mxu0
        %v4417 = vadd.f32 %v4404, %v4416
        %v4418 = vpop.f32.mrf.mxu0
        %4419 = vdwg.mxu0
        %4420 = vmatpush.bf16.msra.mxu0 %v3381
        %4421 = vmatpush.bf16.msra.mxu0 %v3365
        %4422 = vmatpush.bf16.msra.mxu0 %v3349
        %4423 = vmatpush.bf16.msra.mxu0 %v3333
        %4424 = vmatpush.bf16.msra.mxu0 %v3317
        %4425 = vmatpush.bf16.msra.mxu0 %v3301
        %4426 = vmatpush.bf16.msra.mxu0 %v3285
        %4427 = vmatpush.bf16.msra.mxu0 %v3269
        %4428 = vmatmul.bf16.gmra.mxu0 %v920
        %v4429 = vpop.f32.mrf.mxu0
        %v4430 = vadd.f32 %v4417, %v4429
        %v4431 = vpop.f32.mrf.mxu0
        %4432 = vdwg.mxu0
        %4433 = vmatpush.bf16.msra.mxu0 %v3509
        %4434 = vmatpush.bf16.msra.mxu0 %v3493
        %4435 = vmatpush.bf16.msra.mxu0 %v3477
        %4436 = vmatpush.bf16.msra.mxu0 %v3461
        %4437 = vmatpush.bf16.msra.mxu0 %v3445
        %4438 = vmatpush.bf16.msra.mxu0 %v3429
        %4439 = vmatpush.bf16.msra.mxu0 %v3413
        %4440 = vmatpush.bf16.msra.mxu0 %v3397
        %4441 = vmatmul.bf16.gmra.mxu0 %v921
        %v4442 = vpop.f32.mrf.mxu0
        %v4443 = vadd.f32 %v4430, %v4442
        %v4444 = vpop.f32.mrf.mxu0
        %4445 = vdwg.mxu0
        %4446 = vmatpush.bf16.msra.mxu0 %v3126
        %4447 = vmatpush.bf16.msra.mxu0 %v3110
        %4448 = vmatpush.bf16.msra.mxu0 %v3094
        %4449 = vmatpush.bf16.msra.mxu0 %v3078
        %4450 = vmatpush.bf16.msra.mxu0 %v3062
        %4451 = vmatpush.bf16.msra.mxu0 %v3046
        %4452 = vmatpush.bf16.msra.mxu0 %v3030
        %4453 = vmatpush.bf16.msra.mxu0 %v3014
        %4454 = vmatmul.bf16.gmra.mxu0 %v918
        %v4455 = vpop.f32.mrf.mxu0
        %v4456 = vadd.f32 %v1446, %v4455
        %v4457 = vpop.f32.mrf.mxu0
        %4458 = vdwg.mxu0
        %4459 = vmatpush.bf16.msra.mxu0 %v3254
        %4460 = vmatpush.bf16.msra.mxu0 %v3238
        %4461 = vmatpush.bf16.msra.mxu0 %v3222
        %4462 = vmatpush.bf16.msra.mxu0 %v3206
        %4463 = vmatpush.bf16.msra.mxu0 %v3190
        %4464 = vmatpush.bf16.msra.mxu0 %v3174
        %4465 = vmatpush.bf16.msra.mxu0 %v3158
        %4466 = vmatpush.bf16.msra.mxu0 %v3142
        %4467 = vmatmul.bf16.gmra.mxu0 %v919
        %v4468 = vpop.f32.mrf.mxu0
        %v4469 = vadd.f32 %v4456, %v4468
        %v4470 = vpop.f32.mrf.mxu0
        %4471 = vdwg.mxu0
        %4472 = vmatpush.bf16.msra.mxu0 %v3382
        %4473 = vmatpush.bf16.msra.mxu0 %v3366
        %4474 = vmatpush.bf16.msra.mxu0 %v3350
        %4475 = vmatpush.bf16.msra.mxu0 %v3334
        %4476 = vmatpush.bf16.msra.mxu0 %v3318
        %4477 = vmatpush.bf16.msra.mxu0 %v3302
        %4478 = vmatpush.bf16.msra.mxu0 %v3286
        %4479 = vmatpush.bf16.msra.mxu0 %v3270
        %4480 = vmatmul.bf16.gmra.mxu0 %v920
        %v4481 = vpop.f32.mrf.mxu0
        %v4482 = vadd.f32 %v4469, %v4481
        %v4483 = vpop.f32.mrf.mxu0
        %4484 = vdwg.mxu0
        %4485 = vmatpush.bf16.msra.mxu0 %v3510
        %4486 = vmatpush.bf16.msra.mxu0 %v3494
        %4487 = vmatpush.bf16.msra.mxu0 %v3478
        %4488 = vmatpush.bf16.msra.mxu0 %v3462
        %4489 = vmatpush.bf16.msra.mxu0 %v3446
        %4490 = vmatpush.bf16.msra.mxu0 %v3430
        %4491 = vmatpush.bf16.msra.mxu0 %v3414
        %4492 = vmatpush.bf16.msra.mxu0 %v3398
        %4493 = vmatmul.bf16.gmra.mxu0 %v921
        %v4494 = vpop.f32.mrf.mxu0
        %v4495 = vadd.f32 %v4482, %v4494
        %v4496 = vpop.f32.mrf.mxu0
        %4497 = vdwg.mxu0
        %4498 = vmatpush.bf16.msra.mxu0 %v3127
        %4499 = vmatpush.bf16.msra.mxu0 %v3111
        %4500 = vmatpush.bf16.msra.mxu0 %v3095
        %4501 = vmatpush.bf16.msra.mxu0 %v3079
        %4502 = vmatpush.bf16.msra.mxu0 %v3063
        %4503 = vmatpush.bf16.msra.mxu0 %v3047
        %4504 = vmatpush.bf16.msra.mxu0 %v3031
        %4505 = vmatpush.bf16.msra.mxu0 %v3015
        %4506 = vmatmul.bf16.gmra.mxu0 %v918
        %v4507 = vpop.f32.mrf.mxu0
        %v4508 = vadd.f32 %v1447, %v4507
        %v4509 = vpop.f32.mrf.mxu0
        %4510 = vdwg.mxu0
        %4511 = vmatpush.bf16.msra.mxu0 %v3255
        %4512 = vmatpush.bf16.msra.mxu0 %v3239
        %4513 = vmatpush.bf16.msra.mxu0 %v3223
        %4514 = vmatpush.bf16.msra.mxu0 %v3207
        %4515 = vmatpush.bf16.msra.mxu0 %v3191
        %4516 = vmatpush.bf16.msra.mxu0 %v3175
        %4517 = vmatpush.bf16.msra.mxu0 %v3159
        %4518 = vmatpush.bf16.msra.mxu0 %v3143
        %4519 = vmatmul.bf16.gmra.mxu0 %v919
        %v4520 = vpop.f32.mrf.mxu0
        %v4521 = vadd.f32 %v4508, %v4520
        %v4522 = vpop.f32.mrf.mxu0
        %4523 = vdwg.mxu0
        %4524 = vmatpush.bf16.msra.mxu0 %v3383
        %4525 = vmatpush.bf16.msra.mxu0 %v3367
        %4526 = vmatpush.bf16.msra.mxu0 %v3351
        %4527 = vmatpush.bf16.msra.mxu0 %v3335
        %4528 = vmatpush.bf16.msra.mxu0 %v3319
        %4529 = vmatpush.bf16.msra.mxu0 %v3303
        %4530 = vmatpush.bf16.msra.mxu0 %v3287
        %4531 = vmatpush.bf16.msra.mxu0 %v3271
        %4532 = vmatmul.bf16.gmra.mxu0 %v920
        %v4533 = vpop.f32.mrf.mxu0
        %v4534 = vadd.f32 %v4521, %v4533
        %v4535 = vpop.f32.mrf.mxu0
        %4536 = vdwg.mxu0
        %4537 = vmatpush.bf16.msra.mxu0 %v3511
        %4538 = vmatpush.bf16.msra.mxu0 %v3495
        %4539 = vmatpush.bf16.msra.mxu0 %v3479
        %4540 = vmatpush.bf16.msra.mxu0 %v3463
        %4541 = vmatpush.bf16.msra.mxu0 %v3447
        %4542 = vmatpush.bf16.msra.mxu0 %v3431
        %4543 = vmatpush.bf16.msra.mxu0 %v3415
        %4544 = vmatpush.bf16.msra.mxu0 %v3399
        %4545 = vmatmul.bf16.gmra.mxu0 %v921
        %v4546 = vpop.f32.mrf.mxu0
        %v4547 = vadd.f32 %v4534, %v4546
        %v4548 = vpop.f32.mrf.mxu0
        %4549 = vdwg.mxu0
        %4550 = vmatpush.bf16.msra.mxu0 %v3128
        %4551 = vmatpush.bf16.msra.mxu0 %v3112
        %4552 = vmatpush.bf16.msra.mxu0 %v3096
        %4553 = vmatpush.bf16.msra.mxu0 %v3080
        %4554 = vmatpush.bf16.msra.mxu0 %v3064
        %4555 = vmatpush.bf16.msra.mxu0 %v3048
        %4556 = vmatpush.bf16.msra.mxu0 %v3032
        %4557 = vmatpush.bf16.msra.mxu0 %v3016
        %4558 = vmatmul.bf16.gmra.mxu0 %v918
        %v4559 = vpop.f32.mrf.mxu0
        %v4560 = vadd.f32 %v1448, %v4559
        %v4561 = vpop.f32.mrf.mxu0
        %4562 = vdwg.mxu0
        %4563 = vmatpush.bf16.msra.mxu0 %v3256
        %4564 = vmatpush.bf16.msra.mxu0 %v3240
        %4565 = vmatpush.bf16.msra.mxu0 %v3224
        %4566 = vmatpush.bf16.msra.mxu0 %v3208
        %4567 = vmatpush.bf16.msra.mxu0 %v3192
        %4568 = vmatpush.bf16.msra.mxu0 %v3176
        %4569 = vmatpush.bf16.msra.mxu0 %v3160
        %4570 = vmatpush.bf16.msra.mxu0 %v3144
        %4571 = vmatmul.bf16.gmra.mxu0 %v919
        %v4572 = vpop.f32.mrf.mxu0
        %v4573 = vadd.f32 %v4560, %v4572
        %v4574 = vpop.f32.mrf.mxu0
        %4575 = vdwg.mxu0
        %4576 = vmatpush.bf16.msra.mxu0 %v3384
        %4577 = vmatpush.bf16.msra.mxu0 %v3368
        %4578 = vmatpush.bf16.msra.mxu0 %v3352
        %4579 = vmatpush.bf16.msra.mxu0 %v3336
        %4580 = vmatpush.bf16.msra.mxu0 %v3320
        %4581 = vmatpush.bf16.msra.mxu0 %v3304
        %4582 = vmatpush.bf16.msra.mxu0 %v3288
        %4583 = vmatpush.bf16.msra.mxu0 %v3272
        %4584 = vmatmul.bf16.gmra.mxu0 %v920
        %v4585 = vpop.f32.mrf.mxu0
        %v4586 = vadd.f32 %v4573, %v4585
        %v4587 = vpop.f32.mrf.mxu0
        %4588 = vdwg.mxu0
        %4589 = vmatpush.bf16.msra.mxu0 %v3512
        %4590 = vmatpush.bf16.msra.mxu0 %v3496
        %4591 = vmatpush.bf16.msra.mxu0 %v3480
        %4592 = vmatpush.bf16.msra.mxu0 %v3464
        %4593 = vmatpush.bf16.msra.mxu0 %v3448
        %4594 = vmatpush.bf16.msra.mxu0 %v3432
        %4595 = vmatpush.bf16.msra.mxu0 %v3416
        %4596 = vmatpush.bf16.msra.mxu0 %v3400
        %4597 = vmatmul.bf16.gmra.mxu0 %v921
        %v4598 = vpop.f32.mrf.mxu0
        %v4599 = vadd.f32 %v4586, %v4598
        %v4600 = vpop.f32.mrf.mxu0
        %4601 = vdwg.mxu0
        %4602 = vmatpush.bf16.msra.mxu0 %v3129
        %4603 = vmatpush.bf16.msra.mxu0 %v3113
        %4604 = vmatpush.bf16.msra.mxu0 %v3097
        %4605 = vmatpush.bf16.msra.mxu0 %v3081
        %4606 = vmatpush.bf16.msra.mxu0 %v3065
        %4607 = vmatpush.bf16.msra.mxu0 %v3049
        %4608 = vmatpush.bf16.msra.mxu0 %v3033
        %4609 = vmatpush.bf16.msra.mxu0 %v3017
        %4610 = vmatmul.bf16.gmra.mxu0 %v918
        %v4611 = vpop.f32.mrf.mxu0
        %v4612 = vadd.f32 %v1449, %v4611
        %v4613 = vpop.f32.mrf.mxu0
        %4614 = vdwg.mxu0
        %4615 = vmatpush.bf16.msra.mxu0 %v3257
        %4616 = vmatpush.bf16.msra.mxu0 %v3241
        %4617 = vmatpush.bf16.msra.mxu0 %v3225
        %4618 = vmatpush.bf16.msra.mxu0 %v3209
        %4619 = vmatpush.bf16.msra.mxu0 %v3193
        %4620 = vmatpush.bf16.msra.mxu0 %v3177
        %4621 = vmatpush.bf16.msra.mxu0 %v3161
        %4622 = vmatpush.bf16.msra.mxu0 %v3145
        %4623 = vmatmul.bf16.gmra.mxu0 %v919
        %v4624 = vpop.f32.mrf.mxu0
        %v4625 = vadd.f32 %v4612, %v4624
        %v4626 = vpop.f32.mrf.mxu0
        %4627 = vdwg.mxu0
        %4628 = vmatpush.bf16.msra.mxu0 %v3385
        %4629 = vmatpush.bf16.msra.mxu0 %v3369
        %4630 = vmatpush.bf16.msra.mxu0 %v3353
        %4631 = vmatpush.bf16.msra.mxu0 %v3337
        %4632 = vmatpush.bf16.msra.mxu0 %v3321
        %4633 = vmatpush.bf16.msra.mxu0 %v3305
        %4634 = vmatpush.bf16.msra.mxu0 %v3289
        %4635 = vmatpush.bf16.msra.mxu0 %v3273
        %4636 = vmatmul.bf16.gmra.mxu0 %v920
        %v4637 = vpop.f32.mrf.mxu0
        %v4638 = vadd.f32 %v4625, %v4637
        %v4639 = vpop.f32.mrf.mxu0
        %4640 = vdwg.mxu0
        %4641 = vmatpush.bf16.msra.mxu0 %v3513
        %4642 = vmatpush.bf16.msra.mxu0 %v3497
        %4643 = vmatpush.bf16.msra.mxu0 %v3481
        %4644 = vmatpush.bf16.msra.mxu0 %v3465
        %4645 = vmatpush.bf16.msra.mxu0 %v3449
        %4646 = vmatpush.bf16.msra.mxu0 %v3433
        %4647 = vmatpush.bf16.msra.mxu0 %v3417
        %4648 = vmatpush.bf16.msra.mxu0 %v3401
        %4649 = vmatmul.bf16.gmra.mxu0 %v921
        %v4650 = vpop.f32.mrf.mxu0
        %v4651 = vadd.f32 %v4638, %v4650
        %v4652 = vpop.f32.mrf.mxu0
        %4653 = vdwg.mxu0
        %4654 = vmatpush.bf16.msra.mxu0 %v3130
        %4655 = vmatpush.bf16.msra.mxu0 %v3114
        %4656 = vmatpush.bf16.msra.mxu0 %v3098
        %4657 = vmatpush.bf16.msra.mxu0 %v3082
        %4658 = vmatpush.bf16.msra.mxu0 %v3066
        %4659 = vmatpush.bf16.msra.mxu0 %v3050
        %4660 = vmatpush.bf16.msra.mxu0 %v3034
        %4661 = vmatpush.bf16.msra.mxu0 %v3018
        %4662 = vmatmul.bf16.gmra.mxu0 %v918
        %v4663 = vpop.f32.mrf.mxu0
        %v4664 = vadd.f32 %v1450, %v4663
        %v4665 = vpop.f32.mrf.mxu0
        %4666 = vdwg.mxu0
        %4667 = vmatpush.bf16.msra.mxu0 %v3258
        %4668 = vmatpush.bf16.msra.mxu0 %v3242
        %4669 = vmatpush.bf16.msra.mxu0 %v3226
        %4670 = vmatpush.bf16.msra.mxu0 %v3210
        %4671 = vmatpush.bf16.msra.mxu0 %v3194
        %4672 = vmatpush.bf16.msra.mxu0 %v3178
        %4673 = vmatpush.bf16.msra.mxu0 %v3162
        %4674 = vmatpush.bf16.msra.mxu0 %v3146
        %4675 = vmatmul.bf16.gmra.mxu0 %v919
        %v4676 = vpop.f32.mrf.mxu0
        %v4677 = vadd.f32 %v4664, %v4676
        %v4678 = vpop.f32.mrf.mxu0
        %4679 = vdwg.mxu0
        %4680 = vmatpush.bf16.msra.mxu0 %v3386
        %4681 = vmatpush.bf16.msra.mxu0 %v3370
        %4682 = vmatpush.bf16.msra.mxu0 %v3354
        %4683 = vmatpush.bf16.msra.mxu0 %v3338
        %4684 = vmatpush.bf16.msra.mxu0 %v3322
        %4685 = vmatpush.bf16.msra.mxu0 %v3306
        %4686 = vmatpush.bf16.msra.mxu0 %v3290
        %4687 = vmatpush.bf16.msra.mxu0 %v3274
        %4688 = vmatmul.bf16.gmra.mxu0 %v920
        %v4689 = vpop.f32.mrf.mxu0
        %v4690 = vadd.f32 %v4677, %v4689
        %v4691 = vpop.f32.mrf.mxu0
        %4692 = vdwg.mxu0
        %4693 = vmatpush.bf16.msra.mxu0 %v3514
        %4694 = vmatpush.bf16.msra.mxu0 %v3498
        %4695 = vmatpush.bf16.msra.mxu0 %v3482
        %4696 = vmatpush.bf16.msra.mxu0 %v3466
        %4697 = vmatpush.bf16.msra.mxu0 %v3450
        %4698 = vmatpush.bf16.msra.mxu0 %v3434
        %4699 = vmatpush.bf16.msra.mxu0 %v3418
        %4700 = vmatpush.bf16.msra.mxu0 %v3402
        %4701 = vmatmul.bf16.gmra.mxu0 %v921
        %v4702 = vpop.f32.mrf.mxu0
        %v4703 = vadd.f32 %v4690, %v4702
        %v4704 = vpop.f32.mrf.mxu0
        %4705 = vdwg.mxu0
        %4706 = vmatpush.bf16.msra.mxu0 %v3131
        %4707 = vmatpush.bf16.msra.mxu0 %v3115
        %4708 = vmatpush.bf16.msra.mxu0 %v3099
        %4709 = vmatpush.bf16.msra.mxu0 %v3083
        %4710 = vmatpush.bf16.msra.mxu0 %v3067
        %4711 = vmatpush.bf16.msra.mxu0 %v3051
        %4712 = vmatpush.bf16.msra.mxu0 %v3035
        %4713 = vmatpush.bf16.msra.mxu0 %v3019
        %4714 = vmatmul.bf16.gmra.mxu0 %v918
        %v4715 = vpop.f32.mrf.mxu0
        %v4716 = vadd.f32 %v1451, %v4715
        %v4717 = vpop.f32.mrf.mxu0
        %4718 = vdwg.mxu0
        %4719 = vmatpush.bf16.msra.mxu0 %v3259
        %4720 = vmatpush.bf16.msra.mxu0 %v3243
        %4721 = vmatpush.bf16.msra.mxu0 %v3227
        %4722 = vmatpush.bf16.msra.mxu0 %v3211
        %4723 = vmatpush.bf16.msra.mxu0 %v3195
        %4724 = vmatpush.bf16.msra.mxu0 %v3179
        %4725 = vmatpush.bf16.msra.mxu0 %v3163
        %4726 = vmatpush.bf16.msra.mxu0 %v3147
        %4727 = vmatmul.bf16.gmra.mxu0 %v919
        %v4728 = vpop.f32.mrf.mxu0
        %v4729 = vadd.f32 %v4716, %v4728
        %v4730 = vpop.f32.mrf.mxu0
        %4731 = vdwg.mxu0
        %4732 = vmatpush.bf16.msra.mxu0 %v3387
        %4733 = vmatpush.bf16.msra.mxu0 %v3371
        %4734 = vmatpush.bf16.msra.mxu0 %v3355
        %4735 = vmatpush.bf16.msra.mxu0 %v3339
        %4736 = vmatpush.bf16.msra.mxu0 %v3323
        %4737 = vmatpush.bf16.msra.mxu0 %v3307
        %4738 = vmatpush.bf16.msra.mxu0 %v3291
        %4739 = vmatpush.bf16.msra.mxu0 %v3275
        %4740 = vmatmul.bf16.gmra.mxu0 %v920
        %v4741 = vpop.f32.mrf.mxu0
        %v4742 = vadd.f32 %v4729, %v4741
        %v4743 = vpop.f32.mrf.mxu0
        %4744 = vdwg.mxu0
        %4745 = vmatpush.bf16.msra.mxu0 %v3515
        %4746 = vmatpush.bf16.msra.mxu0 %v3499
        %4747 = vmatpush.bf16.msra.mxu0 %v3483
        %4748 = vmatpush.bf16.msra.mxu0 %v3467
        %4749 = vmatpush.bf16.msra.mxu0 %v3451
        %4750 = vmatpush.bf16.msra.mxu0 %v3435
        %4751 = vmatpush.bf16.msra.mxu0 %v3419
        %4752 = vmatpush.bf16.msra.mxu0 %v3403
        %4753 = vmatmul.bf16.gmra.mxu0 %v921
        %v4754 = vpop.f32.mrf.mxu0
        %v4755 = vadd.f32 %v4742, %v4754
        %v4756 = vpop.f32.mrf.mxu0
        %4757 = vdwg.mxu0
        %4758 = vmatpush.bf16.msra.mxu0 %v3132
        %4759 = vmatpush.bf16.msra.mxu0 %v3116
        %4760 = vmatpush.bf16.msra.mxu0 %v3100
        %4761 = vmatpush.bf16.msra.mxu0 %v3084
        %4762 = vmatpush.bf16.msra.mxu0 %v3068
        %4763 = vmatpush.bf16.msra.mxu0 %v3052
        %4764 = vmatpush.bf16.msra.mxu0 %v3036
        %4765 = vmatpush.bf16.msra.mxu0 %v3020
        %4766 = vmatmul.bf16.gmra.mxu0 %v918
        %v4767 = vpop.f32.mrf.mxu0
        %v4768 = vadd.f32 %v1452, %v4767
        %v4769 = vpop.f32.mrf.mxu0
        %4770 = vdwg.mxu0
        %4771 = vmatpush.bf16.msra.mxu0 %v3260
        %4772 = vmatpush.bf16.msra.mxu0 %v3244
        %4773 = vmatpush.bf16.msra.mxu0 %v3228
        %4774 = vmatpush.bf16.msra.mxu0 %v3212
        %4775 = vmatpush.bf16.msra.mxu0 %v3196
        %4776 = vmatpush.bf16.msra.mxu0 %v3180
        %4777 = vmatpush.bf16.msra.mxu0 %v3164
        %4778 = vmatpush.bf16.msra.mxu0 %v3148
        %4779 = vmatmul.bf16.gmra.mxu0 %v919
        %v4780 = vpop.f32.mrf.mxu0
        %v4781 = vadd.f32 %v4768, %v4780
        %v4782 = vpop.f32.mrf.mxu0
        %4783 = vdwg.mxu0
        %4784 = vmatpush.bf16.msra.mxu0 %v3388
        %4785 = vmatpush.bf16.msra.mxu0 %v3372
        %4786 = vmatpush.bf16.msra.mxu0 %v3356
        %4787 = vmatpush.bf16.msra.mxu0 %v3340
        %4788 = vmatpush.bf16.msra.mxu0 %v3324
        %4789 = vmatpush.bf16.msra.mxu0 %v3308
        %4790 = vmatpush.bf16.msra.mxu0 %v3292
        %4791 = vmatpush.bf16.msra.mxu0 %v3276
        %4792 = vmatmul.bf16.gmra.mxu0 %v920
        %v4793 = vpop.f32.mrf.mxu0
        %v4794 = vadd.f32 %v4781, %v4793
        %v4795 = vpop.f32.mrf.mxu0
        %4796 = vdwg.mxu0
        %4797 = vmatpush.bf16.msra.mxu0 %v3516
        %4798 = vmatpush.bf16.msra.mxu0 %v3500
        %4799 = vmatpush.bf16.msra.mxu0 %v3484
        %4800 = vmatpush.bf16.msra.mxu0 %v3468
        %4801 = vmatpush.bf16.msra.mxu0 %v3452
        %4802 = vmatpush.bf16.msra.mxu0 %v3436
        %4803 = vmatpush.bf16.msra.mxu0 %v3420
        %4804 = vmatpush.bf16.msra.mxu0 %v3404
        %4805 = vmatmul.bf16.gmra.mxu0 %v921
        %v4806 = vpop.f32.mrf.mxu0
        %v4807 = vadd.f32 %v4794, %v4806
        %v4808 = vpop.f32.mrf.mxu0
        %4809 = vdwg.mxu0
        %4810 = vmatpush.bf16.msra.mxu0 %v3133
        %4811 = vmatpush.bf16.msra.mxu0 %v3117
        %4812 = vmatpush.bf16.msra.mxu0 %v3101
        %4813 = vmatpush.bf16.msra.mxu0 %v3085
        %4814 = vmatpush.bf16.msra.mxu0 %v3069
        %4815 = vmatpush.bf16.msra.mxu0 %v3053
        %4816 = vmatpush.bf16.msra.mxu0 %v3037
        %4817 = vmatpush.bf16.msra.mxu0 %v3021
        %4818 = vmatmul.bf16.gmra.mxu0 %v918
        %v4819 = vpop.f32.mrf.mxu0
        %v4820 = vadd.f32 %v1453, %v4819
        %v4821 = vpop.f32.mrf.mxu0
        %4822 = vdwg.mxu0
        %4823 = vmatpush.bf16.msra.mxu0 %v3261
        %4824 = vmatpush.bf16.msra.mxu0 %v3245
        %4825 = vmatpush.bf16.msra.mxu0 %v3229
        %4826 = vmatpush.bf16.msra.mxu0 %v3213
        %4827 = vmatpush.bf16.msra.mxu0 %v3197
        %4828 = vmatpush.bf16.msra.mxu0 %v3181
        %4829 = vmatpush.bf16.msra.mxu0 %v3165
        %4830 = vmatpush.bf16.msra.mxu0 %v3149
        %4831 = vmatmul.bf16.gmra.mxu0 %v919
        %v4832 = vpop.f32.mrf.mxu0
        %v4833 = vadd.f32 %v4820, %v4832
        %v4834 = vpop.f32.mrf.mxu0
        %4835 = vdwg.mxu0
        %4836 = vmatpush.bf16.msra.mxu0 %v3389
        %4837 = vmatpush.bf16.msra.mxu0 %v3373
        %4838 = vmatpush.bf16.msra.mxu0 %v3357
        %4839 = vmatpush.bf16.msra.mxu0 %v3341
        %4840 = vmatpush.bf16.msra.mxu0 %v3325
        %4841 = vmatpush.bf16.msra.mxu0 %v3309
        %4842 = vmatpush.bf16.msra.mxu0 %v3293
        %4843 = vmatpush.bf16.msra.mxu0 %v3277
        %4844 = vmatmul.bf16.gmra.mxu0 %v920
        %v4845 = vpop.f32.mrf.mxu0
        %v4846 = vadd.f32 %v4833, %v4845
        %v4847 = vpop.f32.mrf.mxu0
        %4848 = vdwg.mxu0
        %4849 = vmatpush.bf16.msra.mxu0 %v3517
        %4850 = vmatpush.bf16.msra.mxu0 %v3501
        %4851 = vmatpush.bf16.msra.mxu0 %v3485
        %4852 = vmatpush.bf16.msra.mxu0 %v3469
        %4853 = vmatpush.bf16.msra.mxu0 %v3453
        %4854 = vmatpush.bf16.msra.mxu0 %v3437
        %4855 = vmatpush.bf16.msra.mxu0 %v3421
        %4856 = vmatpush.bf16.msra.mxu0 %v3405
        %4857 = vmatmul.bf16.gmra.mxu0 %v921
        %v4858 = vpop.f32.mrf.mxu0
        %v4859 = vadd.f32 %v4846, %v4858
        %v4860 = vpop.f32.mrf.mxu0
        %4861 = vdwg.mxu0
        %v4862 = vtanh.pop %v4079
        %v4863 = vtanh.pop %v4131
        %v4864 = vtanh.pop %v4183
        %v4865 = vtanh.pop %v4235
        %v4866 = vtanh.pop %v4287
        %v4867 = vtanh.pop %v4339
        %v4868 = vtanh.pop %v4391
        %v4869 = vtanh.pop %v4443
        %v4870 = vtanh.pop %v4495
        %v4871 = vtanh.pop %v4547
        %v4872 = vtanh.pop %v4599
        %v4873 = vtanh.pop %v4651
        %v4874 = vtanh.pop %v4703
        %v4875 = vtanh.pop %v4755
        %v4876 = vtanh.pop %v4807
        %v4877 = vtanh.pop %v4859
        %v4894 = vrot.slane %v4863, 6
        %v4895 = vrot.slane %v4864, 4
        %v4896 = vrot.slane %v4865, 2
        %v4897 = vrot.slane %v4867, 6
        %v4898 = vrot.slane %v4868, 4
        %v4899 = vrot.slane %v4869, 2
        %v4900 = vrot.slane %v4871, 6
        %v4901 = vrot.slane %v4872, 4
        %v4902 = vrot.slane %v4873, 2
        %v4903 = vrot.slane %v4875, 6
        %v4904 = vrot.slane %v4876, 4
        %v4905 = vrot.slane %v4877, 2
        %vm4906 = vcmask 1041408
        %v4907 = vsel %vm4906, %v4862, %v4894
        %vm4908 = vcmask 1045508
        %v4909 = vsel %vm4908, %v4895, %v4896
        %vm4910 = vcmask 1043456
        %v4911 = vsel %vm4910, %v4907, %v4909
        %v4912 = vsel %vm4906, %v4866, %v4897
        %v4913 = vsel %vm4908, %v4898, %v4899
        %v4914 = vsel %vm4910, %v4912, %v4913
        %v4915 = vsel %vm4906, %v4870, %v4900
        %v4916 = vsel %vm4908, %v4901, %v4902
        %v4917 = vsel %vm4910, %v4915, %v4916
        %v4918 = vsel %vm4906, %v4874, %v4903
        %v4919 = vsel %vm4908, %v4904, %v4905
        %v4920 = vsel %vm4910, %v4918, %v4919
        %4925 = vst [vmem:[%s500] sm:$0xff] %v4911
        %4926 = vst [vmem:[%s500 + $0x8] sm:$0xff] %v4914
        %4927 = vst [vmem:[%s500 + $0x10] sm:$0xff] %v4917
        %4928 = vst [vmem:[%s500 + $0x18] sm:$0xff] %v4920
        %s4929 = smul.u32 16, %s27
        %p4930 = scmp.lt.s32.totalorder %s4929, 95
        %s4931 = scalar_select %p4930, %s4929, 95
        %s4932 = smul.addr %s4931, 2
        %s4933 = scalar_lea.vmem %s9, %s4932
        // Predicated region
        $region93: #{generator_forward.1} parent=55 // pred_check
          %p4934 = pneg %p244
        $region94: #{generator_forward.1} parent=55 // pred_check_branch
          %4936 = sbr.rel (%p4934) target = $region96
        $region95: #{generator_forward.1} parent=55 // pred_region
          %s4937 = smul.u32 16, %s27
        $region96: #{generator_forward.1} parent=55 // pred_fallthru
          _
      $region56: #{generator_forward.1} parent=5 // pred_fallthru
        _
      %p4938 = scmp.le.s32.totalorder 2, %s22
      // Predicated region
      $region97: #{generator_forward.1} parent=5 // pred_check
        %p4939 = pneg %p4938
      $region98: #{generator_forward.1} parent=5 // pred_check_branch
        %4941 = sbr.rel (%p4939) target = $region100
      $region99: #{generator_forward.1} parent=5 // pred_region
        %s4942 = ssub.s32 %s22, 2
        // Predicated region
        $region101: #{generator_forward.1} parent=99 // pred_check
          %p4943 = pneg %p250
        $region102: #{generator_forward.1} parent=99 // pred_check_branch
          %4945 = sbr.rel (%p4943) target = $region104
        $region103: #{generator_forward.1} parent=99 // pred_region
          %s4946 = smul.u32 16, %s28
          %p4947 = scmp.lt.s32.totalorder %s4946, 95
          %s4948 = scalar_select %p4947, %s4946, 95
          %s4949 = smul.addr %s4948, 2
          %s4950 = scalar_lea.vmem %s9, %s4949
        $region104: #{generator_forward.1} parent=99 // pred_fallthru
          _
      $region100: #{generator_forward.1} parent=5 // pred_fallthru
        _
    $region6: #{generator_forward.1} parent=1 // loop_footer
      %s26 = sadd.s32 1, %s22
    $region7: #{generator_forward.1} parent=1 // loop_footer_branch
      %21 = sbr.rel target = $region3
    $region8: #{generator_forward.1} parent=1 // loop_exit
      _
    %4951 = vsyncpa [#allocation3], 1
    %s4952 = scalar_lea.sflag [#allocation3], 1
    %4953 = vsyncpa %s4952, 1
    %4954 = vsyncpa [#allocation5], 1
    %4955 = vsyncpa [#allocation8], 1
    %4956 = vsyncpa [#allocation11], 1
    %4957 = vsyncpa [#allocation14], 1
    %s4958 = scalar_lea.sflag [#allocation14], 1
    %4959 = vsyncpa %s4958, 1

</llo_original>
